<compile_context>
chip_gen: v5e
topology: v5e:2x2
jax: 0.10.0
libtpu: 0.0.40
codegen_flags: <defaults>
</compile_context>

<pallas_src>
import functools

import jax
import jax.numpy as jnp
from jax import lax
from jax.experimental import pallas as pl
from jax.experimental.pallas import tpu as pltpu


# ---------------------------------------------------------------------------
# Fused Bottleneck kernel (one batch element per grid step)
# ---------------------------------------------------------------------------
def _bottleneck_kernel(x_ref, w1_ref, b1_ref, w2_ref, b2_ref, w3_ref, b3_ref,
                       o_ref, pad_ref, *, H, W, mxu_dtype):
    """x_ref:   (1, H*W, Cin)     input slab (also the residual), f32/bf16
       w1_ref:  (Cin, P)          1x1 conv1 weight, BN1 scale folded (mxu_dtype)
       b1_ref:  (1, P)            BN1 shift (f32)
       w2_ref:  (9*P, P)          3x3 conv2 weight, rows = (kh*3+kw)*P + cin
       b2_ref:  (1, P)            BN2 shift (f32)
       w3_ref:  (P, Cout)         1x1 conv3 weight, BN3 scale folded
       b3_ref:  (1, Cout)         BN3 shift (f32)
       o_ref:   (1, H*W, Cout)    output slab
       pad_ref: (H+2, W+2, P)     VMEM scratch for the zero-padded conv2 input
    """
    HW = H * W
    P = w1_ref.shape[1]

    # --- conv1 (1x1, BN folded) + ReLU: 2-D matmul, M = H*W ----------------
    x2d = x_ref[0]                                              # (HW, Cin)
    h1 = jnp.dot(x2d.astype(mxu_dtype), w1_ref[...],
                 preferred_element_type=jnp.float32)
    h1 = jnp.maximum(h1 + b1_ref[0][None, :], 0.0)              # (HW, P) f32

    # --- conv2 (3x3 'same', BN folded) + ReLU -------------------------------
    # Interior store overwrites the full (H, W) region every step; only the
    # 1-element border needs (re-)zeroing.  Border is never touched by the
    # interior store -- keep this invariant if halo/strip tiling is added.
    pad_ref[1:H + 1, 1:W + 1, :] = h1.reshape(H, W, P).astype(pad_ref.dtype)
    zrow = jnp.zeros((1, W + 2, P), pad_ref.dtype)
    pad_ref[0:1, :, :] = zrow
    pad_ref[H + 1:H + 2, :, :] = zrow
    zcol = jnp.zeros((H + 2, 1, P), pad_ref.dtype)
    pad_ref[:, 0:1, :] = zcol
    pad_ref[:, W + 1:W + 2, :] = zcol

    # Nine shifted K=P matmuls accumulated in f32 (no materialized im2col,
    # no 9-way concatenate).
    taps = [(dh, dw) for dh in range(3) for dw in range(3)]
    acc = None
    for t, (dh, dw) in enumerate(taps):
        lhs = pad_ref[dh:dh + H, dw:dw + W, :].reshape(HW, P)   # mxu_dtype
        part = jnp.dot(lhs, w2_ref[t * P:(t + 1) * P, :],
                       preferred_element_type=jnp.float32)
        acc = part if acc is None else acc + part
    h2 = jnp.maximum(acc + b2_ref[0][None, :], 0.0)             # (HW, P) f32

    # --- conv3 (1x1, BN folded) + identity residual + ReLU ------------------
    h3 = jnp.dot(h2.astype(mxu_dtype), w3_ref[...],
                 preferred_element_type=jnp.float32)
    h3 = h3 + b3_ref[0][None, :]
    # Re-load the residual (still resident in VMEM) instead of keeping it live
    # across both matmul sections.
    res = x_ref[0].astype(jnp.float32)
    o_ref[0] = jnp.maximum(h3 + res, 0.0).astype(o_ref.dtype)


# ---------------------------------------------------------------------------
# Wrappers
# ---------------------------------------------------------------------------
def _fold_bn(w, gamma, beta, mean, var, *, eps=1e-5):
    """Fold eval-mode BN (following a bias-free conv) into the conv weight.

    Returns (w * scale) and the additive shift acting on the conv output
    channel (last dim of w). Exact for any gamma sign.
    """
    scale = gamma / jnp.sqrt(var + eps)
    shift = beta - mean * scale
    return w * scale, shift


def _const_spec(shape):
    """BlockSpec for a grid-invariant operand: single-buffered (no re-DMA)."""
    nd = len(shape)
    return pl.BlockSpec(shape, lambda n: (0,) * nd,
                        pipeline_mode=pl.Buffered(1))


def bottleneck_forward_nhwc(x_nhwc, params, *, eps=1e-5,
                            mxu_dtype=jnp.bfloat16, out_dtype=None):
    """Fused Bottleneck forward, NHWC in / NHWC out, stride=1, no downsample."""
    N, H, W, cin = x_nhwc.shape
    planes = params["w1"].shape[1]
    cout = params["w3"].shape[1]
    assert cin == cout, "identity residual requires inplanes == planes * 4"
    out_dtype = x_nhwc.dtype if out_dtype is None else out_dtype

    w1f, t1 = _fold_bn(params["w1"], *params["bn1"], eps=eps)   # (Cin, P)
    w2f, t2 = _fold_bn(params["w2"], *params["bn2"], eps=eps)   # (3,3,P,P)
    w3f, t3 = _fold_bn(params["w3"], *params["bn3"], eps=eps)   # (P, Cout)
    # Tap layout: row index = (kh*3 + kw)*P + cin (matches in-kernel slicing).
    w2m = w2f.reshape(9 * planes, planes)

    # MXU operands in bf16 (full-rate MXU); BN shifts stay f32 for epilogues.
    w1f = w1f.astype(mxu_dtype)
    w2m = w2m.astype(mxu_dtype)
    w3f = w3f.astype(mxu_dtype)

    HW = H * W
    x_slab = x_nhwc.reshape(N, HW, cin)          # lane-dense slab, free reshape

    # Explicit VMEM budget: 2x-buffered I/O tiles + single-buffered weights +
    # pad scratch + live f32 intermediates + headroom.
    mxu_b = jnp.dtype(mxu_dtype).itemsize
    x_b = jnp.dtype(x_nhwc.dtype).itemsize
    o_b = jnp.dtype(out_dtype).itemsize
    budget = (2 * HW * (cin * x_b + cout * o_b)
              + (cin * planes + 9 * planes * planes + planes * cout) * mxu_b
              + (2 * planes + cout) * 4
              + (H + 2) * (W + 2) * planes * mxu_b
              + 2 * HW * planes * 4
              + (8 << 20))
    vmem_limit = int(min(64 << 20, max(32 << 20, budget)))

    grid_spec = pltpu.PrefetchScalarGridSpec(
        num_scalar_prefetch=0,
        grid=(N,),
        in_specs=[
            pl.BlockSpec((1, HW, cin), lambda n: (n, 0, 0)),
            _const_spec((cin, planes)),
            _const_spec((1, planes)),
            _const_spec((9 * planes, planes)),
            _const_spec((1, planes)),
            _const_spec((planes, cout)),
            _const_spec((1, cout)),
        ],
        out_specs=pl.BlockSpec((1, HW, cout), lambda n: (n, 0, 0)),
        scratch_shapes=[pltpu.VMEM((H + 2, W + 2, planes), mxu_dtype)],
    )

    out = pl.pallas_call(
        functools.partial(_bottleneck_kernel, H=H, W=W, mxu_dtype=mxu_dtype),
        out_shape=jax.ShapeDtypeStruct((N, HW, cout), out_dtype),
        grid_spec=grid_spec,
        compiler_params=pltpu.CompilerParams(
            dimension_semantics=("parallel",),
            vmem_limit_bytes=vmem_limit),
    )(x_slab, w1f, t1.reshape(1, planes), w2m, t2.reshape(1, planes),
      w3f, t3.reshape(1, cout))
    return out.reshape(N, H, W, cout)


@functools.partial(jax.jit, static_argnames=("mxu_dtype",))
def bottleneck_forward(x_nchw, params, *, mxu_dtype=jnp.bfloat16):
    """Forward pass matching Bottleneck.forward; NCHW in / NCHW out."""
    x = jnp.transpose(x_nchw, (0, 2, 3, 1))        # NCHW -> NHWC (once)
    y = bottleneck_forward_nhwc(x, params, mxu_dtype=mxu_dtype)
    return jnp.transpose(y, (0, 3, 1, 2))          # NHWC -> NCHW (once)


# ---------------------------------------------------------------------------
# Parameters & pure-JAX reference
# ---------------------------------------------------------------------------
def init_bottleneck_params(key, inplanes, planes, expansion=4):
    """Deterministic init matching the PyTorch module's shapes (bias=False)."""
    ks = jax.random.split(key, 6)
    cout = planes * expansion

    w1 = 0.1 * jax.random.normal(ks[0], (inplanes, planes), jnp.float32)
    w2 = 0.1 * jax.random.normal(ks[1], (3, 3, planes, planes), jnp.float32)
    w3 = 0.1 * jax.random.normal(ks[2], (planes, cout), jnp.float32)

    def bn_params(k, c):
        kg, kb, km, kv = jax.random.split(k, 4)
        gamma = 1.0 + 0.1 * jax.random.normal(kg, (c,), jnp.float32)
        beta = 0.1 * jax.random.normal(kb, (c,), jnp.float32)
        mean = 0.1 * jax.random.normal(km, (c,), jnp.float32)
        var = jax.random.uniform(kv, (c,), jnp.float32, 0.5, 1.5)
        return (gamma, beta, mean, var)

    return dict(w1=w1, w2=w2, w3=w3,
                bn1=bn_params(ks[3], planes),
                bn2=bn_params(ks[4], planes),
                bn3=bn_params(ks[5], cout))


def _reference_forward(x_nchw, params, eps=1e-5):
    """Pure-JAX reference: explicit conv -> BN -> ReLU ... + residual."""
    x = jnp.transpose(x_nchw, (0, 2, 3, 1))        # NHWC

    def bn(y, p):
        gamma, beta, mean, var = p
        return (y - mean) * (gamma / jnp.sqrt(var + eps)) + beta

    y = jnp.einsum("nhwc,cp->nhwp", x, params["w1"])
    y = jnp.maximum(bn(y, params["bn1"]), 0.0)

    dn = lax.conv_dimension_numbers(y.shape, params["w2"].shape,
                                    ("NHWC", "HWIO", "NHWC"))
    y = lax.conv_general_dilated(y, params["w2"], (1, 1), "SAME",
                                 dimension_numbers=dn)
    y = jnp.maximum(bn(y, params["bn2"]), 0.0)

    y = jnp.einsum("nhwp,pq->nhwq", y, params["w3"])
    y = bn(y, params["bn3"])
    y = jnp.maximum(y + x, 0.0)                    # identity residual + ReLU
    return jnp.transpose(y, (0, 3, 1, 2))


if __name__ == "__main__":
    key = jax.random.PRNGKey(0)
    k_in, k_par = jax.random.split(key)

    # Bottleneck(inplanes=32, planes=8): identity residual needs
    # inplanes == planes * expansion.  N=2, H=W=16.
    inplanes, planes = 32, 8
    x = jax.random.normal(k_in, (2, inplanes, 16, 16), jnp.float32)
    params = init_bottleneck_params(k_par, inplanes, planes)

    ref = _reference_forward(x, params)

    # f32 MXU path: bit-tight check against the pure-JAX reference.
    out_f32 = jax.block_until_ready(
        bottleneck_forward(x, params, mxu_dtype=jnp.float32))
    assert out_f32.shape == (2, planes * 4, 16, 16), out_f32.shape
    err_f32 = float(jnp.max(jnp.abs(out_f32 - ref)))
    assert jnp.allclose(out_f32, ref, rtol=1e-4, atol=1e-4), err_f32

    # Default bf16 MXU path: full-rate MXU, f32 accumulation/epilogues.
    out_bf16 = jax.block_until_ready(bottleneck_forward(x, params))
    err_bf16 = float(jnp.max(jnp.abs(out_bf16 - ref)))
    assert jnp.allclose(out_bf16, ref, rtol=3e-2, atol=3e-2), err_bf16

    print("KERNEL_OK")
</pallas_src>

<mosaic_0001>
module attributes {stable_mosaic.version = 11 : i64} {
  func.func @_bottleneck_kernel(%arg0: i32, %arg1: memref<1x256x32xf32, #tpu.memory_space<vmem>>, %arg2: memref<32x8xf32, #tpu.memory_space<vmem>>, %arg3: memref<1x8xf32, #tpu.memory_space<vmem>>, %arg4: memref<72x8xf32, #tpu.memory_space<vmem>>, %arg5: memref<1x8xf32, #tpu.memory_space<vmem>>, %arg6: memref<8x32xf32, #tpu.memory_space<vmem>>, %arg7: memref<1x32xf32, #tpu.memory_space<vmem>>, %arg8: memref<1x256x32xf32, #tpu.memory_space<vmem>>, %arg9: memref<18x18x8xf32, #tpu.memory_space<vmem>>) attributes {dimension_semantics = [#tpu.dimension_semantics<parallel>], iteration_bounds = array<i64: 2>, scalar_prefetch = 0 : i64, scratch_operands = 1 : i64, tpu.core_type = #tpu.core_type<tc>, window_params = [{transform_indices = @transform_0, window_bounds = array<i64: 1, 256, 32>}, {pipeline_mode = #tpu.pipeline_mode<synchronous>, transform_indices = @transform_1, window_bounds = array<i64: 32, 8>}, {pipeline_mode = #tpu.pipeline_mode<synchronous>, transform_indices = @transform_2, window_bounds = array<i64: 1, 8>}, {pipeline_mode = #tpu.pipeline_mode<synchronous>, transform_indices = @transform_3, window_bounds = array<i64: 72, 8>}, {pipeline_mode = #tpu.pipeline_mode<synchronous>, transform_indices = @transform_4, window_bounds = array<i64: 1, 8>}, {pipeline_mode = #tpu.pipeline_mode<synchronous>, transform_indices = @transform_5, window_bounds = array<i64: 8, 32>}, {pipeline_mode = #tpu.pipeline_mode<synchronous>, transform_indices = @transform_6, window_bounds = array<i64: 1, 32>}, {transform_indices = @transform_7, window_bounds = array<i64: 1, 256, 32>}]} {
    %c0 = arith.constant 0 : index
    %c0_0 = arith.constant 0 : index
    %c0_1 = arith.constant 0 : index
    %0 = vector.load %arg1[%c0, %c0_0, %c0_1] : memref<1x256x32xf32, #tpu.memory_space<vmem>>, vector<1x256x32xf32>
    %1 = vector.shape_cast %0 : vector<1x256x32xf32> to vector<256x32xf32>
    %c0_2 = arith.constant 0 : index
    %c0_3 = arith.constant 0 : index
    %2 = vector.load %arg2[%c0_2, %c0_3] : memref<32x8xf32, #tpu.memory_space<vmem>>, vector<32x8xf32>
    %cst = arith.constant dense<0.000000e+00> : vector<256x8xf32>
    %3 = tpu.matmul %1, %2, %cst {dimension_numbers = #tpu.dot_dimension_numbers<[1], [0], [0], [1], [0, 0, 1, 1], [], []>} : vector<256x32xf32>, vector<32x8xf32>, vector<256x8xf32> -> vector<256x8xf32>
    %c0_4 = arith.constant 0 : index
    %c0_5 = arith.constant 0 : index
    %4 = vector.load %arg3[%c0_4, %c0_5] : memref<1x8xf32, #tpu.memory_space<vmem>>, vector<1x8xf32>
    %5 = vector.shape_cast %4 : vector<1x8xf32> to vector<8xf32>
    %6 = vector.shape_cast %5 : vector<8xf32> to vector<1x8xf32>
    %7 = vector.broadcast %6 : vector<1x8xf32> to vector<256x8xf32>
    %8 = arith.addf %3, %7 : vector<256x8xf32>
    %cst_6 = arith.constant 0.000000e+00 : f32
    %9 = vector.broadcast %cst_6 : f32 to vector<256x8xf32>
    %10 = arith.maximumf %8, %9 : vector<256x8xf32>
    %11 = vector.shape_cast %10 : vector<256x8xf32> to vector<16x16x8xf32>
    %c1 = arith.constant 1 : index
    %c1_7 = arith.constant 1 : index
    %c0_8 = arith.constant 0 : index
    %12 = vector.load %arg9[%c1, %c1_7, %c0_8] : memref<18x18x8xf32, #tpu.memory_space<vmem>>, vector<16x16x8xf32>
    tpu.vector_store %arg9[%c1, %c1_7, %c0_8], %11 {strides = array<i32>} : memref<18x18x8xf32, #tpu.memory_space<vmem>>, vector<16x16x8xf32>,
    %cst_9 = arith.constant 0.000000e+00 : f32
    %13 = vector.broadcast %cst_9 : f32 to vector<1x18x8xf32>
    %c0_10 = arith.constant 0 : index
    %c0_11 = arith.constant 0 : index
    %c0_12 = arith.constant 0 : index
    %14 = vector.load %arg9[%c0_10, %c0_11, %c0_12] : memref<18x18x8xf32, #tpu.memory_space<vmem>>, vector<1x18x8xf32>
    tpu.vector_store %arg9[%c0_10, %c0_11, %c0_12], %13 {strides = array<i32>} : memref<18x18x8xf32, #tpu.memory_space<vmem>>, vector<1x18x8xf32>,
    %c17 = arith.constant 17 : index
    %c0_13 = arith.constant 0 : index
    %c0_14 = arith.constant 0 : index
    %15 = vector.load %arg9[%c17, %c0_13, %c0_14] : memref<18x18x8xf32, #tpu.memory_space<vmem>>, vector<1x18x8xf32>
    tpu.vector_store %arg9[%c17, %c0_13, %c0_14], %13 {strides = array<i32>} : memref<18x18x8xf32, #tpu.memory_space<vmem>>, vector<1x18x8xf32>,
    %cst_15 = arith.constant 0.000000e+00 : f32
    %16 = vector.broadcast %cst_15 : f32 to vector<18x1x8xf32>
    %c0_16 = arith.constant 0 : index
    %c0_17 = arith.constant 0 : index
    %c0_18 = arith.constant 0 : index
    %17 = vector.load %arg9[%c0_16, %c0_17, %c0_18] : memref<18x18x8xf32, #tpu.memory_space<vmem>>, vector<18x1x8xf32>
    tpu.vector_store %arg9[%c0_16, %c0_17, %c0_18], %16 {strides = array<i32>} : memref<18x18x8xf32, #tpu.memory_space<vmem>>, vector<18x1x8xf32>,
    %c0_19 = arith.constant 0 : index
    %c17_20 = arith.constant 17 : index
    %c0_21 = arith.constant 0 : index
    %18 = vector.load %arg9[%c0_19, %c17_20, %c0_21] : memref<18x18x8xf32, #tpu.memory_space<vmem>>, vector<18x1x8xf32>
    tpu.vector_store %arg9[%c0_19, %c17_20, %c0_21], %16 {strides = array<i32>} : memref<18x18x8xf32, #tpu.memory_space<vmem>>, vector<18x1x8xf32>,
    %c0_22 = arith.constant 0 : index
    %c0_23 = arith.constant 0 : index
    %c0_24 = arith.constant 0 : index
    %19 = vector.load %arg9[%c0_22, %c0_23, %c0_24] : memref<18x18x8xf32, #tpu.memory_space<vmem>>, vector<16x16x8xf32>
    %20 = vector.shape_cast %19 : vector<16x16x8xf32> to vector<256x8xf32>
    %c0_25 = arith.constant 0 : index
    %c0_26 = arith.constant 0 : index
    %21 = vector.load %arg4[%c0_25, %c0_26] : memref<72x8xf32, #tpu.memory_space<vmem>>, vector<8x8xf32>
    %cst_27 = arith.constant dense<0.000000e+00> : vector<256x8xf32>
    %22 = tpu.matmul %20, %21, %cst_27 {dimension_numbers = #tpu.dot_dimension_numbers<[1], [0], [0], [1], [0, 0, 1, 1], [], []>} : vector<256x8xf32>, vector<8x8xf32>, vector<256x8xf32> -> vector<256x8xf32>
    %c0_28 = arith.constant 0 : index
    %c1_29 = arith.constant 1 : index
    %c0_30 = arith.constant 0 : index
    %23 = vector.load %arg9[%c0_28, %c1_29, %c0_30] : memref<18x18x8xf32, #tpu.memory_space<vmem>>, vector<16x16x8xf32>
    %24 = vector.shape_cast %23 : vector<16x16x8xf32> to vector<256x8xf32>
    %c8 = arith.constant 8 : index
    %c0_31 = arith.constant 0 : index
    %25 = vector.load %arg4[%c8, %c0_31] : memref<72x8xf32, #tpu.memory_space<vmem>>, vector<8x8xf32>
    %cst_32 = arith.constant dense<0.000000e+00> : vector<256x8xf32>
    %26 = tpu.matmul %24, %25, %cst_32 {dimension_numbers = #tpu.dot_dimension_numbers<[1], [0], [0], [1], [0, 0, 1, 1], [], []>} : vector<256x8xf32>, vector<8x8xf32>, vector<256x8xf32> -> vector<256x8xf32>
    %27 = arith.addf %22, %26 : vector<256x8xf32>
    %c0_33 = arith.constant 0 : index
    %c2 = arith.constant 2 : index
    %c0_34 = arith.constant 0 : index
    %28 = vector.load %arg9[%c0_33, %c2, %c0_34] : memref<18x18x8xf32, #tpu.memory_space<vmem>>, vector<16x16x8xf32>
    %29 = vector.shape_cast %28 : vector<16x16x8xf32> to vector<256x8xf32>
    %c16 = arith.constant 16 : index
    %c0_35 = arith.constant 0 : index
    %30 = vector.load %arg4[%c16, %c0_35] : memref<72x8xf32, #tpu.memory_space<vmem>>, vector<8x8xf32>
    %cst_36 = arith.constant dense<0.000000e+00> : vector<256x8xf32>
    %31 = tpu.matmul %29, %30, %cst_36 {dimension_numbers = #tpu.dot_dimension_numbers<[1], [0], [0], [1], [0, 0, 1, 1], [], []>} : vector<256x8xf32>, vector<8x8xf32>, vector<256x8xf32> -> vector<256x8xf32>
    %32 = arith.addf %27, %31 : vector<256x8xf32>
    %c1_37 = arith.constant 1 : index
    %c0_38 = arith.constant 0 : index
    %c0_39 = arith.constant 0 : index
    %33 = vector.load %arg9[%c1_37, %c0_38, %c0_39] : memref<18x18x8xf32, #tpu.memory_space<vmem>>, vector<16x16x8xf32>
    %34 = vector.shape_cast %33 : vector<16x16x8xf32> to vector<256x8xf32>
    %c24 = arith.constant 24 : index
    %c0_40 = arith.constant 0 : index
    %35 = vector.load %arg4[%c24, %c0_40] : memref<72x8xf32, #tpu.memory_space<vmem>>, vector<8x8xf32>
    %cst_41 = arith.constant dense<0.000000e+00> : vector<256x8xf32>
    %36 = tpu.matmul %34, %35, %cst_41 {dimension_numbers = #tpu.dot_dimension_numbers<[1], [0], [0], [1], [0, 0, 1, 1], [], []>} : vector<256x8xf32>, vector<8x8xf32>, vector<256x8xf32> -> vector<256x8xf32>
    %37 = arith.addf %32, %36 : vector<256x8xf32>
    %c1_42 = arith.constant 1 : index
    %c1_43 = arith.constant 1 : index
    %c0_44 = arith.constant 0 : index
    %38 = vector.load %arg9[%c1_42, %c1_43, %c0_44] : memref<18x18x8xf32, #tpu.memory_space<vmem>>, vector<16x16x8xf32>
    %39 = vector.shape_cast %38 : vector<16x16x8xf32> to vector<256x8xf32>
    %c32 = arith.constant 32 : index
    %c0_45 = arith.constant 0 : index
    %40 = vector.load %arg4[%c32, %c0_45] : memref<72x8xf32, #tpu.memory_space<vmem>>, vector<8x8xf32>
    %cst_46 = arith.constant dense<0.000000e+00> : vector<256x8xf32>
    %41 = tpu.matmul %39, %40, %cst_46 {dimension_numbers = #tpu.dot_dimension_numbers<[1], [0], [0], [1], [0, 0, 1, 1], [], []>} : vector<256x8xf32>, vector<8x8xf32>, vector<256x8xf32> -> vector<256x8xf32>
    %42 = arith.addf %37, %41 : vector<256x8xf32>
    %c1_47 = arith.constant 1 : index
    %c2_48 = arith.constant 2 : index
    %c0_49 = arith.constant 0 : index
    %43 = vector.load %arg9[%c1_47, %c2_48, %c0_49] : memref<18x18x8xf32, #tpu.memory_space<vmem>>, vector<16x16x8xf32>
    %44 = vector.shape_cast %43 : vector<16x16x8xf32> to vector<256x8xf32>
    %c40 = arith.constant 40 : index
    %c0_50 = arith.constant 0 : index
    %45 = vector.load %arg4[%c40, %c0_50] : memref<72x8xf32, #tpu.memory_space<vmem>>, vector<8x8xf32>
    %cst_51 = arith.constant dense<0.000000e+00> : vector<256x8xf32>
    %46 = tpu.matmul %44, %45, %cst_51 {dimension_numbers = #tpu.dot_dimension_numbers<[1], [0], [0], [1], [0, 0, 1, 1], [], []>} : vector<256x8xf32>, vector<8x8xf32>, vector<256x8xf32> -> vector<256x8xf32>
    %47 = arith.addf %42, %46 : vector<256x8xf32>
    %c2_52 = arith.constant 2 : index
    %c0_53 = arith.constant 0 : index
    %c0_54 = arith.constant 0 : index
    %48 = vector.load %arg9[%c2_52, %c0_53, %c0_54] : memref<18x18x8xf32, #tpu.memory_space<vmem>>, vector<16x16x8xf32>
    %49 = vector.shape_cast %48 : vector<16x16x8xf32> to vector<256x8xf32>
    %c48 = arith.constant 48 : index
    %c0_55 = arith.constant 0 : index
    %50 = vector.load %arg4[%c48, %c0_55] : memref<72x8xf32, #tpu.memory_space<vmem>>, vector<8x8xf32>
    %cst_56 = arith.constant dense<0.000000e+00> : vector<256x8xf32>
    %51 = tpu.matmul %49, %50, %cst_56 {dimension_numbers = #tpu.dot_dimension_numbers<[1], [0], [0], [1], [0, 0, 1, 1], [], []>} : vector<256x8xf32>, vector<8x8xf32>, vector<256x8xf32> -> vector<256x8xf32>
    %52 = arith.addf %47, %51 : vector<256x8xf32>
    %c2_57 = arith.constant 2 : index
    %c1_58 = arith.constant 1 : index
    %c0_59 = arith.constant 0 : index
    %53 = vector.load %arg9[%c2_57, %c1_58, %c0_59] : memref<18x18x8xf32, #tpu.memory_space<vmem>>, vector<16x16x8xf32>
    %54 = vector.shape_cast %53 : vector<16x16x8xf32> to vector<256x8xf32>
    %c56 = arith.constant 56 : index
    %c0_60 = arith.constant 0 : index
    %55 = vector.load %arg4[%c56, %c0_60] : memref<72x8xf32, #tpu.memory_space<vmem>>, vector<8x8xf32>
    %cst_61 = arith.constant dense<0.000000e+00> : vector<256x8xf32>
    %56 = tpu.matmul %54, %55, %cst_61 {dimension_numbers = #tpu.dot_dimension_numbers<[1], [0], [0], [1], [0, 0, 1, 1], [], []>} : vector<256x8xf32>, vector<8x8xf32>, vector<256x8xf32> -> vector<256x8xf32>
    %57 = arith.addf %52, %56 : vector<256x8xf32>
    %c2_62 = arith.constant 2 : index
    %c2_63 = arith.constant 2 : index
    %c0_64 = arith.constant 0 : index
    %58 = vector.load %arg9[%c2_62, %c2_63, %c0_64] : memref<18x18x8xf32, #tpu.memory_space<vmem>>, vector<16x16x8xf32>
    %59 = vector.shape_cast %58 : vector<16x16x8xf32> to vector<256x8xf32>
    %c64 = arith.constant 64 : index
    %c0_65 = arith.constant 0 : index
    %60 = vector.load %arg4[%c64, %c0_65] : memref<72x8xf32, #tpu.memory_space<vmem>>, vector<8x8xf32>
    %cst_66 = arith.constant dense<0.000000e+00> : vector<256x8xf32>
    %61 = tpu.matmul %59, %60, %cst_66 {dimension_numbers = #tpu.dot_dimension_numbers<[1], [0], [0], [1], [0, 0, 1, 1], [], []>} : vector<256x8xf32>, vector<8x8xf32>, vector<256x8xf32> -> vector<256x8xf32>
    %62 = arith.addf %57, %61 : vector<256x8xf32>
    %c0_67 = arith.constant 0 : index
    %c0_68 = arith.constant 0 : index
    %63 = vector.load %arg5[%c0_67, %c0_68] : memref<1x8xf32, #tpu.memory_space<vmem>>, vector<1x8xf32>
    %64 = vector.shape_cast %63 : vector<1x8xf32> to vector<8xf32>
    %65 = vector.shape_cast %64 : vector<8xf32> to vector<1x8xf32>
    %66 = vector.broadcast %65 : vector<1x8xf32> to vector<256x8xf32>
    %67 = arith.addf %62, %66 : vector<256x8xf32>
    %cst_69 = arith.constant 0.000000e+00 : f32
    %68 = vector.broadcast %cst_69 : f32 to vector<256x8xf32>
    %69 = arith.maximumf %67, %68 : vector<256x8xf32>
    %c0_70 = arith.constant 0 : index
    %c0_71 = arith.constant 0 : index
    %70 = vector.load %arg6[%c0_70, %c0_71] : memref<8x32xf32, #tpu.memory_space<vmem>>, vector<8x32xf32>
    %cst_72 = arith.constant dense<0.000000e+00> : vector<256x32xf32>
    %71 = tpu.matmul %69, %70, %cst_72 {dimension_numbers = #tpu.dot_dimension_numbers<[1], [0], [0], [1], [0, 0, 1, 1], [], []>} : vector<256x8xf32>, vector<8x32xf32>, vector<256x32xf32> -> vector<256x32xf32>
    %c0_73 = arith.constant 0 : index
    %c0_74 = arith.constant 0 : index
    %72 = vector.load %arg7[%c0_73, %c0_74] : memref<1x32xf32, #tpu.memory_space<vmem>>, vector<1x32xf32>
    %73 = vector.shape_cast %72 : vector<1x32xf32> to vector<32xf32>
    %74 = vector.shape_cast %73 : vector<32xf32> to vector<1x32xf32>
    %75 = vector.broadcast %74 : vector<1x32xf32> to vector<256x32xf32>
    %76 = arith.addf %71, %75 : vector<256x32xf32>
    %c0_75 = arith.constant 0 : index
    %c0_76 = arith.constant 0 : index
    %c0_77 = arith.constant 0 : index
    %77 = vector.load %arg1[%c0_75, %c0_76, %c0_77] : memref<1x256x32xf32, #tpu.memory_space<vmem>>, vector<1x256x32xf32>
    %78 = vector.shape_cast %77 : vector<1x256x32xf32> to vector<256x32xf32>
    %79 = arith.addf %76, %78 : vector<256x32xf32>
    %cst_78 = arith.constant 0.000000e+00 : f32
    %80 = vector.broadcast %cst_78 : f32 to vector<256x32xf32>
    %81 = arith.maximumf %79, %80 : vector<256x32xf32>
    %c0_79 = arith.constant 0 : index
    %c0_80 = arith.constant 0 : index
    %c0_81 = arith.constant 0 : index
    %82 = vector.load %arg8[%c0_79, %c0_80, %c0_81] : memref<1x256x32xf32, #tpu.memory_space<vmem>>, vector<1x256x32xf32>
    %83 = vector.shape_cast %82 : vector<1x256x32xf32> to vector<256x32xf32>
    %84 = vector.shape_cast %81 : vector<256x32xf32> to vector<1x256x32xf32>
    tpu.vector_store %arg8[%c0_79, %c0_80, %c0_81], %84 {strides = array<i32>} : memref<1x256x32xf32, #tpu.memory_space<vmem>>, vector<1x256x32xf32>,
    return
  }
  func.func @transform_0(%arg0: i32) -> (i32, i32, i32) {
    %c0_i32 = arith.constant 0 : i32
    %c0_i32_0 = arith.constant 0 : i32
    %c0_i32_1 = arith.constant 0 : i32
    return %arg0, %c0_i32, %c0_i32_0 : i32, i32, i32
  }
  func.func @transform_1(%arg0: i32) -> (i32, i32) {
    %c0_i32 = arith.constant 0 : i32
    %c0_i32_0 = arith.constant 0 : i32
    %c0_i32_1 = arith.constant 0 : i32
    return %c0_i32, %c0_i32_0 : i32, i32
  }
  func.func @transform_2(%arg0: i32) -> (i32, i32) {
    %c0_i32 = arith.constant 0 : i32
    %c0_i32_0 = arith.constant 0 : i32
    %c0_i32_1 = arith.constant 0 : i32
    return %c0_i32, %c0_i32_0 : i32, i32
  }
  func.func @transform_3(%arg0: i32) -> (i32, i32) {
    %c0_i32 = arith.constant 0 : i32
    %c0_i32_0 = arith.constant 0 : i32
    %c0_i32_1 = arith.constant 0 : i32
    return %c0_i32, %c0_i32_0 : i32, i32
  }
  func.func @transform_4(%arg0: i32) -> (i32, i32) {
    %c0_i32 = arith.constant 0 : i32
    %c0_i32_0 = arith.constant 0 : i32
    %c0_i32_1 = arith.constant 0 : i32
    return %c0_i32, %c0_i32_0 : i32, i32
  }
  func.func @transform_5(%arg0: i32) -> (i32, i32) {
    %c0_i32 = arith.constant 0 : i32
    %c0_i32_0 = arith.constant 0 : i32
    %c0_i32_1 = arith.constant 0 : i32
    return %c0_i32, %c0_i32_0 : i32, i32
  }
  func.func @transform_6(%arg0: i32) -> (i32, i32) {
    %c0_i32 = arith.constant 0 : i32
    %c0_i32_0 = arith.constant 0 : i32
    %c0_i32_1 = arith.constant 0 : i32
    return %c0_i32, %c0_i32_0 : i32, i32
  }
  func.func @transform_7(%arg0: i32) -> (i32, i32, i32) {
    %c0_i32 = arith.constant 0 : i32
    %c0_i32_0 = arith.constant 0 : i32
    %c0_i32_1 = arith.constant 0 : i32
    return %arg0, %c0_i32, %c0_i32_0 : i32, i32, i32
  }
}

</mosaic_0001>

<llo_original>
// kernel: bottleneck_forward.1
$region0: #{bottleneck_forward.1}
  #allocation0 [shape = 'u32[]', space=smem, size = 0x4, offset = 0x4, fixed_abs, tag = 'smem constant byte address 0x4 - core index']
  #allocation1 [shape = 'u32[72,128]{1,0:T(1,128)}', space=vmem, size = 0x9000, scoped, tag = 'internal scratch']
  #allocation2 [shape = 'f32[18,18,8]{2,1,0:T(8,128)}', space=vmem, size = 0x36000, scoped, tag = 'scratch operand']
  %s0 = inlined_call_operand.hbm [shape: f32[2,256,32], index: 0, kind: input, shape index: {}]
  %s1 = inlined_call_operand.vmem [shape: f32[32,8], index: 1, kind: input, shape index: {}]
  %s2 = inlined_call_operand.vmem [shape: f32[1,8], index: 2, kind: input, shape index: {}]
  %s3 = inlined_call_operand.vmem [shape: f32[72,8], index: 3, kind: input, shape index: {}]
  %s4 = inlined_call_operand.vmem [shape: f32[1,8], index: 4, kind: input, shape index: {}]
  %s5 = inlined_call_operand.vmem [shape: f32[8,32], index: 5, kind: input, shape index: {}]
  %s6 = inlined_call_operand.vmem [shape: f32[1,32], index: 6, kind: input, shape index: {}]
  %s7 = inlined_call_operand.hbm [shape: f32[2,256,32], index: 7, kind: output, shape index: {}]
  %s8 = sld [smem:[#allocation0]]
  $region65: #{bottleneck_forward.1} parent=0
    _
  %s10 = ssub.s32 1, %s8
  %s11 = scalar_select 0, %s10, %s8
  $region1: #{bottleneck_forward.1} parent=0
    #allocation3 [shape = 'u8[262144]{0}', space=vmem, size = 0x40000, scoped, tag = 'input window, operand 0']
    #allocation4 [shape = 's32[2]{0}', space=sflag, size = 0x8, scoped, tag = 'scoped memory for bottleneck_forward.1']
    #allocation5 [shape = 's32[2]{0}', space=sflag, size = 0x8, scoped, tag = 'scoped memory for bottleneck_forward.1']
    #allocation6 [shape = 'u8[262144]{0}', space=vmem, size = 0x40000, scoped, tag = 'output window, operand 0']
    %12 = vsyncpa [#allocation4], 0
    %s13 = scalar_lea.sflag [#allocation4], 1
    %14 = vsyncpa %s13, 0
    %15 = vsyncpa [#allocation5], 0
    %s16 = scalar_lea.sflag [#allocation5], 1
    %17 = vsyncpa %s16, 0
    loop: start=0, step=1, limit=4
    $region2: #{bottleneck_forward.1} parent=1 // loop_pre_header
      _
    $region3: #{bottleneck_forward.1} parent=1 // loop_header
      %s19 = sphi 0, %s23
      %p20 = scmp.ge.s32.totalorder %s19, 4
      %s29 = sphi 0, %s31
      %s32 = sphi 0, %s29
      %s33 = sphi 0, %s32
      %s49 = sphi 0, %s33
      %s53 = sphi 0, %s53
      %s55 = sphi 0, %s53
      %s56 = sphi 0, %s55
      %s70 = sphi 0, %s56
      %s74 = sphi 0, %s74
      %s76 = sphi 0, %s74
      %s77 = sphi 0, %s76
      %s91 = sphi 0, %s77
      %s95 = sphi 0, %s95
      %s97 = sphi 0, %s95
      %s98 = sphi 0, %s97
      %s112 = sphi 0, %s98
      %s116 = sphi 0, %s116
      %s118 = sphi 0, %s116
      %s119 = sphi 0, %s118
      %s133 = sphi 0, %s119
      %s137 = sphi 0, %s137
      %s139 = sphi 0, %s137
      %s140 = sphi 0, %s139
      %s154 = sphi 0, %s140
      %s158 = sphi 0, %s158
      %s160 = sphi 0, %s158
      %s161 = sphi 0, %s160
      %s175 = sphi 0, %s161
      %s181 = sphi 0, %s183
      %s184 = sphi 0, %s181
      %s185 = sphi 0, %s184
      %s201 = sphi 0, %s185
    $region4: #{bottleneck_forward.1} parent=1 // loop_header_branch
      %22 = sbr.rel (%p20) target = $region8
    $region5: #{bottleneck_forward.1} parent=1 // loop_body
      %s24 = ssub.s32 %s19, 1
      %s25 = ssub.s32 %s19, 2
      %s26 = sadd.s32 %s19, 1
      %s27 = ssub.s32 %s19, %s26
      %p28 = scmp.eq.s32.totalorder %s27, 0
      %s30 = sadd.s32 %s29, 1
      %s31 = scalar_select %p28, %s29, %s30
      %p34 = pneg %p28
      %p35 = scmp.eq.s32.totalorder %s19, 1
      %p36 = por %p34, %p35
      %p37 = scmp.ne.s32.totalorder %s29, %s32
      %p38 = scmp.eq.s32.totalorder %s19, 0
      %p39 = por %p37, %p38
      %p40 = scmp.ne.s32.totalorder %s29, %s32
      %p41 = scmp.eq.s32.totalorder %s24, 1
      %p42 = por %p40, %p41
      %p43 = scmp.ne.s32.totalorder %s32, %s33
      %p44 = scmp.eq.s32.totalorder %s24, 0
      %p45 = por %p43, %p44
      %p46 = scmp.ne.s32.totalorder %s32, %s33
      %p47 = scmp.eq.s32.totalorder %s25, 1
      %p48 = por %p46, %p47
      %p50 = scmp.ne.s32.totalorder %s33, %s49
      %p51 = scmp.eq.s32.totalorder %s25, 0
      %p52 = por %p50, %p51
      %s54 = sadd.s32 %s53, 1
      %p57 = scmp.eq.s32.totalorder %s19, 1
      %p58 = scmp.ne.s32.totalorder %s53, %s55
      %p59 = scmp.eq.s32.totalorder %s19, 0
      %p60 = por %p58, %p59
      %p61 = scmp.ne.s32.totalorder %s53, %s55
      %p62 = scmp.eq.s32.totalorder %s24, 1
      %p63 = por %p61, %p62
      %p64 = scmp.ne.s32.totalorder %s55, %s56
      %p65 = scmp.eq.s32.totalorder %s24, 0
      %p66 = por %p64, %p65
      %p67 = scmp.ne.s32.totalorder %s55, %s56
      %p68 = scmp.eq.s32.totalorder %s25, 1
      %p69 = por %p67, %p68
      %p71 = scmp.ne.s32.totalorder %s56, %s70
      %p72 = scmp.eq.s32.totalorder %s25, 0
      %p73 = por %p71, %p72
      %s75 = sadd.s32 %s74, 1
      %p78 = scmp.eq.s32.totalorder %s19, 1
      %p79 = scmp.ne.s32.totalorder %s74, %s76
      %p80 = scmp.eq.s32.totalorder %s19, 0
      %p81 = por %p79, %p80
      %p82 = scmp.ne.s32.totalorder %s74, %s76
      %p83 = scmp.eq.s32.totalorder %s24, 1
      %p84 = por %p82, %p83
      %p85 = scmp.ne.s32.totalorder %s76, %s77
      %p86 = scmp.eq.s32.totalorder %s24, 0
      %p87 = por %p85, %p86
      %p88 = scmp.ne.s32.totalorder %s76, %s77
      %p89 = scmp.eq.s32.totalorder %s25, 1
      %p90 = por %p88, %p89
      %p92 = scmp.ne.s32.totalorder %s77, %s91
      %p93 = scmp.eq.s32.totalorder %s25, 0
      %p94 = por %p92, %p93
      %s96 = sadd.s32 %s95, 1
      %p99 = scmp.eq.s32.totalorder %s19, 1
      %p100 = scmp.ne.s32.totalorder %s95, %s97
      %p101 = scmp.eq.s32.totalorder %s19, 0
      %p102 = por %p100, %p101
      %p103 = scmp.ne.s32.totalorder %s95, %s97
      %p104 = scmp.eq.s32.totalorder %s24, 1
      %p105 = por %p103, %p104
      %p106 = scmp.ne.s32.totalorder %s97, %s98
      %p107 = scmp.eq.s32.totalorder %s24, 0
      %p108 = por %p106, %p107
      %p109 = scmp.ne.s32.totalorder %s97, %s98
      %p110 = scmp.eq.s32.totalorder %s25, 1
      %p111 = por %p109, %p110
      %p113 = scmp.ne.s32.totalorder %s98, %s112
      %p114 = scmp.eq.s32.totalorder %s25, 0
      %p115 = por %p113, %p114
      %s117 = sadd.s32 %s116, 1
      %p120 = scmp.eq.s32.totalorder %s19, 1
      %p121 = scmp.ne.s32.totalorder %s116, %s118
      %p122 = scmp.eq.s32.totalorder %s19, 0
      %p123 = por %p121, %p122
      %p124 = scmp.ne.s32.totalorder %s116, %s118
      %p125 = scmp.eq.s32.totalorder %s24, 1
      %p126 = por %p124, %p125
      %p127 = scmp.ne.s32.totalorder %s118, %s119
      %p128 = scmp.eq.s32.totalorder %s24, 0
      %p129 = por %p127, %p128
      %p130 = scmp.ne.s32.totalorder %s118, %s119
      %p131 = scmp.eq.s32.totalorder %s25, 1
      %p132 = por %p130, %p131
      %p134 = scmp.ne.s32.totalorder %s119, %s133
      %p135 = scmp.eq.s32.totalorder %s25, 0
      %p136 = por %p134, %p135
      %s138 = sadd.s32 %s137, 1
      %p141 = scmp.eq.s32.totalorder %s19, 1
      %p142 = scmp.ne.s32.totalorder %s137, %s139
      %p143 = scmp.eq.s32.totalorder %s19, 0
      %p144 = por %p142, %p143
      %p145 = scmp.ne.s32.totalorder %s137, %s139
      %p146 = scmp.eq.s32.totalorder %s24, 1
      %p147 = por %p145, %p146
      %p148 = scmp.ne.s32.totalorder %s139, %s140
      %p149 = scmp.eq.s32.totalorder %s24, 0
      %p150 = por %p148, %p149
      %p151 = scmp.ne.s32.totalorder %s139, %s140
      %p152 = scmp.eq.s32.totalorder %s25, 1
      %p153 = por %p151, %p152
      %p155 = scmp.ne.s32.totalorder %s140, %s154
      %p156 = scmp.eq.s32.totalorder %s25, 0
      %p157 = por %p155, %p156
      %s159 = sadd.s32 %s158, 1
      %p162 = scmp.eq.s32.totalorder %s19, 1
      %p163 = scmp.ne.s32.totalorder %s158, %s160
      %p164 = scmp.eq.s32.totalorder %s19, 0
      %p165 = por %p163, %p164
      %p166 = scmp.ne.s32.totalorder %s158, %s160
      %p167 = scmp.eq.s32.totalorder %s24, 1
      %p168 = por %p166, %p167
      %p169 = scmp.ne.s32.totalorder %s160, %s161
      %p170 = scmp.eq.s32.totalorder %s24, 0
      %p171 = por %p169, %p170
      %p172 = scmp.ne.s32.totalorder %s160, %s161
      %p173 = scmp.eq.s32.totalorder %s25, 1
      %p174 = por %p172, %p173
      %p176 = scmp.ne.s32.totalorder %s161, %s175
      %p177 = scmp.eq.s32.totalorder %s25, 0
      %p178 = por %p176, %p177
      %s179 = ssub.s32 %s19, %s26
      %p180 = scmp.eq.s32.totalorder %s179, 0
      %s182 = sadd.s32 %s181, 1
      %s183 = scalar_select %p180, %s181, %s182
      %p186 = pneg %p180
      %p187 = scmp.eq.s32.totalorder %s19, 1
      %p188 = por %p186, %p187
      %p189 = scmp.ne.s32.totalorder %s181, %s184
      %p190 = scmp.eq.s32.totalorder %s19, 0
      %p191 = por %p189, %p190
      %p192 = scmp.ne.s32.totalorder %s181, %s184
      %p193 = scmp.eq.s32.totalorder %s24, 1
      %p194 = por %p192, %p193
      %p195 = scmp.ne.s32.totalorder %s184, %s185
      %p196 = scmp.eq.s32.totalorder %s24, 0
      %p197 = por %p195, %p196
      %p198 = scmp.ne.s32.totalorder %s184, %s185
      %p199 = scmp.eq.s32.totalorder %s25, 1
      %p200 = por %p198, %p199
      %p202 = scmp.ne.s32.totalorder %s185, %s201
      %p203 = scmp.eq.s32.totalorder %s25, 0
      %p204 = por %p202, %p203
      %p205 = scmp.le.s32.totalorder 1, %s19
      %p206 = scmp.lt.s32.totalorder %s19, 3
      %p207 = pnand %p205, %p206
      %p208 = pneg %p207
      // Predicated region
      $region9: #{bottleneck_forward.1} parent=5 // pred_check
        _
      $region10: #{bottleneck_forward.1} parent=5 // pred_check_branch
        %210 = sbr.rel (%p207) target = $region12
      $region11: #{bottleneck_forward.1} parent=5 // pred_region
        %s211 = ssub.s32 %s19, 1
        // Predicated region
        $region13: #{bottleneck_forward.1} parent=11 // pred_check
          %p212 = pneg %p66
        $region14: #{bottleneck_forward.1} parent=11 // pred_check_branch
          %214 = sbr.rel (%p212) target = $region16
        $region15: #{bottleneck_forward.1} parent=11 // pred_region
          _
        $region16: #{bottleneck_forward.1} parent=11 // pred_fallthru
          _
        // Predicated region
        $region17: #{bottleneck_forward.1} parent=11 // pred_check
          %p215 = pneg %p87
        $region18: #{bottleneck_forward.1} parent=11 // pred_check_branch
          %217 = sbr.rel (%p215) target = $region20
        $region19: #{bottleneck_forward.1} parent=11 // pred_region
          _
        $region20: #{bottleneck_forward.1} parent=11 // pred_fallthru
          _
        // Predicated region
        $region21: #{bottleneck_forward.1} parent=11 // pred_check
          %p218 = pneg %p108
        $region22: #{bottleneck_forward.1} parent=11 // pred_check_branch
          %220 = sbr.rel (%p218) target = $region24
        $region23: #{bottleneck_forward.1} parent=11 // pred_region
          _
        $region24: #{bottleneck_forward.1} parent=11 // pred_fallthru
          _
        // Predicated region
        $region25: #{bottleneck_forward.1} parent=11 // pred_check
          %p221 = pneg %p129
        $region26: #{bottleneck_forward.1} parent=11 // pred_check_branch
          %223 = sbr.rel (%p221) target = $region28
        $region27: #{bottleneck_forward.1} parent=11 // pred_region
          _
        $region28: #{bottleneck_forward.1} parent=11 // pred_fallthru
          _
        // Predicated region
        $region29: #{bottleneck_forward.1} parent=11 // pred_check
          %p224 = pneg %p150
        $region30: #{bottleneck_forward.1} parent=11 // pred_check_branch
          %226 = sbr.rel (%p224) target = $region32
        $region31: #{bottleneck_forward.1} parent=11 // pred_region
          _
        $region32: #{bottleneck_forward.1} parent=11 // pred_fallthru
          _
        // Predicated region
        $region33: #{bottleneck_forward.1} parent=11 // pred_check
          %p227 = pneg %p171
        $region34: #{bottleneck_forward.1} parent=11 // pred_check_branch
          %229 = sbr.rel (%p227) target = $region36
        $region35: #{bottleneck_forward.1} parent=11 // pred_region
          _
        $region36: #{bottleneck_forward.1} parent=11 // pred_fallthru
          _
      $region12: #{bottleneck_forward.1} parent=5 // pred_fallthru
        _
      %p230 = scmp.lt.s32.totalorder %s19, 2
      // Predicated region
      $region37: #{bottleneck_forward.1} parent=5 // pred_check
        %p231 = pneg %p230
      $region38: #{bottleneck_forward.1} parent=5 // pred_check_branch
        %233 = sbr.rel (%p231) target = $region40
      $region39: #{bottleneck_forward.1} parent=5 // pred_region
        // Predicated region
        $region41: #{bottleneck_forward.1} parent=39 // pred_check
          %p234 = pneg %p39
        $region42: #{bottleneck_forward.1} parent=39 // pred_check_branch
          %236 = sbr.rel (%p234) target = $region44
        $region43: #{bottleneck_forward.1} parent=39 // pred_region
          %s237 = sand.u32 %s29, 1
          %s238 = scalar_lea.sflag [#allocation4], %s237
          %s239 = sand.u32 %s29, 1
          %s240 = smul.addr %s239, 256
          %s241 = scalar_lea.vmem [#allocation3], %s240
          %243 = vsyncadd %s238, 0
          %s244 = smul.addr %s19, 32
          %s245 = smul.addr %s244, 8
          %s246 = scalar_lea.hbm %s0, %s245
          %s247 = sshll.u32 %s246, 4
          %s248 = int_to_ptr.hbm [resolvable:$true] %s247
          %s249 = sshll.u32 %s241, 4
          %s250 = int_to_ptr.vmem [resolvable:$true] %s249
          %255 = dma.hbm_to_vmem [thread:$0]  %s248, 4096, %s250, %s238, 128, 128, 8
        $region44: #{bottleneck_forward.1} parent=39 // pred_fallthru
          _
      $region40: #{bottleneck_forward.1} parent=5 // pred_fallthru
        _
      %p256 = scmp.le.s32.totalorder 1, %s19
      %p257 = scmp.lt.s32.totalorder %s19, 3
      %p258 = pnand %p256, %p257
      %p259 = pneg %p258
      // Predicated region
      $region45: #{bottleneck_forward.1} parent=5 // pred_check
        _
      $region46: #{bottleneck_forward.1} parent=5 // pred_check_branch
        %261 = sbr.rel (%p258) target = $region48
      $region47: #{bottleneck_forward.1} parent=5 // pred_region
        %s262 = ssub.s32 %s19, 1
        %s263 = sand.u32 %s32, 1
        %s264 = scalar_lea.sflag [#allocation4], %s263
        %s265 = sand.u32 %s32, 1
        %s266 = smul.addr %s265, 256
        %s267 = scalar_lea.vmem [#allocation3], %s266
        // Predicated region
        $region49: #{bottleneck_forward.1} parent=47 // pred_check
          %p268 = pneg %p45
        $region50: #{bottleneck_forward.1} parent=47 // pred_check_branch
          %270 = sbr.rel (%p268) target = $region52
        $region51: #{bottleneck_forward.1} parent=47 // pred_region
          %272 = dma.done %s264, 4096
        $region52: #{bottleneck_forward.1} parent=47 // pred_fallthru
          _
        %s273 = sand.u32 %s32, 1
        %s274 = scalar_lea.sflag [#allocation4], %s273
        %s275 = sand.u32 %s32, 1
        %s276 = smul.addr %s275, 256
        %s277 = scalar_lea.vmem [#allocation3], %s276
        %p278 = pneg %p45
        %p279 = pneg %p42
        %p280 = pneg %p66
        %p281 = pneg %p63
        %p282 = pneg %p87
        %p283 = pneg %p84
        %p284 = pneg %p108
        %p285 = pneg %p105
        %p286 = pneg %p129
        %p287 = pneg %p126
        %p288 = pneg %p150
        %p289 = pneg %p147
        %p290 = pneg %p171
        %p291 = pneg %p168
        %p292 = pneg %p197
        %p293 = pneg %p194
        %s294 = sand.u32 %s184, 1
        %s295 = scalar_lea.sflag [#allocation5], %s294
        %s296 = sand.u32 %s184, 1
        %s297 = smul.addr %s296, 256
        %s298 = scalar_lea.vmem [#allocation6], %s297
        %v299 = vld [vmem:[%s267] sm:$0xff]
        %v300 = vld [vmem:[%s267 + $0x8] sm:$0xff]
        %v301 = vld [vmem:[%s267 + $0x10] sm:$0xff]
        %v302 = vld [vmem:[%s267 + $0x18] sm:$0xff]
        %v303 = vld [vmem:[%s267 + $0x20] sm:$0xff]
        %v304 = vld [vmem:[%s267 + $0x28] sm:$0xff]
        %v305 = vld [vmem:[%s267 + $0x30] sm:$0xff]
        %v306 = vld [vmem:[%s267 + $0x38] sm:$0xff]
        %v307 = vld [vmem:[%s267 + $0x40] sm:$0xff]
        %v308 = vld [vmem:[%s267 + $0x48] sm:$0xff]
        %v309 = vld [vmem:[%s267 + $0x50] sm:$0xff]
        %v310 = vld [vmem:[%s267 + $0x58] sm:$0xff]
        %v311 = vld [vmem:[%s267 + $0x60] sm:$0xff]
        %v312 = vld [vmem:[%s267 + $0x68] sm:$0xff]
        %v313 = vld [vmem:[%s267 + $0x70] sm:$0xff]
        %v314 = vld [vmem:[%s267 + $0x78] sm:$0xff]
        %v315 = vld [vmem:[%s267 + $0x80] sm:$0xff]
        %v316 = vld [vmem:[%s267 + $0x88] sm:$0xff]
        %v317 = vld [vmem:[%s267 + $0x90] sm:$0xff]
        %v318 = vld [vmem:[%s267 + $0x98] sm:$0xff]
        %v319 = vld [vmem:[%s267 + $0xa0] sm:$0xff]
        %v320 = vld [vmem:[%s267 + $0xa8] sm:$0xff]
        %v321 = vld [vmem:[%s267 + $0xb0] sm:$0xff]
        %v322 = vld [vmem:[%s267 + $0xb8] sm:$0xff]
        %v323 = vld [vmem:[%s267 + $0xc0] sm:$0xff]
        %v324 = vld [vmem:[%s267 + $0xc8] sm:$0xff]
        %v325 = vld [vmem:[%s267 + $0xd0] sm:$0xff]
        %v326 = vld [vmem:[%s267 + $0xd8] sm:$0xff]
        %v327 = vld [vmem:[%s267 + $0xe0] sm:$0xff]
        %v328 = vld [vmem:[%s267 + $0xe8] sm:$0xff]
        %v329 = vld [vmem:[%s267 + $0xf0] sm:$0xff]
        %v330 = vld [vmem:[%s267 + $0xf8] sm:$0xff]
        %v331 = vld [vmem:[%s1] sm:$0xff]
        %v332 = vld [vmem:[%s1 + $0x8] sm:$0xff]
        %v333 = vld [vmem:[%s1 + $0x10] sm:$0xff]
        %v334 = vld [vmem:[%s1 + $0x18] sm:$0xff]
        %v335 = vld [vmem:[%s2] sm:$0x1]
        %v337 = vperm.slane %v335, 0
        %vm339 = vcmask 261120
        %v341 = vsel %vm339, %v299, 0
        %v344 = vsel %vm339, %v300, 0
        %v347 = vsel %vm339, %v301, 0
        %v350 = vsel %vm339, %v302, 0
        %v353 = vsel %vm339, %v303, 0
        %v356 = vsel %vm339, %v304, 0
        %v359 = vsel %vm339, %v305, 0
        %v362 = vsel %vm339, %v306, 0
        %v365 = vsel %vm339, %v307, 0
        %v368 = vsel %vm339, %v308, 0
        %v371 = vsel %vm339, %v309, 0
        %v374 = vsel %vm339, %v310, 0
        %v377 = vsel %vm339, %v311, 0
        %v380 = vsel %vm339, %v312, 0
        %v383 = vsel %vm339, %v313, 0
        %v386 = vsel %vm339, %v314, 0
        %v389 = vsel %vm339, %v315, 0
        %v392 = vsel %vm339, %v316, 0
        %v395 = vsel %vm339, %v317, 0
        %v398 = vsel %vm339, %v318, 0
        %v401 = vsel %vm339, %v319, 0
        %v404 = vsel %vm339, %v320, 0
        %v407 = vsel %vm339, %v321, 0
        %v410 = vsel %vm339, %v322, 0
        %v413 = vsel %vm339, %v323, 0
        %v416 = vsel %vm339, %v324, 0
        %v419 = vsel %vm339, %v325, 0
        %v422 = vsel %vm339, %v326, 0
        %v425 = vsel %vm339, %v327, 0
        %v428 = vsel %vm339, %v328, 0
        %v431 = vsel %vm339, %v329, 0
        %v434 = vsel %vm339, %v330, 0
        %436 = vmatpush.msra.mxu0 0.0
        %437 = vmatpush.msra.mxu0 0.0
        %438 = vmatpush.msra.mxu0 0.0
        %439 = vmatpush.msra.mxu0 0.0
        %440 = vmatpush.msra.mxu0 0.0
        %441 = vmatpush.msra.mxu0 0.0
        %442 = vmatpush.msra.mxu0 0.0
        %443 = vmatpush.msra.mxu0 0.0
        %444 = vmatpush.msra.mxu0 0.0
        %445 = vmatpush.msra.mxu0 0.0
        %446 = vmatpush.msra.mxu0 0.0
        %447 = vmatpush.msra.mxu0 0.0
        %448 = vmatpush.msra.mxu0 %v334
        %449 = vmatpush.msra.mxu0 %v333
        %450 = vmatpush.msra.mxu0 %v332
        %451 = vmatpush.msra.mxu0 %v331
        %452 = vmatmul.f32.gmra.mxu0 %v341
        %v453 = vpop.f32.mrf.mxu0
        %v454 = vadd.f32 %v337, %v453
        %455 = vmatmul.f32.gmra.mxu0 %v344
        %v456 = vpop.f32.mrf.mxu0
        %v457 = vadd.f32 %v337, %v456
        %458 = vmatmul.f32.gmra.mxu0 %v347
        %v459 = vpop.f32.mrf.mxu0
        %v460 = vadd.f32 %v337, %v459
        %461 = vmatmul.f32.gmra.mxu0 %v350
        %v462 = vpop.f32.mrf.mxu0
        %v463 = vadd.f32 %v337, %v462
        %464 = vmatmul.f32.gmra.mxu0 %v353
        %v465 = vpop.f32.mrf.mxu0
        %v466 = vadd.f32 %v337, %v465
        %467 = vmatmul.f32.gmra.mxu0 %v356
        %v468 = vpop.f32.mrf.mxu0
        %v469 = vadd.f32 %v337, %v468
        %470 = vmatmul.f32.gmra.mxu0 %v359
        %v471 = vpop.f32.mrf.mxu0
        %v472 = vadd.f32 %v337, %v471
        %473 = vmatmul.f32.gmra.mxu0 %v362
        %v474 = vpop.f32.mrf.mxu0
        %v475 = vadd.f32 %v337, %v474
        %476 = vmatmul.f32.gmra.mxu0 %v365
        %v477 = vpop.f32.mrf.mxu0
        %v478 = vadd.f32 %v337, %v477
        %479 = vmatmul.f32.gmra.mxu0 %v368
        %v480 = vpop.f32.mrf.mxu0
        %v481 = vadd.f32 %v337, %v480
        %482 = vmatmul.f32.gmra.mxu0 %v371
        %v483 = vpop.f32.mrf.mxu0
        %v484 = vadd.f32 %v337, %v483
        %485 = vmatmul.f32.gmra.mxu0 %v374
        %v486 = vpop.f32.mrf.mxu0
        %v487 = vadd.f32 %v337, %v486
        %488 = vmatmul.f32.gmra.mxu0 %v377
        %v489 = vpop.f32.mrf.mxu0
        %v490 = vadd.f32 %v337, %v489
        %491 = vmatmul.f32.gmra.mxu0 %v380
        %v492 = vpop.f32.mrf.mxu0
        %v493 = vadd.f32 %v337, %v492
        %494 = vmatmul.f32.gmra.mxu0 %v383
        %v495 = vpop.f32.mrf.mxu0
        %v496 = vadd.f32 %v337, %v495
        %497 = vmatmul.f32.gmra.mxu0 %v386
        %v498 = vpop.f32.mrf.mxu0
        %v499 = vadd.f32 %v337, %v498
        %500 = vmatmul.f32.gmra.mxu0 %v389
        %v501 = vpop.f32.mrf.mxu0
        %v502 = vadd.f32 %v337, %v501
        %503 = vmatmul.f32.gmra.mxu0 %v392
        %v504 = vpop.f32.mrf.mxu0
        %v505 = vadd.f32 %v337, %v504
        %506 = vmatmul.f32.gmra.mxu0 %v395
        %v507 = vpop.f32.mrf.mxu0
        %v508 = vadd.f32 %v337, %v507
        %509 = vmatmul.f32.gmra.mxu0 %v398
        %v510 = vpop.f32.mrf.mxu0
        %v511 = vadd.f32 %v337, %v510
        %512 = vmatmul.f32.gmra.mxu0 %v401
        %v513 = vpop.f32.mrf.mxu0
        %v514 = vadd.f32 %v337, %v513
        %515 = vmatmul.f32.gmra.mxu0 %v404
        %v516 = vpop.f32.mrf.mxu0
        %v517 = vadd.f32 %v337, %v516
        %518 = vmatmul.f32.gmra.mxu0 %v407
        %v519 = vpop.f32.mrf.mxu0
        %v520 = vadd.f32 %v337, %v519
        %521 = vmatmul.f32.gmra.mxu0 %v410
        %v522 = vpop.f32.mrf.mxu0
        %v523 = vadd.f32 %v337, %v522
        %524 = vmatmul.f32.gmra.mxu0 %v413
        %v525 = vpop.f32.mrf.mxu0
        %v526 = vadd.f32 %v337, %v525
        %527 = vmatmul.f32.gmra.mxu0 %v416
        %v528 = vpop.f32.mrf.mxu0
        %v529 = vadd.f32 %v337, %v528
        %530 = vmatmul.f32.gmra.mxu0 %v419
        %v531 = vpop.f32.mrf.mxu0
        %v532 = vadd.f32 %v337, %v531
        %533 = vmatmul.f32.gmra.mxu0 %v422
        %v534 = vpop.f32.mrf.mxu0
        %v535 = vadd.f32 %v337, %v534
        %536 = vmatmul.f32.gmra.mxu0 %v425
        %v537 = vpop.f32.mrf.mxu0
        %v538 = vadd.f32 %v337, %v537
        %539 = vmatmul.f32.gmra.mxu0 %v428
        %v540 = vpop.f32.mrf.mxu0
        %v541 = vadd.f32 %v337, %v540
        %542 = vmatmul.f32.gmra.mxu0 %v431
        %v543 = vpop.f32.mrf.mxu0
        %v544 = vadd.f32 %v337, %v543
        %545 = vmatmul.f32.gmra.mxu0 %v434
        %v546 = vpop.f32.mrf.mxu0
        %v547 = vadd.f32 %v337, %v546
        %548 = vdwg.mxu0
        %v549 = vmax.f32 %v454, 0.0
        %v550 = vmax.f32 %v457, 0.0
        %v551 = vmax.f32 %v460, 0.0
        %v552 = vmax.f32 %v463, 0.0
        %v553 = vmax.f32 %v466, 0.0
        %v554 = vmax.f32 %v469, 0.0
        %v555 = vmax.f32 %v472, 0.0
        %v556 = vmax.f32 %v475, 0.0
        %v557 = vmax.f32 %v478, 0.0
        %v558 = vmax.f32 %v481, 0.0
        %v559 = vmax.f32 %v484, 0.0
        %v560 = vmax.f32 %v487, 0.0
        %v561 = vmax.f32 %v490, 0.0
        %v562 = vmax.f32 %v493, 0.0
        %v563 = vmax.f32 %v496, 0.0
        %v564 = vmax.f32 %v499, 0.0
        %v565 = vmax.f32 %v502, 0.0
        %v566 = vmax.f32 %v505, 0.0
        %v567 = vmax.f32 %v508, 0.0
        %v568 = vmax.f32 %v511, 0.0
        %v569 = vmax.f32 %v514, 0.0
        %v570 = vmax.f32 %v517, 0.0
        %v571 = vmax.f32 %v520, 0.0
        %v572 = vmax.f32 %v523, 0.0
        %v573 = vmax.f32 %v526, 0.0
        %v574 = vmax.f32 %v529, 0.0
        %v575 = vmax.f32 %v532, 0.0
        %v576 = vmax.f32 %v535, 0.0
        %v577 = vmax.f32 %v538, 0.0
        %v578 = vmax.f32 %v541, 0.0
        %v579 = vmax.f32 %v544, 0.0
        %v580 = vmax.f32 %v547, 0.0
        %s581 = scalar_lea.vmem [#allocation2], 24
        %vm582 = vcmask 64512
        %583 = vst.msk [vmem:[%s581 + $0x1] sm:$0xff] %vm582, %v549
        %584 = vst.msk [vmem:[%s581 + $0x9] sm:$0xff] %vm582, %v550
        %585 = vst.msk [vmem:[%s581 + $0x19] sm:$0xff] %vm582, %v551
        %586 = vst.msk [vmem:[%s581 + $0x21] sm:$0xff] %vm582, %v552
        %587 = vst.msk [vmem:[%s581 + $0x31] sm:$0xff] %vm582, %v553
        %588 = vst.msk [vmem:[%s581 + $0x39] sm:$0xff] %vm582, %v554
        %589 = vst.msk [vmem:[%s581 + $0x49] sm:$0xff] %vm582, %v555
        %590 = vst.msk [vmem:[%s581 + $0x51] sm:$0xff] %vm582, %v556
        %591 = vst.msk [vmem:[%s581 + $0x61] sm:$0xff] %vm582, %v557
        %592 = vst.msk [vmem:[%s581 + $0x69] sm:$0xff] %vm582, %v558
        %593 = vst.msk [vmem:[%s581 + $0x79] sm:$0xff] %vm582, %v559
        %594 = vst.msk [vmem:[%s581 + $0x81] sm:$0xff] %vm582, %v560
        %595 = vst.msk [vmem:[%s581 + $0x91] sm:$0xff] %vm582, %v561
        %596 = vst.msk [vmem:[%s581 + $0x99] sm:$0xff] %vm582, %v562
        %597 = vst.msk [vmem:[%s581 + $0xa9] sm:$0xff] %vm582, %v563
        %598 = vst.msk [vmem:[%s581 + $0xb1] sm:$0xff] %vm582, %v564
        %599 = vst.msk [vmem:[%s581 + $0xc1] sm:$0xff] %vm582, %v565
        %600 = vst.msk [vmem:[%s581 + $0xc9] sm:$0xff] %vm582, %v566
        %601 = vst.msk [vmem:[%s581 + $0xd9] sm:$0xff] %vm582, %v567
        %602 = vst.msk [vmem:[%s581 + $0xe1] sm:$0xff] %vm582, %v568
        %603 = vst.msk [vmem:[%s581 + $0xf1] sm:$0xff] %vm582, %v569
        %604 = vst.msk [vmem:[%s581 + $0xf9] sm:$0xff] %vm582, %v570
        %605 = vst.msk [vmem:[%s581 + $0x109] sm:$0xff] %vm582, %v571
        %606 = vst.msk [vmem:[%s581 + $0x111] sm:$0xff] %vm582, %v572
        %607 = vst.msk [vmem:[%s581 + $0x121] sm:$0xff] %vm582, %v573
        %608 = vst.msk [vmem:[%s581 + $0x129] sm:$0xff] %vm582, %v574
        %609 = vst.msk [vmem:[%s581 + $0x139] sm:$0xff] %vm582, %v575
        %610 = vst.msk [vmem:[%s581 + $0x141] sm:$0xff] %vm582, %v576
        %611 = vst.msk [vmem:[%s581 + $0x151] sm:$0xff] %vm582, %v577
        %612 = vst.msk [vmem:[%s581 + $0x159] sm:$0xff] %vm582, %v578
        %613 = vst.msk [vmem:[%s581 + $0x169] sm:$0xff] %vm582, %v579
        %614 = vst.msk [vmem:[%s581 + $0x171] sm:$0xff] %vm582, %v580
        %615 = vst.msk [vmem:[#allocation2] sm:$0xff] %vm582, 0.0
        %616 = vst.msk [vmem:[#allocation2 + $0x8] sm:$0xff] %vm582, 0.0
        %vm617 = vcmask 58368
        %618 = vst.msk [vmem:[#allocation2 + $0x10] sm:$0x3] %vm617, 0.0
        %s619 = scalar_lea.vmem [#allocation2], 408
        %620 = vst.msk [vmem:[%s619] sm:$0xff] %vm582, 0.0
        %621 = vst.msk [vmem:[%s619 + $0x8] sm:$0xff] %vm582, 0.0
        %622 = vst.msk [vmem:[%s619 + $0x10] sm:$0x3] %vm617, 0.0
        %vm623 = vcmask 57344
        %624 = vst.msk [vmem:[#allocation2] sm:$0x1] %vm623, 0.0
        %625 = vst.msk [vmem:[#allocation2 + $0x18] sm:$0x1] %vm623, 0.0
        %626 = vst.msk [vmem:[#allocation2 + $0x30] sm:$0x1] %vm623, 0.0
        %627 = vst.msk [vmem:[#allocation2 + $0x48] sm:$0x1] %vm623, 0.0
        %628 = vst.msk [vmem:[#allocation2 + $0x60] sm:$0x1] %vm623, 0.0
        %629 = vst.msk [vmem:[#allocation2 + $0x78] sm:$0x1] %vm623, 0.0
        %630 = vst.msk [vmem:[#allocation2 + $0x90] sm:$0x1] %vm623, 0.0
        %631 = vst.msk [vmem:[#allocation2 + $0xa8] sm:$0x1] %vm623, 0.0
        %632 = vst.msk [vmem:[#allocation2 + $0xc0] sm:$0x1] %vm623, 0.0
        %633 = vst.msk [vmem:[#allocation2 + $0xd8] sm:$0x1] %vm623, 0.0
        %634 = vst.msk [vmem:[#allocation2 + $0xf0] sm:$0x1] %vm623, 0.0
        %635 = vst.msk [vmem:[#allocation2 + $0x108] sm:$0x1] %vm623, 0.0
        %636 = vst.msk [vmem:[#allocation2 + $0x120] sm:$0x1] %vm623, 0.0
        %637 = vst.msk [vmem:[#allocation2 + $0x138] sm:$0x1] %vm623, 0.0
        %638 = vst.msk [vmem:[#allocation2 + $0x150] sm:$0x1] %vm623, 0.0
        %639 = vst.msk [vmem:[#allocation2 + $0x168] sm:$0x1] %vm623, 0.0
        %640 = vst.msk [vmem:[#allocation2 + $0x180] sm:$0x1] %vm623, 0.0
        %641 = vst.msk [vmem:[#allocation2 + $0x198] sm:$0x1] %vm623, 0.0
        %642 = vst.msk [vmem:[#allocation2 + $0x11] sm:$0x1] %vm623, 0.0
        %643 = vst.msk [vmem:[#allocation2 + $0x29] sm:$0x1] %vm623, 0.0
        %644 = vst.msk [vmem:[#allocation2 + $0x41] sm:$0x1] %vm623, 0.0
        %645 = vst.msk [vmem:[#allocation2 + $0x59] sm:$0x1] %vm623, 0.0
        %646 = vst.msk [vmem:[#allocation2 + $0x71] sm:$0x1] %vm623, 0.0
        %647 = vst.msk [vmem:[#allocation2 + $0x89] sm:$0x1] %vm623, 0.0
        %648 = vst.msk [vmem:[#allocation2 + $0xa1] sm:$0x1] %vm623, 0.0
        %649 = vst.msk [vmem:[#allocation2 + $0xb9] sm:$0x1] %vm623, 0.0
        %650 = vst.msk [vmem:[#allocation2 + $0xd1] sm:$0x1] %vm623, 0.0
        %651 = vst.msk [vmem:[#allocation2 + $0xe9] sm:$0x1] %vm623, 0.0
        %652 = vst.msk [vmem:[#allocation2 + $0x101] sm:$0x1] %vm623, 0.0
        %653 = vst.msk [vmem:[#allocation2 + $0x119] sm:$0x1] %vm623, 0.0
        %654 = vst.msk [vmem:[#allocation2 + $0x131] sm:$0x1] %vm623, 0.0
        %655 = vst.msk [vmem:[#allocation2 + $0x149] sm:$0x1] %vm623, 0.0
        %656 = vst.msk [vmem:[#allocation2 + $0x161] sm:$0x1] %vm623, 0.0
        %657 = vst.msk [vmem:[#allocation2 + $0x179] sm:$0x1] %vm623, 0.0
        %658 = vst.msk [vmem:[#allocation2 + $0x191] sm:$0x1] %vm623, 0.0
        %659 = vst.msk [vmem:[#allocation2 + $0x1a9] sm:$0x1] %vm623, 0.0
        %v660 = vld [vmem:[#allocation2] sm:$0xff]
        %v661 = vld [vmem:[#allocation2 + $0x8] sm:$0xff]
        %v662 = vld [vmem:[#allocation2 + $0x18] sm:$0xff]
        %v663 = vld [vmem:[#allocation2 + $0x20] sm:$0xff]
        %v664 = vld [vmem:[#allocation2 + $0x30] sm:$0xff]
        %v665 = vld [vmem:[#allocation2 + $0x38] sm:$0xff]
        %v666 = vld [vmem:[#allocation2 + $0x48] sm:$0xff]
        %v667 = vld [vmem:[#allocation2 + $0x50] sm:$0xff]
        %v668 = vld [vmem:[#allocation2 + $0x60] sm:$0xff]
        %v669 = vld [vmem:[#allocation2 + $0x68] sm:$0xff]
        %v670 = vld [vmem:[#allocation2 + $0x78] sm:$0xff]
        %v671 = vld [vmem:[#allocation2 + $0x80] sm:$0xff]
        %v672 = vld [vmem:[#allocation2 + $0x90] sm:$0xff]
        %v673 = vld [vmem:[#allocation2 + $0x98] sm:$0xff]
        %v674 = vld [vmem:[#allocation2 + $0xa8] sm:$0xff]
        %v675 = vld [vmem:[#allocation2 + $0xb0] sm:$0xff]
        %v676 = vld [vmem:[#allocation2 + $0xc0] sm:$0xff]
        %v677 = vld [vmem:[#allocation2 + $0xc8] sm:$0xff]
        %v678 = vld [vmem:[#allocation2 + $0xd8] sm:$0xff]
        %v679 = vld [vmem:[#allocation2 + $0xe0] sm:$0xff]
        %v680 = vld [vmem:[#allocation2 + $0xf0] sm:$0xff]
        %v681 = vld [vmem:[#allocation2 + $0xf8] sm:$0xff]
        %v682 = vld [vmem:[#allocation2 + $0x108] sm:$0xff]
        %v683 = vld [vmem:[#allocation2 + $0x110] sm:$0xff]
        %v684 = vld [vmem:[#allocation2 + $0x120] sm:$0xff]
        %v685 = vld [vmem:[#allocation2 + $0x128] sm:$0xff]
        %v686 = vld [vmem:[#allocation2 + $0x138] sm:$0xff]
        %v687 = vld [vmem:[#allocation2 + $0x140] sm:$0xff]
        %v688 = vld [vmem:[#allocation2 + $0x150] sm:$0xff]
        %v689 = vld [vmem:[#allocation2 + $0x158] sm:$0xff]
        %v690 = vld [vmem:[#allocation2 + $0x168] sm:$0xff]
        %v691 = vld [vmem:[#allocation2 + $0x170] sm:$0xff]
        %v692 = vld [vmem:[%s3] sm:$0xff]
        %v693 = vld [vmem:[#allocation2 + $0x1] sm:$0xff]
        %v694 = vld [vmem:[#allocation2 + $0x9] sm:$0xff]
        %v695 = vld [vmem:[#allocation2 + $0x19] sm:$0xff]
        %v696 = vld [vmem:[#allocation2 + $0x21] sm:$0xff]
        %v697 = vld [vmem:[#allocation2 + $0x31] sm:$0xff]
        %v698 = vld [vmem:[#allocation2 + $0x39] sm:$0xff]
        %v699 = vld [vmem:[#allocation2 + $0x49] sm:$0xff]
        %v700 = vld [vmem:[#allocation2 + $0x51] sm:$0xff]
        %v701 = vld [vmem:[#allocation2 + $0x61] sm:$0xff]
        %v702 = vld [vmem:[#allocation2 + $0x69] sm:$0xff]
        %v703 = vld [vmem:[#allocation2 + $0x79] sm:$0xff]
        %v704 = vld [vmem:[#allocation2 + $0x81] sm:$0xff]
        %v705 = vld [vmem:[#allocation2 + $0x91] sm:$0xff]
        %v706 = vld [vmem:[#allocation2 + $0x99] sm:$0xff]
        %v707 = vld [vmem:[#allocation2 + $0xa9] sm:$0xff]
        %v708 = vld [vmem:[#allocation2 + $0xb1] sm:$0xff]
        %v709 = vld [vmem:[#allocation2 + $0xc1] sm:$0xff]
        %v710 = vld [vmem:[#allocation2 + $0xc9] sm:$0xff]
        %v711 = vld [vmem:[#allocation2 + $0xd9] sm:$0xff]
        %v712 = vld [vmem:[#allocation2 + $0xe1] sm:$0xff]
        %v713 = vld [vmem:[#allocation2 + $0xf1] sm:$0xff]
        %v714 = vld [vmem:[#allocation2 + $0xf9] sm:$0xff]
        %v715 = vld [vmem:[#allocation2 + $0x109] sm:$0xff]
        %v716 = vld [vmem:[#allocation2 + $0x111] sm:$0xff]
        %v717 = vld [vmem:[#allocation2 + $0x121] sm:$0xff]
        %v718 = vld [vmem:[#allocation2 + $0x129] sm:$0xff]
        %v719 = vld [vmem:[#allocation2 + $0x139] sm:$0xff]
        %v720 = vld [vmem:[#allocation2 + $0x141] sm:$0xff]
        %v721 = vld [vmem:[#allocation2 + $0x151] sm:$0xff]
        %v722 = vld [vmem:[#allocation2 + $0x159] sm:$0xff]
        %v723 = vld [vmem:[#allocation2 + $0x169] sm:$0xff]
        %v724 = vld [vmem:[#allocation2 + $0x171] sm:$0xff]
        %v725 = vld [vmem:[%s3 + $0x8] sm:$0xff]
        %v727 = vsel %vm582, %v693, 0
        %v730 = vsel %vm582, %v694, 0
        %v733 = vsel %vm582, %v695, 0
        %v736 = vsel %vm582, %v696, 0
        %v739 = vsel %vm582, %v697, 0
        %v742 = vsel %vm582, %v698, 0
        %v745 = vsel %vm582, %v699, 0
        %v748 = vsel %vm582, %v700, 0
        %v751 = vsel %vm582, %v701, 0
        %v754 = vsel %vm582, %v702, 0
        %v757 = vsel %vm582, %v703, 0
        %v760 = vsel %vm582, %v704, 0
        %v763 = vsel %vm582, %v705, 0
        %v766 = vsel %vm582, %v706, 0
        %v769 = vsel %vm582, %v707, 0
        %v772 = vsel %vm582, %v708, 0
        %v775 = vsel %vm582, %v709, 0
        %v778 = vsel %vm582, %v710, 0
        %v781 = vsel %vm582, %v711, 0
        %v784 = vsel %vm582, %v712, 0
        %v787 = vsel %vm582, %v713, 0
        %v790 = vsel %vm582, %v714, 0
        %v793 = vsel %vm582, %v715, 0
        %v796 = vsel %vm582, %v716, 0
        %v799 = vsel %vm582, %v717, 0
        %v802 = vsel %vm582, %v718, 0
        %v805 = vsel %vm582, %v719, 0
        %v808 = vsel %vm582, %v720, 0
        %v811 = vsel %vm582, %v721, 0
        %v814 = vsel %vm582, %v722, 0
        %v817 = vsel %vm582, %v723, 0
        %v820 = vsel %vm582, %v724, 0
        %822 = vmatpush.msra.mxu0 0.0
        %823 = vmatpush.msra.mxu0 0.0
        %824 = vmatpush.msra.mxu0 0.0
        %825 = vmatpush.msra.mxu0 0.0
        %826 = vmatpush.msra.mxu0 0.0
        %827 = vmatpush.msra.mxu0 0.0
        %828 = vmatpush.msra.mxu0 0.0
        %829 = vmatpush.msra.mxu0 0.0
        %830 = vmatpush.msra.mxu0 0.0
        %831 = vmatpush.msra.mxu0 0.0
        %832 = vmatpush.msra.mxu0 0.0
        %833 = vmatpush.msra.mxu0 0.0
        %834 = vmatpush.msra.mxu0 0.0
        %835 = vmatpush.msra.mxu0 0.0
        %836 = vmatpush.msra.mxu0 0.0
        %837 = vmatpush.msra.mxu0 %v725
        %838 = vmatmul.f32.gmra.mxu0 %v727
        %v839 = vpop.f32.mrf.mxu0
        %v840 = vadd.f32 0.0, %v839
        %841 = vmatmul.f32.gmra.mxu0 %v730
        %v842 = vpop.f32.mrf.mxu0
        %v843 = vadd.f32 0.0, %v842
        %844 = vmatmul.f32.gmra.mxu0 %v733
        %v845 = vpop.f32.mrf.mxu0
        %v846 = vadd.f32 0.0, %v845
        %847 = vmatmul.f32.gmra.mxu0 %v736
        %v848 = vpop.f32.mrf.mxu0
        %v849 = vadd.f32 0.0, %v848
        %850 = vmatmul.f32.gmra.mxu0 %v739
        %v851 = vpop.f32.mrf.mxu0
        %v852 = vadd.f32 0.0, %v851
        %853 = vmatmul.f32.gmra.mxu0 %v742
        %v854 = vpop.f32.mrf.mxu0
        %v855 = vadd.f32 0.0, %v854
        %856 = vmatmul.f32.gmra.mxu0 %v745
        %v857 = vpop.f32.mrf.mxu0
        %v858 = vadd.f32 0.0, %v857
        %859 = vmatmul.f32.gmra.mxu0 %v748
        %v860 = vpop.f32.mrf.mxu0
        %v861 = vadd.f32 0.0, %v860
        %862 = vmatmul.f32.gmra.mxu0 %v751
        %v863 = vpop.f32.mrf.mxu0
        %v864 = vadd.f32 0.0, %v863
        %865 = vmatmul.f32.gmra.mxu0 %v754
        %v866 = vpop.f32.mrf.mxu0
        %v867 = vadd.f32 0.0, %v866
        %868 = vmatmul.f32.gmra.mxu0 %v757
        %v869 = vpop.f32.mrf.mxu0
        %v870 = vadd.f32 0.0, %v869
        %871 = vmatmul.f32.gmra.mxu0 %v760
        %v872 = vpop.f32.mrf.mxu0
        %v873 = vadd.f32 0.0, %v872
        %874 = vmatmul.f32.gmra.mxu0 %v763
        %v875 = vpop.f32.mrf.mxu0
        %v876 = vadd.f32 0.0, %v875
        %877 = vmatmul.f32.gmra.mxu0 %v766
        %v878 = vpop.f32.mrf.mxu0
        %v879 = vadd.f32 0.0, %v878
        %880 = vmatmul.f32.gmra.mxu0 %v769
        %v881 = vpop.f32.mrf.mxu0
        %v882 = vadd.f32 0.0, %v881
        %883 = vmatmul.f32.gmra.mxu0 %v772
        %v884 = vpop.f32.mrf.mxu0
        %v885 = vadd.f32 0.0, %v884
        %886 = vmatmul.f32.gmra.mxu0 %v775
        %v887 = vpop.f32.mrf.mxu0
        %v888 = vadd.f32 0.0, %v887
        %889 = vmatmul.f32.gmra.mxu0 %v778
        %v890 = vpop.f32.mrf.mxu0
        %v891 = vadd.f32 0.0, %v890
        %892 = vmatmul.f32.gmra.mxu0 %v781
        %v893 = vpop.f32.mrf.mxu0
        %v894 = vadd.f32 0.0, %v893
        %895 = vmatmul.f32.gmra.mxu0 %v784
        %v896 = vpop.f32.mrf.mxu0
        %v897 = vadd.f32 0.0, %v896
        %898 = vmatmul.f32.gmra.mxu0 %v787
        %v899 = vpop.f32.mrf.mxu0
        %v900 = vadd.f32 0.0, %v899
        %901 = vmatmul.f32.gmra.mxu0 %v790
        %v902 = vpop.f32.mrf.mxu0
        %v903 = vadd.f32 0.0, %v902
        %904 = vmatmul.f32.gmra.mxu0 %v793
        %v905 = vpop.f32.mrf.mxu0
        %v906 = vadd.f32 0.0, %v905
        %907 = vmatmul.f32.gmra.mxu0 %v796
        %v908 = vpop.f32.mrf.mxu0
        %v909 = vadd.f32 0.0, %v908
        %910 = vmatmul.f32.gmra.mxu0 %v799
        %v911 = vpop.f32.mrf.mxu0
        %v912 = vadd.f32 0.0, %v911
        %913 = vmatmul.f32.gmra.mxu0 %v802
        %v914 = vpop.f32.mrf.mxu0
        %v915 = vadd.f32 0.0, %v914
        %916 = vmatmul.f32.gmra.mxu0 %v805
        %v917 = vpop.f32.mrf.mxu0
        %v918 = vadd.f32 0.0, %v917
        %919 = vmatmul.f32.gmra.mxu0 %v808
        %v920 = vpop.f32.mrf.mxu0
        %v921 = vadd.f32 0.0, %v920
        %922 = vmatmul.f32.gmra.mxu0 %v811
        %v923 = vpop.f32.mrf.mxu0
        %v924 = vadd.f32 0.0, %v923
        %925 = vmatmul.f32.gmra.mxu0 %v814
        %v926 = vpop.f32.mrf.mxu0
        %v927 = vadd.f32 0.0, %v926
        %928 = vmatmul.f32.gmra.mxu0 %v817
        %v929 = vpop.f32.mrf.mxu0
        %v930 = vadd.f32 0.0, %v929
        %931 = vmatmul.f32.gmra.mxu0 %v820
        %v932 = vpop.f32.mrf.mxu0
        %v933 = vadd.f32 0.0, %v932
        %934 = vdwg.mxu0
        %v936 = vsel %vm582, %v660, 0
        %v939 = vsel %vm582, %v661, 0
        %v942 = vsel %vm582, %v662, 0
        %v945 = vsel %vm582, %v663, 0
        %v948 = vsel %vm582, %v664, 0
        %v951 = vsel %vm582, %v665, 0
        %v954 = vsel %vm582, %v666, 0
        %v957 = vsel %vm582, %v667, 0
        %v960 = vsel %vm582, %v668, 0
        %v963 = vsel %vm582, %v669, 0
        %v966 = vsel %vm582, %v670, 0
        %v969 = vsel %vm582, %v671, 0
        %v972 = vsel %vm582, %v672, 0
        %v975 = vsel %vm582, %v673, 0
        %v978 = vsel %vm582, %v674, 0
        %v981 = vsel %vm582, %v675, 0
        %v984 = vsel %vm582, %v676, 0
        %v987 = vsel %vm582, %v677, 0
        %v990 = vsel %vm582, %v678, 0
        %v993 = vsel %vm582, %v679, 0
        %v996 = vsel %vm582, %v680, 0
        %v999 = vsel %vm582, %v681, 0
        %v1002 = vsel %vm582, %v682, 0
        %v1005 = vsel %vm582, %v683, 0
        %v1008 = vsel %vm582, %v684, 0
        %v1011 = vsel %vm582, %v685, 0
        %v1014 = vsel %vm582, %v686, 0
        %v1017 = vsel %vm582, %v687, 0
        %v1020 = vsel %vm582, %v688, 0
        %v1023 = vsel %vm582, %v689, 0
        %v1026 = vsel %vm582, %v690, 0
        %v1029 = vsel %vm582, %v691, 0
        %1031 = vmatpush.msra.mxu0 0.0
        %1032 = vmatpush.msra.mxu0 0.0
        %1033 = vmatpush.msra.mxu0 0.0
        %1034 = vmatpush.msra.mxu0 0.0
        %1035 = vmatpush.msra.mxu0 0.0
        %1036 = vmatpush.msra.mxu0 0.0
        %1037 = vmatpush.msra.mxu0 0.0
        %1038 = vmatpush.msra.mxu0 0.0
        %1039 = vmatpush.msra.mxu0 0.0
        %1040 = vmatpush.msra.mxu0 0.0
        %1041 = vmatpush.msra.mxu0 0.0
        %1042 = vmatpush.msra.mxu0 0.0
        %1043 = vmatpush.msra.mxu0 0.0
        %1044 = vmatpush.msra.mxu0 0.0
        %1045 = vmatpush.msra.mxu0 0.0
        %1046 = vmatpush.msra.mxu0 %v692
        %1047 = vmatmul.f32.gmra.mxu0 %v936
        %v1048 = vpop.f32.mrf.mxu0
        %v1049 = vadd.f32 %v840, %v1048
        %1050 = vmatmul.f32.gmra.mxu0 %v939
        %v1051 = vpop.f32.mrf.mxu0
        %v1052 = vadd.f32 %v843, %v1051
        %1053 = vmatmul.f32.gmra.mxu0 %v942
        %v1054 = vpop.f32.mrf.mxu0
        %v1055 = vadd.f32 %v846, %v1054
        %1056 = vmatmul.f32.gmra.mxu0 %v945
        %v1057 = vpop.f32.mrf.mxu0
        %v1058 = vadd.f32 %v849, %v1057
        %1059 = vmatmul.f32.gmra.mxu0 %v948
        %v1060 = vpop.f32.mrf.mxu0
        %v1061 = vadd.f32 %v852, %v1060
        %1062 = vmatmul.f32.gmra.mxu0 %v951
        %v1063 = vpop.f32.mrf.mxu0
        %v1064 = vadd.f32 %v855, %v1063
        %1065 = vmatmul.f32.gmra.mxu0 %v954
        %v1066 = vpop.f32.mrf.mxu0
        %v1067 = vadd.f32 %v858, %v1066
        %1068 = vmatmul.f32.gmra.mxu0 %v957
        %v1069 = vpop.f32.mrf.mxu0
        %v1070 = vadd.f32 %v861, %v1069
        %1071 = vmatmul.f32.gmra.mxu0 %v960
        %v1072 = vpop.f32.mrf.mxu0
        %v1073 = vadd.f32 %v864, %v1072
        %1074 = vmatmul.f32.gmra.mxu0 %v963
        %v1075 = vpop.f32.mrf.mxu0
        %v1076 = vadd.f32 %v867, %v1075
        %1077 = vmatmul.f32.gmra.mxu0 %v966
        %v1078 = vpop.f32.mrf.mxu0
        %v1079 = vadd.f32 %v870, %v1078
        %1080 = vmatmul.f32.gmra.mxu0 %v969
        %v1081 = vpop.f32.mrf.mxu0
        %v1082 = vadd.f32 %v873, %v1081
        %1083 = vmatmul.f32.gmra.mxu0 %v972
        %v1084 = vpop.f32.mrf.mxu0
        %v1085 = vadd.f32 %v876, %v1084
        %1086 = vmatmul.f32.gmra.mxu0 %v975
        %v1087 = vpop.f32.mrf.mxu0
        %v1088 = vadd.f32 %v879, %v1087
        %1089 = vmatmul.f32.gmra.mxu0 %v978
        %v1090 = vpop.f32.mrf.mxu0
        %v1091 = vadd.f32 %v882, %v1090
        %1092 = vmatmul.f32.gmra.mxu0 %v981
        %v1093 = vpop.f32.mrf.mxu0
        %v1094 = vadd.f32 %v885, %v1093
        %1095 = vmatmul.f32.gmra.mxu0 %v984
        %v1096 = vpop.f32.mrf.mxu0
        %v1097 = vadd.f32 %v888, %v1096
        %1098 = vmatmul.f32.gmra.mxu0 %v987
        %v1099 = vpop.f32.mrf.mxu0
        %v1100 = vadd.f32 %v891, %v1099
        %1101 = vmatmul.f32.gmra.mxu0 %v990
        %v1102 = vpop.f32.mrf.mxu0
        %v1103 = vadd.f32 %v894, %v1102
        %1104 = vmatmul.f32.gmra.mxu0 %v993
        %v1105 = vpop.f32.mrf.mxu0
        %v1106 = vadd.f32 %v897, %v1105
        %1107 = vmatmul.f32.gmra.mxu0 %v996
        %v1108 = vpop.f32.mrf.mxu0
        %v1109 = vadd.f32 %v900, %v1108
        %1110 = vmatmul.f32.gmra.mxu0 %v999
        %v1111 = vpop.f32.mrf.mxu0
        %v1112 = vadd.f32 %v903, %v1111
        %1113 = vmatmul.f32.gmra.mxu0 %v1002
        %v1114 = vpop.f32.mrf.mxu0
        %v1115 = vadd.f32 %v906, %v1114
        %1116 = vmatmul.f32.gmra.mxu0 %v1005
        %v1117 = vpop.f32.mrf.mxu0
        %v1118 = vadd.f32 %v909, %v1117
        %1119 = vmatmul.f32.gmra.mxu0 %v1008
        %v1120 = vpop.f32.mrf.mxu0
        %v1121 = vadd.f32 %v912, %v1120
        %1122 = vmatmul.f32.gmra.mxu0 %v1011
        %v1123 = vpop.f32.mrf.mxu0
        %v1124 = vadd.f32 %v915, %v1123
        %1125 = vmatmul.f32.gmra.mxu0 %v1014
        %v1126 = vpop.f32.mrf.mxu0
        %v1127 = vadd.f32 %v918, %v1126
        %1128 = vmatmul.f32.gmra.mxu0 %v1017
        %v1129 = vpop.f32.mrf.mxu0
        %v1130 = vadd.f32 %v921, %v1129
        %1131 = vmatmul.f32.gmra.mxu0 %v1020
        %v1132 = vpop.f32.mrf.mxu0
        %v1133 = vadd.f32 %v924, %v1132
        %1134 = vmatmul.f32.gmra.mxu0 %v1023
        %v1135 = vpop.f32.mrf.mxu0
        %v1136 = vadd.f32 %v927, %v1135
        %1137 = vmatmul.f32.gmra.mxu0 %v1026
        %v1138 = vpop.f32.mrf.mxu0
        %v1139 = vadd.f32 %v930, %v1138
        %1140 = vmatmul.f32.gmra.mxu0 %v1029
        %v1141 = vpop.f32.mrf.mxu0
        %v1142 = vadd.f32 %v933, %v1141
        %1143 = vdwg.mxu0
        %v1144 = vld [vmem:[#allocation2 + $0x2] sm:$0xff]
        %v1145 = vld [vmem:[#allocation2 + $0xa] sm:$0xff]
        %v1146 = vld [vmem:[#allocation2 + $0x1a] sm:$0xff]
        %v1147 = vld [vmem:[#allocation2 + $0x22] sm:$0xff]
        %v1148 = vld [vmem:[#allocation2 + $0x32] sm:$0xff]
        %v1149 = vld [vmem:[#allocation2 + $0x3a] sm:$0xff]
        %v1150 = vld [vmem:[#allocation2 + $0x4a] sm:$0xff]
        %v1151 = vld [vmem:[#allocation2 + $0x52] sm:$0xff]
        %v1152 = vld [vmem:[#allocation2 + $0x62] sm:$0xff]
        %v1153 = vld [vmem:[#allocation2 + $0x6a] sm:$0xff]
        %v1154 = vld [vmem:[#allocation2 + $0x7a] sm:$0xff]
        %v1155 = vld [vmem:[#allocation2 + $0x82] sm:$0xff]
        %v1156 = vld [vmem:[#allocation2 + $0x92] sm:$0xff]
        %v1157 = vld [vmem:[#allocation2 + $0x9a] sm:$0xff]
        %v1158 = vld [vmem:[#allocation2 + $0xaa] sm:$0xff]
        %v1159 = vld [vmem:[#allocation2 + $0xb2] sm:$0xff]
        %v1160 = vld [vmem:[#allocation2 + $0xc2] sm:$0xff]
        %v1161 = vld [vmem:[#allocation2 + $0xca] sm:$0xff]
        %v1162 = vld [vmem:[#allocation2 + $0xda] sm:$0xff]
        %v1163 = vld [vmem:[#allocation2 + $0xe2] sm:$0xff]
        %v1164 = vld [vmem:[#allocation2 + $0xf2] sm:$0xff]
        %v1165 = vld [vmem:[#allocation2 + $0xfa] sm:$0xff]
        %v1166 = vld [vmem:[#allocation2 + $0x10a] sm:$0xff]
        %v1167 = vld [vmem:[#allocation2 + $0x112] sm:$0xff]
        %v1168 = vld [vmem:[#allocation2 + $0x122] sm:$0xff]
        %v1169 = vld [vmem:[#allocation2 + $0x12a] sm:$0xff]
        %v1170 = vld [vmem:[#allocation2 + $0x13a] sm:$0xff]
        %v1171 = vld [vmem:[#allocation2 + $0x142] sm:$0xff]
        %v1172 = vld [vmem:[#allocation2 + $0x152] sm:$0xff]
        %v1173 = vld [vmem:[#allocation2 + $0x15a] sm:$0xff]
        %v1174 = vld [vmem:[#allocation2 + $0x16a] sm:$0xff]
        %v1175 = vld [vmem:[#allocation2 + $0x172] sm:$0xff]
        %v1176 = vld [vmem:[%s3 + $0x10] sm:$0xff]
        %v1178 = vsel %vm582, %v1144, 0
        %v1181 = vsel %vm582, %v1145, 0
        %v1184 = vsel %vm582, %v1146, 0
        %v1187 = vsel %vm582, %v1147, 0
        %v1190 = vsel %vm582, %v1148, 0
        %v1193 = vsel %vm582, %v1149, 0
        %v1196 = vsel %vm582, %v1150, 0
        %v1199 = vsel %vm582, %v1151, 0
        %v1202 = vsel %vm582, %v1152, 0
        %v1205 = vsel %vm582, %v1153, 0
        %v1208 = vsel %vm582, %v1154, 0
        %v1211 = vsel %vm582, %v1155, 0
        %v1214 = vsel %vm582, %v1156, 0
        %v1217 = vsel %vm582, %v1157, 0
        %v1220 = vsel %vm582, %v1158, 0
        %v1223 = vsel %vm582, %v1159, 0
        %v1226 = vsel %vm582, %v1160, 0
        %v1229 = vsel %vm582, %v1161, 0
        %v1232 = vsel %vm582, %v1162, 0
        %v1235 = vsel %vm582, %v1163, 0
        %v1238 = vsel %vm582, %v1164, 0
        %v1241 = vsel %vm582, %v1165, 0
        %v1244 = vsel %vm582, %v1166, 0
        %v1247 = vsel %vm582, %v1167, 0
        %v1250 = vsel %vm582, %v1168, 0
        %v1253 = vsel %vm582, %v1169, 0
        %v1256 = vsel %vm582, %v1170, 0
        %v1259 = vsel %vm582, %v1171, 0
        %v1262 = vsel %vm582, %v1172, 0
        %v1265 = vsel %vm582, %v1173, 0
        %v1268 = vsel %vm582, %v1174, 0
        %v1271 = vsel %vm582, %v1175, 0
        %1273 = vmatpush.msra.mxu0 0.0
        %1274 = vmatpush.msra.mxu0 0.0
        %1275 = vmatpush.msra.mxu0 0.0
        %1276 = vmatpush.msra.mxu0 0.0
        %1277 = vmatpush.msra.mxu0 0.0
        %1278 = vmatpush.msra.mxu0 0.0
        %1279 = vmatpush.msra.mxu0 0.0
        %1280 = vmatpush.msra.mxu0 0.0
        %1281 = vmatpush.msra.mxu0 0.0
        %1282 = vmatpush.msra.mxu0 0.0
        %1283 = vmatpush.msra.mxu0 0.0
        %1284 = vmatpush.msra.mxu0 0.0
        %1285 = vmatpush.msra.mxu0 0.0
        %1286 = vmatpush.msra.mxu0 0.0
        %1287 = vmatpush.msra.mxu0 0.0
        %1288 = vmatpush.msra.mxu0 %v1176
        %1289 = vmatmul.f32.gmra.mxu0 %v1178
        %v1290 = vpop.f32.mrf.mxu0
        %v1291 = vadd.f32 0.0, %v1290
        %1292 = vmatmul.f32.gmra.mxu0 %v1181
        %v1293 = vpop.f32.mrf.mxu0
        %v1294 = vadd.f32 0.0, %v1293
        %1295 = vmatmul.f32.gmra.mxu0 %v1184
        %v1296 = vpop.f32.mrf.mxu0
        %v1297 = vadd.f32 0.0, %v1296
        %1298 = vmatmul.f32.gmra.mxu0 %v1187
        %v1299 = vpop.f32.mrf.mxu0
        %v1300 = vadd.f32 0.0, %v1299
        %1301 = vmatmul.f32.gmra.mxu0 %v1190
        %v1302 = vpop.f32.mrf.mxu0
        %v1303 = vadd.f32 0.0, %v1302
        %1304 = vmatmul.f32.gmra.mxu0 %v1193
        %v1305 = vpop.f32.mrf.mxu0
        %v1306 = vadd.f32 0.0, %v1305
        %1307 = vmatmul.f32.gmra.mxu0 %v1196
        %v1308 = vpop.f32.mrf.mxu0
        %v1309 = vadd.f32 0.0, %v1308
        %1310 = vmatmul.f32.gmra.mxu0 %v1199
        %v1311 = vpop.f32.mrf.mxu0
        %v1312 = vadd.f32 0.0, %v1311
        %1313 = vmatmul.f32.gmra.mxu0 %v1202
        %v1314 = vpop.f32.mrf.mxu0
        %v1315 = vadd.f32 0.0, %v1314
        %1316 = vmatmul.f32.gmra.mxu0 %v1205
        %v1317 = vpop.f32.mrf.mxu0
        %v1318 = vadd.f32 0.0, %v1317
        %1319 = vmatmul.f32.gmra.mxu0 %v1208
        %v1320 = vpop.f32.mrf.mxu0
        %v1321 = vadd.f32 0.0, %v1320
        %1322 = vmatmul.f32.gmra.mxu0 %v1211
        %v1323 = vpop.f32.mrf.mxu0
        %v1324 = vadd.f32 0.0, %v1323
        %1325 = vmatmul.f32.gmra.mxu0 %v1214
        %v1326 = vpop.f32.mrf.mxu0
        %v1327 = vadd.f32 0.0, %v1326
        %1328 = vmatmul.f32.gmra.mxu0 %v1217
        %v1329 = vpop.f32.mrf.mxu0
        %v1330 = vadd.f32 0.0, %v1329
        %1331 = vmatmul.f32.gmra.mxu0 %v1220
        %v1332 = vpop.f32.mrf.mxu0
        %v1333 = vadd.f32 0.0, %v1332
        %1334 = vmatmul.f32.gmra.mxu0 %v1223
        %v1335 = vpop.f32.mrf.mxu0
        %v1336 = vadd.f32 0.0, %v1335
        %1337 = vmatmul.f32.gmra.mxu0 %v1226
        %v1338 = vpop.f32.mrf.mxu0
        %v1339 = vadd.f32 0.0, %v1338
        %1340 = vmatmul.f32.gmra.mxu0 %v1229
        %v1341 = vpop.f32.mrf.mxu0
        %v1342 = vadd.f32 0.0, %v1341
        %1343 = vmatmul.f32.gmra.mxu0 %v1232
        %v1344 = vpop.f32.mrf.mxu0
        %v1345 = vadd.f32 0.0, %v1344
        %1346 = vmatmul.f32.gmra.mxu0 %v1235
        %v1347 = vpop.f32.mrf.mxu0
        %v1348 = vadd.f32 0.0, %v1347
        %1349 = vmatmul.f32.gmra.mxu0 %v1238
        %v1350 = vpop.f32.mrf.mxu0
        %v1351 = vadd.f32 0.0, %v1350
        %1352 = vmatmul.f32.gmra.mxu0 %v1241
        %v1353 = vpop.f32.mrf.mxu0
        %v1354 = vadd.f32 0.0, %v1353
        %1355 = vmatmul.f32.gmra.mxu0 %v1244
        %v1356 = vpop.f32.mrf.mxu0
        %v1357 = vadd.f32 0.0, %v1356
        %1358 = vmatmul.f32.gmra.mxu0 %v1247
        %v1359 = vpop.f32.mrf.mxu0
        %v1360 = vadd.f32 0.0, %v1359
        %1361 = vmatmul.f32.gmra.mxu0 %v1250
        %v1362 = vpop.f32.mrf.mxu0
        %v1363 = vadd.f32 0.0, %v1362
        %1364 = vmatmul.f32.gmra.mxu0 %v1253
        %v1365 = vpop.f32.mrf.mxu0
        %v1366 = vadd.f32 0.0, %v1365
        %1367 = vmatmul.f32.gmra.mxu0 %v1256
        %v1368 = vpop.f32.mrf.mxu0
        %v1369 = vadd.f32 0.0, %v1368
        %1370 = vmatmul.f32.gmra.mxu0 %v1259
        %v1371 = vpop.f32.mrf.mxu0
        %v1372 = vadd.f32 0.0, %v1371
        %1373 = vmatmul.f32.gmra.mxu0 %v1262
        %v1374 = vpop.f32.mrf.mxu0
        %v1375 = vadd.f32 0.0, %v1374
        %1376 = vmatmul.f32.gmra.mxu0 %v1265
        %v1377 = vpop.f32.mrf.mxu0
        %v1378 = vadd.f32 0.0, %v1377
        %1379 = vmatmul.f32.gmra.mxu0 %v1268
        %v1380 = vpop.f32.mrf.mxu0
        %v1381 = vadd.f32 0.0, %v1380
        %1382 = vmatmul.f32.gmra.mxu0 %v1271
        %v1383 = vpop.f32.mrf.mxu0
        %v1384 = vadd.f32 0.0, %v1383
        %1385 = vdwg.mxu0
        %v1386 = vadd.f32 %v1049, %v1291
        %v1387 = vadd.f32 %v1052, %v1294
        %v1388 = vadd.f32 %v1055, %v1297
        %v1389 = vadd.f32 %v1058, %v1300
        %v1390 = vadd.f32 %v1061, %v1303
        %v1391 = vadd.f32 %v1064, %v1306
        %v1392 = vadd.f32 %v1067, %v1309
        %v1393 = vadd.f32 %v1070, %v1312
        %v1394 = vadd.f32 %v1073, %v1315
        %v1395 = vadd.f32 %v1076, %v1318
        %v1396 = vadd.f32 %v1079, %v1321
        %v1397 = vadd.f32 %v1082, %v1324
        %v1398 = vadd.f32 %v1085, %v1327
        %v1399 = vadd.f32 %v1088, %v1330
        %v1400 = vadd.f32 %v1091, %v1333
        %v1401 = vadd.f32 %v1094, %v1336
        %v1402 = vadd.f32 %v1097, %v1339
        %v1403 = vadd.f32 %v1100, %v1342
        %v1404 = vadd.f32 %v1103, %v1345
        %v1405 = vadd.f32 %v1106, %v1348
        %v1406 = vadd.f32 %v1109, %v1351
        %v1407 = vadd.f32 %v1112, %v1354
        %v1408 = vadd.f32 %v1115, %v1357
        %v1409 = vadd.f32 %v1118, %v1360
        %v1410 = vadd.f32 %v1121, %v1363
        %v1411 = vadd.f32 %v1124, %v1366
        %v1412 = vadd.f32 %v1127, %v1369
        %v1413 = vadd.f32 %v1130, %v1372
        %v1414 = vadd.f32 %v1133, %v1375
        %v1415 = vadd.f32 %v1136, %v1378
        %v1416 = vadd.f32 %v1139, %v1381
        %v1417 = vadd.f32 %v1142, %v1384
        %v1418 = vld [vmem:[%s581] sm:$0xff]
        %v1419 = vld [vmem:[%s581 + $0x8] sm:$0xff]
        %v1420 = vld [vmem:[%s581 + $0x18] sm:$0xff]
        %v1421 = vld [vmem:[%s581 + $0x20] sm:$0xff]
        %v1422 = vld [vmem:[%s581 + $0x30] sm:$0xff]
        %v1423 = vld [vmem:[%s581 + $0x38] sm:$0xff]
        %v1424 = vld [vmem:[%s581 + $0x48] sm:$0xff]
        %v1425 = vld [vmem:[%s581 + $0x50] sm:$0xff]
        %v1426 = vld [vmem:[%s581 + $0x60] sm:$0xff]
        %v1427 = vld [vmem:[%s581 + $0x68] sm:$0xff]
        %v1428 = vld [vmem:[%s581 + $0x78] sm:$0xff]
        %v1429 = vld [vmem:[%s581 + $0x80] sm:$0xff]
        %v1430 = vld [vmem:[%s581 + $0x90] sm:$0xff]
        %v1431 = vld [vmem:[%s581 + $0x98] sm:$0xff]
        %v1432 = vld [vmem:[%s581 + $0xa8] sm:$0xff]
        %v1433 = vld [vmem:[%s581 + $0xb0] sm:$0xff]
        %v1434 = vld [vmem:[%s581 + $0xc0] sm:$0xff]
        %v1435 = vld [vmem:[%s581 + $0xc8] sm:$0xff]
        %v1436 = vld [vmem:[%s581 + $0xd8] sm:$0xff]
        %v1437 = vld [vmem:[%s581 + $0xe0] sm:$0xff]
        %v1438 = vld [vmem:[%s581 + $0xf0] sm:$0xff]
        %v1439 = vld [vmem:[%s581 + $0xf8] sm:$0xff]
        %v1440 = vld [vmem:[%s581 + $0x108] sm:$0xff]
        %v1441 = vld [vmem:[%s581 + $0x110] sm:$0xff]
        %v1442 = vld [vmem:[%s581 + $0x120] sm:$0xff]
        %v1443 = vld [vmem:[%s581 + $0x128] sm:$0xff]
        %v1444 = vld [vmem:[%s581 + $0x138] sm:$0xff]
        %v1445 = vld [vmem:[%s581 + $0x140] sm:$0xff]
        %v1446 = vld [vmem:[%s581 + $0x150] sm:$0xff]
        %v1447 = vld [vmem:[%s581 + $0x158] sm:$0xff]
        %v1448 = vld [vmem:[%s581 + $0x168] sm:$0xff]
        %v1449 = vld [vmem:[%s581 + $0x170] sm:$0xff]
        %v1450 = vld [vmem:[%s3 + $0x18] sm:$0xff]
        %v1452 = vsel %vm582, %v1418, 0
        %v1455 = vsel %vm582, %v1419, 0
        %v1458 = vsel %vm582, %v1420, 0
        %v1461 = vsel %vm582, %v1421, 0
        %v1464 = vsel %vm582, %v1422, 0
        %v1467 = vsel %vm582, %v1423, 0
        %v1470 = vsel %vm582, %v1424, 0
        %v1473 = vsel %vm582, %v1425, 0
        %v1476 = vsel %vm582, %v1426, 0
        %v1479 = vsel %vm582, %v1427, 0
        %v1482 = vsel %vm582, %v1428, 0
        %v1485 = vsel %vm582, %v1429, 0
        %v1488 = vsel %vm582, %v1430, 0
        %v1491 = vsel %vm582, %v1431, 0
        %v1494 = vsel %vm582, %v1432, 0
        %v1497 = vsel %vm582, %v1433, 0
        %v1500 = vsel %vm582, %v1434, 0
        %v1503 = vsel %vm582, %v1435, 0
        %v1506 = vsel %vm582, %v1436, 0
        %v1509 = vsel %vm582, %v1437, 0
        %v1512 = vsel %vm582, %v1438, 0
        %v1515 = vsel %vm582, %v1439, 0
        %v1518 = vsel %vm582, %v1440, 0
        %v1521 = vsel %vm582, %v1441, 0
        %v1524 = vsel %vm582, %v1442, 0
        %v1527 = vsel %vm582, %v1443, 0
        %v1530 = vsel %vm582, %v1444, 0
        %v1533 = vsel %vm582, %v1445, 0
        %v1536 = vsel %vm582, %v1446, 0
        %v1539 = vsel %vm582, %v1447, 0
        %v1542 = vsel %vm582, %v1448, 0
        %v1545 = vsel %vm582, %v1449, 0
        %1547 = vmatpush.msra.mxu0 0.0
        %1548 = vmatpush.msra.mxu0 0.0
        %1549 = vmatpush.msra.mxu0 0.0
        %1550 = vmatpush.msra.mxu0 0.0
        %1551 = vmatpush.msra.mxu0 0.0
        %1552 = vmatpush.msra.mxu0 0.0
        %1553 = vmatpush.msra.mxu0 0.0
        %1554 = vmatpush.msra.mxu0 0.0
        %1555 = vmatpush.msra.mxu0 0.0
        %1556 = vmatpush.msra.mxu0 0.0
        %1557 = vmatpush.msra.mxu0 0.0
        %1558 = vmatpush.msra.mxu0 0.0
        %1559 = vmatpush.msra.mxu0 0.0
        %1560 = vmatpush.msra.mxu0 0.0
        %1561 = vmatpush.msra.mxu0 0.0
        %1562 = vmatpush.msra.mxu0 %v1450
        %1563 = vmatmul.f32.gmra.mxu0 %v1452
        %v1564 = vpop.f32.mrf.mxu0
        %v1565 = vadd.f32 0.0, %v1564
        %1566 = vmatmul.f32.gmra.mxu0 %v1455
        %v1567 = vpop.f32.mrf.mxu0
        %v1568 = vadd.f32 0.0, %v1567
        %1569 = vmatmul.f32.gmra.mxu0 %v1458
        %v1570 = vpop.f32.mrf.mxu0
        %v1571 = vadd.f32 0.0, %v1570
        %1572 = vmatmul.f32.gmra.mxu0 %v1461
        %v1573 = vpop.f32.mrf.mxu0
        %v1574 = vadd.f32 0.0, %v1573
        %1575 = vmatmul.f32.gmra.mxu0 %v1464
        %v1576 = vpop.f32.mrf.mxu0
        %v1577 = vadd.f32 0.0, %v1576
        %1578 = vmatmul.f32.gmra.mxu0 %v1467
        %v1579 = vpop.f32.mrf.mxu0
        %v1580 = vadd.f32 0.0, %v1579
        %1581 = vmatmul.f32.gmra.mxu0 %v1470
        %v1582 = vpop.f32.mrf.mxu0
        %v1583 = vadd.f32 0.0, %v1582
        %1584 = vmatmul.f32.gmra.mxu0 %v1473
        %v1585 = vpop.f32.mrf.mxu0
        %v1586 = vadd.f32 0.0, %v1585
        %1587 = vmatmul.f32.gmra.mxu0 %v1476
        %v1588 = vpop.f32.mrf.mxu0
        %v1589 = vadd.f32 0.0, %v1588
        %1590 = vmatmul.f32.gmra.mxu0 %v1479
        %v1591 = vpop.f32.mrf.mxu0
        %v1592 = vadd.f32 0.0, %v1591
        %1593 = vmatmul.f32.gmra.mxu0 %v1482
        %v1594 = vpop.f32.mrf.mxu0
        %v1595 = vadd.f32 0.0, %v1594
        %1596 = vmatmul.f32.gmra.mxu0 %v1485
        %v1597 = vpop.f32.mrf.mxu0
        %v1598 = vadd.f32 0.0, %v1597
        %1599 = vmatmul.f32.gmra.mxu0 %v1488
        %v1600 = vpop.f32.mrf.mxu0
        %v1601 = vadd.f32 0.0, %v1600
        %1602 = vmatmul.f32.gmra.mxu0 %v1491
        %v1603 = vpop.f32.mrf.mxu0
        %v1604 = vadd.f32 0.0, %v1603
        %1605 = vmatmul.f32.gmra.mxu0 %v1494
        %v1606 = vpop.f32.mrf.mxu0
        %v1607 = vadd.f32 0.0, %v1606
        %1608 = vmatmul.f32.gmra.mxu0 %v1497
        %v1609 = vpop.f32.mrf.mxu0
        %v1610 = vadd.f32 0.0, %v1609
        %1611 = vmatmul.f32.gmra.mxu0 %v1500
        %v1612 = vpop.f32.mrf.mxu0
        %v1613 = vadd.f32 0.0, %v1612
        %1614 = vmatmul.f32.gmra.mxu0 %v1503
        %v1615 = vpop.f32.mrf.mxu0
        %v1616 = vadd.f32 0.0, %v1615
        %1617 = vmatmul.f32.gmra.mxu0 %v1506
        %v1618 = vpop.f32.mrf.mxu0
        %v1619 = vadd.f32 0.0, %v1618
        %1620 = vmatmul.f32.gmra.mxu0 %v1509
        %v1621 = vpop.f32.mrf.mxu0
        %v1622 = vadd.f32 0.0, %v1621
        %1623 = vmatmul.f32.gmra.mxu0 %v1512
        %v1624 = vpop.f32.mrf.mxu0
        %v1625 = vadd.f32 0.0, %v1624
        %1626 = vmatmul.f32.gmra.mxu0 %v1515
        %v1627 = vpop.f32.mrf.mxu0
        %v1628 = vadd.f32 0.0, %v1627
        %1629 = vmatmul.f32.gmra.mxu0 %v1518
        %v1630 = vpop.f32.mrf.mxu0
        %v1631 = vadd.f32 0.0, %v1630
        %1632 = vmatmul.f32.gmra.mxu0 %v1521
        %v1633 = vpop.f32.mrf.mxu0
        %v1634 = vadd.f32 0.0, %v1633
        %1635 = vmatmul.f32.gmra.mxu0 %v1524
        %v1636 = vpop.f32.mrf.mxu0
        %v1637 = vadd.f32 0.0, %v1636
        %1638 = vmatmul.f32.gmra.mxu0 %v1527
        %v1639 = vpop.f32.mrf.mxu0
        %v1640 = vadd.f32 0.0, %v1639
        %1641 = vmatmul.f32.gmra.mxu0 %v1530
        %v1642 = vpop.f32.mrf.mxu0
        %v1643 = vadd.f32 0.0, %v1642
        %1644 = vmatmul.f32.gmra.mxu0 %v1533
        %v1645 = vpop.f32.mrf.mxu0
        %v1646 = vadd.f32 0.0, %v1645
        %1647 = vmatmul.f32.gmra.mxu0 %v1536
        %v1648 = vpop.f32.mrf.mxu0
        %v1649 = vadd.f32 0.0, %v1648
        %1650 = vmatmul.f32.gmra.mxu0 %v1539
        %v1651 = vpop.f32.mrf.mxu0
        %v1652 = vadd.f32 0.0, %v1651
        %1653 = vmatmul.f32.gmra.mxu0 %v1542
        %v1654 = vpop.f32.mrf.mxu0
        %v1655 = vadd.f32 0.0, %v1654
        %1656 = vmatmul.f32.gmra.mxu0 %v1545
        %v1657 = vpop.f32.mrf.mxu0
        %v1658 = vadd.f32 0.0, %v1657
        %1659 = vdwg.mxu0
        %v1660 = vadd.f32 %v1386, %v1565
        %v1661 = vadd.f32 %v1387, %v1568
        %v1662 = vadd.f32 %v1388, %v1571
        %v1663 = vadd.f32 %v1389, %v1574
        %v1664 = vadd.f32 %v1390, %v1577
        %v1665 = vadd.f32 %v1391, %v1580
        %v1666 = vadd.f32 %v1392, %v1583
        %v1667 = vadd.f32 %v1393, %v1586
        %v1668 = vadd.f32 %v1394, %v1589
        %v1669 = vadd.f32 %v1395, %v1592
        %v1670 = vadd.f32 %v1396, %v1595
        %v1671 = vadd.f32 %v1397, %v1598
        %v1672 = vadd.f32 %v1398, %v1601
        %v1673 = vadd.f32 %v1399, %v1604
        %v1674 = vadd.f32 %v1400, %v1607
        %v1675 = vadd.f32 %v1401, %v1610
        %v1676 = vadd.f32 %v1402, %v1613
        %v1677 = vadd.f32 %v1403, %v1616
        %v1678 = vadd.f32 %v1404, %v1619
        %v1679 = vadd.f32 %v1405, %v1622
        %v1680 = vadd.f32 %v1406, %v1625
        %v1681 = vadd.f32 %v1407, %v1628
        %v1682 = vadd.f32 %v1408, %v1631
        %v1683 = vadd.f32 %v1409, %v1634
        %v1684 = vadd.f32 %v1410, %v1637
        %v1685 = vadd.f32 %v1411, %v1640
        %v1686 = vadd.f32 %v1412, %v1643
        %v1687 = vadd.f32 %v1413, %v1646
        %v1688 = vadd.f32 %v1414, %v1649
        %v1689 = vadd.f32 %v1415, %v1652
        %v1690 = vadd.f32 %v1416, %v1655
        %v1691 = vadd.f32 %v1417, %v1658
        %v1692 = vld [vmem:[%s581 + $0x1] sm:$0xff]
        %v1693 = vld [vmem:[%s581 + $0x9] sm:$0xff]
        %v1694 = vld [vmem:[%s581 + $0x19] sm:$0xff]
        %v1695 = vld [vmem:[%s581 + $0x21] sm:$0xff]
        %v1696 = vld [vmem:[%s581 + $0x31] sm:$0xff]
        %v1697 = vld [vmem:[%s581 + $0x39] sm:$0xff]
        %v1698 = vld [vmem:[%s581 + $0x49] sm:$0xff]
        %v1699 = vld [vmem:[%s581 + $0x51] sm:$0xff]
        %v1700 = vld [vmem:[%s581 + $0x61] sm:$0xff]
        %v1701 = vld [vmem:[%s581 + $0x69] sm:$0xff]
        %v1702 = vld [vmem:[%s581 + $0x79] sm:$0xff]
        %v1703 = vld [vmem:[%s581 + $0x81] sm:$0xff]
        %v1704 = vld [vmem:[%s581 + $0x91] sm:$0xff]
        %v1705 = vld [vmem:[%s581 + $0x99] sm:$0xff]
        %v1706 = vld [vmem:[%s581 + $0xa9] sm:$0xff]
        %v1707 = vld [vmem:[%s581 + $0xb1] sm:$0xff]
        %v1708 = vld [vmem:[%s581 + $0xc1] sm:$0xff]
        %v1709 = vld [vmem:[%s581 + $0xc9] sm:$0xff]
        %v1710 = vld [vmem:[%s581 + $0xd9] sm:$0xff]
        %v1711 = vld [vmem:[%s581 + $0xe1] sm:$0xff]
        %v1712 = vld [vmem:[%s581 + $0xf1] sm:$0xff]
        %v1713 = vld [vmem:[%s581 + $0xf9] sm:$0xff]
        %v1714 = vld [vmem:[%s581 + $0x109] sm:$0xff]
        %v1715 = vld [vmem:[%s581 + $0x111] sm:$0xff]
        %v1716 = vld [vmem:[%s581 + $0x121] sm:$0xff]
        %v1717 = vld [vmem:[%s581 + $0x129] sm:$0xff]
        %v1718 = vld [vmem:[%s581 + $0x139] sm:$0xff]
        %v1719 = vld [vmem:[%s581 + $0x141] sm:$0xff]
        %v1720 = vld [vmem:[%s581 + $0x151] sm:$0xff]
        %v1721 = vld [vmem:[%s581 + $0x159] sm:$0xff]
        %v1722 = vld [vmem:[%s581 + $0x169] sm:$0xff]
        %v1723 = vld [vmem:[%s581 + $0x171] sm:$0xff]
        %v1724 = vld [vmem:[%s3 + $0x20] sm:$0xff]
        %v1726 = vsel %vm582, %v1692, 0
        %v1729 = vsel %vm582, %v1693, 0
        %v1732 = vsel %vm582, %v1694, 0
        %v1735 = vsel %vm582, %v1695, 0
        %v1738 = vsel %vm582, %v1696, 0
        %v1741 = vsel %vm582, %v1697, 0
        %v1744 = vsel %vm582, %v1698, 0
        %v1747 = vsel %vm582, %v1699, 0
        %v1750 = vsel %vm582, %v1700, 0
        %v1753 = vsel %vm582, %v1701, 0
        %v1756 = vsel %vm582, %v1702, 0
        %v1759 = vsel %vm582, %v1703, 0
        %v1762 = vsel %vm582, %v1704, 0
        %v1765 = vsel %vm582, %v1705, 0
        %v1768 = vsel %vm582, %v1706, 0
        %v1771 = vsel %vm582, %v1707, 0
        %v1774 = vsel %vm582, %v1708, 0
        %v1777 = vsel %vm582, %v1709, 0
        %v1780 = vsel %vm582, %v1710, 0
        %v1783 = vsel %vm582, %v1711, 0
        %v1786 = vsel %vm582, %v1712, 0
        %v1789 = vsel %vm582, %v1713, 0
        %v1792 = vsel %vm582, %v1714, 0
        %v1795 = vsel %vm582, %v1715, 0
        %v1798 = vsel %vm582, %v1716, 0
        %v1801 = vsel %vm582, %v1717, 0
        %v1804 = vsel %vm582, %v1718, 0
        %v1807 = vsel %vm582, %v1719, 0
        %v1810 = vsel %vm582, %v1720, 0
        %v1813 = vsel %vm582, %v1721, 0
        %v1816 = vsel %vm582, %v1722, 0
        %v1819 = vsel %vm582, %v1723, 0
        %1821 = vmatpush.msra.mxu0 0.0
        %1822 = vmatpush.msra.mxu0 0.0
        %1823 = vmatpush.msra.mxu0 0.0
        %1824 = vmatpush.msra.mxu0 0.0
        %1825 = vmatpush.msra.mxu0 0.0
        %1826 = vmatpush.msra.mxu0 0.0
        %1827 = vmatpush.msra.mxu0 0.0
        %1828 = vmatpush.msra.mxu0 0.0
        %1829 = vmatpush.msra.mxu0 0.0
        %1830 = vmatpush.msra.mxu0 0.0
        %1831 = vmatpush.msra.mxu0 0.0
        %1832 = vmatpush.msra.mxu0 0.0
        %1833 = vmatpush.msra.mxu0 0.0
        %1834 = vmatpush.msra.mxu0 0.0
        %1835 = vmatpush.msra.mxu0 0.0
        %1836 = vmatpush.msra.mxu0 %v1724
        %1837 = vmatmul.f32.gmra.mxu0 %v1726
        %v1838 = vpop.f32.mrf.mxu0
        %v1839 = vadd.f32 0.0, %v1838
        %1840 = vmatmul.f32.gmra.mxu0 %v1729
        %v1841 = vpop.f32.mrf.mxu0
        %v1842 = vadd.f32 0.0, %v1841
        %1843 = vmatmul.f32.gmra.mxu0 %v1732
        %v1844 = vpop.f32.mrf.mxu0
        %v1845 = vadd.f32 0.0, %v1844
        %1846 = vmatmul.f32.gmra.mxu0 %v1735
        %v1847 = vpop.f32.mrf.mxu0
        %v1848 = vadd.f32 0.0, %v1847
        %1849 = vmatmul.f32.gmra.mxu0 %v1738
        %v1850 = vpop.f32.mrf.mxu0
        %v1851 = vadd.f32 0.0, %v1850
        %1852 = vmatmul.f32.gmra.mxu0 %v1741
        %v1853 = vpop.f32.mrf.mxu0
        %v1854 = vadd.f32 0.0, %v1853
        %1855 = vmatmul.f32.gmra.mxu0 %v1744
        %v1856 = vpop.f32.mrf.mxu0
        %v1857 = vadd.f32 0.0, %v1856
        %1858 = vmatmul.f32.gmra.mxu0 %v1747
        %v1859 = vpop.f32.mrf.mxu0
        %v1860 = vadd.f32 0.0, %v1859
        %1861 = vmatmul.f32.gmra.mxu0 %v1750
        %v1862 = vpop.f32.mrf.mxu0
        %v1863 = vadd.f32 0.0, %v1862
        %1864 = vmatmul.f32.gmra.mxu0 %v1753
        %v1865 = vpop.f32.mrf.mxu0
        %v1866 = vadd.f32 0.0, %v1865
        %1867 = vmatmul.f32.gmra.mxu0 %v1756
        %v1868 = vpop.f32.mrf.mxu0
        %v1869 = vadd.f32 0.0, %v1868
        %1870 = vmatmul.f32.gmra.mxu0 %v1759
        %v1871 = vpop.f32.mrf.mxu0
        %v1872 = vadd.f32 0.0, %v1871
        %1873 = vmatmul.f32.gmra.mxu0 %v1762
        %v1874 = vpop.f32.mrf.mxu0
        %v1875 = vadd.f32 0.0, %v1874
        %1876 = vmatmul.f32.gmra.mxu0 %v1765
        %v1877 = vpop.f32.mrf.mxu0
        %v1878 = vadd.f32 0.0, %v1877
        %1879 = vmatmul.f32.gmra.mxu0 %v1768
        %v1880 = vpop.f32.mrf.mxu0
        %v1881 = vadd.f32 0.0, %v1880
        %1882 = vmatmul.f32.gmra.mxu0 %v1771
        %v1883 = vpop.f32.mrf.mxu0
        %v1884 = vadd.f32 0.0, %v1883
        %1885 = vmatmul.f32.gmra.mxu0 %v1774
        %v1886 = vpop.f32.mrf.mxu0
        %v1887 = vadd.f32 0.0, %v1886
        %1888 = vmatmul.f32.gmra.mxu0 %v1777
        %v1889 = vpop.f32.mrf.mxu0
        %v1890 = vadd.f32 0.0, %v1889
        %1891 = vmatmul.f32.gmra.mxu0 %v1780
        %v1892 = vpop.f32.mrf.mxu0
        %v1893 = vadd.f32 0.0, %v1892
        %1894 = vmatmul.f32.gmra.mxu0 %v1783
        %v1895 = vpop.f32.mrf.mxu0
        %v1896 = vadd.f32 0.0, %v1895
        %1897 = vmatmul.f32.gmra.mxu0 %v1786
        %v1898 = vpop.f32.mrf.mxu0
        %v1899 = vadd.f32 0.0, %v1898
        %1900 = vmatmul.f32.gmra.mxu0 %v1789
        %v1901 = vpop.f32.mrf.mxu0
        %v1902 = vadd.f32 0.0, %v1901
        %1903 = vmatmul.f32.gmra.mxu0 %v1792
        %v1904 = vpop.f32.mrf.mxu0
        %v1905 = vadd.f32 0.0, %v1904
        %1906 = vmatmul.f32.gmra.mxu0 %v1795
        %v1907 = vpop.f32.mrf.mxu0
        %v1908 = vadd.f32 0.0, %v1907
        %1909 = vmatmul.f32.gmra.mxu0 %v1798
        %v1910 = vpop.f32.mrf.mxu0
        %v1911 = vadd.f32 0.0, %v1910
        %1912 = vmatmul.f32.gmra.mxu0 %v1801
        %v1913 = vpop.f32.mrf.mxu0
        %v1914 = vadd.f32 0.0, %v1913
        %1915 = vmatmul.f32.gmra.mxu0 %v1804
        %v1916 = vpop.f32.mrf.mxu0
        %v1917 = vadd.f32 0.0, %v1916
        %1918 = vmatmul.f32.gmra.mxu0 %v1807
        %v1919 = vpop.f32.mrf.mxu0
        %v1920 = vadd.f32 0.0, %v1919
        %1921 = vmatmul.f32.gmra.mxu0 %v1810
        %v1922 = vpop.f32.mrf.mxu0
        %v1923 = vadd.f32 0.0, %v1922
        %1924 = vmatmul.f32.gmra.mxu0 %v1813
        %v1925 = vpop.f32.mrf.mxu0
        %v1926 = vadd.f32 0.0, %v1925
        %1927 = vmatmul.f32.gmra.mxu0 %v1816
        %v1928 = vpop.f32.mrf.mxu0
        %v1929 = vadd.f32 0.0, %v1928
        %1930 = vmatmul.f32.gmra.mxu0 %v1819
        %v1931 = vpop.f32.mrf.mxu0
        %v1932 = vadd.f32 0.0, %v1931
        %1933 = vdwg.mxu0
        %v1934 = vadd.f32 %v1660, %v1839
        %v1935 = vadd.f32 %v1661, %v1842
        %v1936 = vadd.f32 %v1662, %v1845
        %v1937 = vadd.f32 %v1663, %v1848
        %v1938 = vadd.f32 %v1664, %v1851
        %v1939 = vadd.f32 %v1665, %v1854
        %v1940 = vadd.f32 %v1666, %v1857
        %v1941 = vadd.f32 %v1667, %v1860
        %v1942 = vadd.f32 %v1668, %v1863
        %v1943 = vadd.f32 %v1669, %v1866
        %v1944 = vadd.f32 %v1670, %v1869
        %v1945 = vadd.f32 %v1671, %v1872
        %v1946 = vadd.f32 %v1672, %v1875
        %v1947 = vadd.f32 %v1673, %v1878
        %v1948 = vadd.f32 %v1674, %v1881
        %v1949 = vadd.f32 %v1675, %v1884
        %v1950 = vadd.f32 %v1676, %v1887
        %v1951 = vadd.f32 %v1677, %v1890
        %v1952 = vadd.f32 %v1678, %v1893
        %v1953 = vadd.f32 %v1679, %v1896
        %v1954 = vadd.f32 %v1680, %v1899
        %v1955 = vadd.f32 %v1681, %v1902
        %v1956 = vadd.f32 %v1682, %v1905
        %v1957 = vadd.f32 %v1683, %v1908
        %v1958 = vadd.f32 %v1684, %v1911
        %v1959 = vadd.f32 %v1685, %v1914
        %v1960 = vadd.f32 %v1686, %v1917
        %v1961 = vadd.f32 %v1687, %v1920
        %v1962 = vadd.f32 %v1688, %v1923
        %v1963 = vadd.f32 %v1689, %v1926
        %v1964 = vadd.f32 %v1690, %v1929
        %v1965 = vadd.f32 %v1691, %v1932
        %v1966 = vld [vmem:[%s581 + $0x2] sm:$0xff]
        %v1967 = vld [vmem:[%s581 + $0xa] sm:$0xff]
        %v1968 = vld [vmem:[%s581 + $0x1a] sm:$0xff]
        %v1969 = vld [vmem:[%s581 + $0x22] sm:$0xff]
        %v1970 = vld [vmem:[%s581 + $0x32] sm:$0xff]
        %v1971 = vld [vmem:[%s581 + $0x3a] sm:$0xff]
        %v1972 = vld [vmem:[%s581 + $0x4a] sm:$0xff]
        %v1973 = vld [vmem:[%s581 + $0x52] sm:$0xff]
        %v1974 = vld [vmem:[%s581 + $0x62] sm:$0xff]
        %v1975 = vld [vmem:[%s581 + $0x6a] sm:$0xff]
        %v1976 = vld [vmem:[%s581 + $0x7a] sm:$0xff]
        %v1977 = vld [vmem:[%s581 + $0x82] sm:$0xff]
        %v1978 = vld [vmem:[%s581 + $0x92] sm:$0xff]
        %v1979 = vld [vmem:[%s581 + $0x9a] sm:$0xff]
        %v1980 = vld [vmem:[%s581 + $0xaa] sm:$0xff]
        %v1981 = vld [vmem:[%s581 + $0xb2] sm:$0xff]
        %v1982 = vld [vmem:[%s581 + $0xc2] sm:$0xff]
        %v1983 = vld [vmem:[%s581 + $0xca] sm:$0xff]
        %v1984 = vld [vmem:[%s581 + $0xda] sm:$0xff]
        %v1985 = vld [vmem:[%s581 + $0xe2] sm:$0xff]
        %v1986 = vld [vmem:[%s581 + $0xf2] sm:$0xff]
        %v1987 = vld [vmem:[%s581 + $0xfa] sm:$0xff]
        %v1988 = vld [vmem:[%s581 + $0x10a] sm:$0xff]
        %v1989 = vld [vmem:[%s581 + $0x112] sm:$0xff]
        %v1990 = vld [vmem:[%s581 + $0x122] sm:$0xff]
        %v1991 = vld [vmem:[%s581 + $0x12a] sm:$0xff]
        %v1992 = vld [vmem:[%s581 + $0x13a] sm:$0xff]
        %v1993 = vld [vmem:[%s581 + $0x142] sm:$0xff]
        %v1994 = vld [vmem:[%s581 + $0x152] sm:$0xff]
        %v1995 = vld [vmem:[%s581 + $0x15a] sm:$0xff]
        %v1996 = vld [vmem:[%s581 + $0x16a] sm:$0xff]
        %v1997 = vld [vmem:[%s581 + $0x172] sm:$0xff]
        %v1998 = vld [vmem:[%s3 + $0x28] sm:$0xff]
        %v2000 = vsel %vm582, %v1966, 0
        %v2003 = vsel %vm582, %v1967, 0
        %v2006 = vsel %vm582, %v1968, 0
        %v2009 = vsel %vm582, %v1969, 0
        %v2012 = vsel %vm582, %v1970, 0
        %v2015 = vsel %vm582, %v1971, 0
        %v2018 = vsel %vm582, %v1972, 0
        %v2021 = vsel %vm582, %v1973, 0
        %v2024 = vsel %vm582, %v1974, 0
        %v2027 = vsel %vm582, %v1975, 0
        %v2030 = vsel %vm582, %v1976, 0
        %v2033 = vsel %vm582, %v1977, 0
        %v2036 = vsel %vm582, %v1978, 0
        %v2039 = vsel %vm582, %v1979, 0
        %v2042 = vsel %vm582, %v1980, 0
        %v2045 = vsel %vm582, %v1981, 0
        %v2048 = vsel %vm582, %v1982, 0
        %v2051 = vsel %vm582, %v1983, 0
        %v2054 = vsel %vm582, %v1984, 0
        %v2057 = vsel %vm582, %v1985, 0
        %v2060 = vsel %vm582, %v1986, 0
        %v2063 = vsel %vm582, %v1987, 0
        %v2066 = vsel %vm582, %v1988, 0
        %v2069 = vsel %vm582, %v1989, 0
        %v2072 = vsel %vm582, %v1990, 0
        %v2075 = vsel %vm582, %v1991, 0
        %v2078 = vsel %vm582, %v1992, 0
        %v2081 = vsel %vm582, %v1993, 0
        %v2084 = vsel %vm582, %v1994, 0
        %v2087 = vsel %vm582, %v1995, 0
        %v2090 = vsel %vm582, %v1996, 0
        %v2093 = vsel %vm582, %v1997, 0
        %2095 = vmatpush.msra.mxu0 0.0
        %2096 = vmatpush.msra.mxu0 0.0
        %2097 = vmatpush.msra.mxu0 0.0
        %2098 = vmatpush.msra.mxu0 0.0
        %2099 = vmatpush.msra.mxu0 0.0
        %2100 = vmatpush.msra.mxu0 0.0
        %2101 = vmatpush.msra.mxu0 0.0
        %2102 = vmatpush.msra.mxu0 0.0
        %2103 = vmatpush.msra.mxu0 0.0
        %2104 = vmatpush.msra.mxu0 0.0
        %2105 = vmatpush.msra.mxu0 0.0
        %2106 = vmatpush.msra.mxu0 0.0
        %2107 = vmatpush.msra.mxu0 0.0
        %2108 = vmatpush.msra.mxu0 0.0
        %2109 = vmatpush.msra.mxu0 0.0
        %2110 = vmatpush.msra.mxu0 %v1998
        %2111 = vmatmul.f32.gmra.mxu0 %v2000
        %v2112 = vpop.f32.mrf.mxu0
        %v2113 = vadd.f32 0.0, %v2112
        %2114 = vmatmul.f32.gmra.mxu0 %v2003
        %v2115 = vpop.f32.mrf.mxu0
        %v2116 = vadd.f32 0.0, %v2115
        %2117 = vmatmul.f32.gmra.mxu0 %v2006
        %v2118 = vpop.f32.mrf.mxu0
        %v2119 = vadd.f32 0.0, %v2118
        %2120 = vmatmul.f32.gmra.mxu0 %v2009
        %v2121 = vpop.f32.mrf.mxu0
        %v2122 = vadd.f32 0.0, %v2121
        %2123 = vmatmul.f32.gmra.mxu0 %v2012
        %v2124 = vpop.f32.mrf.mxu0
        %v2125 = vadd.f32 0.0, %v2124
        %2126 = vmatmul.f32.gmra.mxu0 %v2015
        %v2127 = vpop.f32.mrf.mxu0
        %v2128 = vadd.f32 0.0, %v2127
        %2129 = vmatmul.f32.gmra.mxu0 %v2018
        %v2130 = vpop.f32.mrf.mxu0
        %v2131 = vadd.f32 0.0, %v2130
        %2132 = vmatmul.f32.gmra.mxu0 %v2021
        %v2133 = vpop.f32.mrf.mxu0
        %v2134 = vadd.f32 0.0, %v2133
        %2135 = vmatmul.f32.gmra.mxu0 %v2024
        %v2136 = vpop.f32.mrf.mxu0
        %v2137 = vadd.f32 0.0, %v2136
        %2138 = vmatmul.f32.gmra.mxu0 %v2027
        %v2139 = vpop.f32.mrf.mxu0
        %v2140 = vadd.f32 0.0, %v2139
        %2141 = vmatmul.f32.gmra.mxu0 %v2030
        %v2142 = vpop.f32.mrf.mxu0
        %v2143 = vadd.f32 0.0, %v2142
        %2144 = vmatmul.f32.gmra.mxu0 %v2033
        %v2145 = vpop.f32.mrf.mxu0
        %v2146 = vadd.f32 0.0, %v2145
        %2147 = vmatmul.f32.gmra.mxu0 %v2036
        %v2148 = vpop.f32.mrf.mxu0
        %v2149 = vadd.f32 0.0, %v2148
        %2150 = vmatmul.f32.gmra.mxu0 %v2039
        %v2151 = vpop.f32.mrf.mxu0
        %v2152 = vadd.f32 0.0, %v2151
        %2153 = vmatmul.f32.gmra.mxu0 %v2042
        %v2154 = vpop.f32.mrf.mxu0
        %v2155 = vadd.f32 0.0, %v2154
        %2156 = vmatmul.f32.gmra.mxu0 %v2045
        %v2157 = vpop.f32.mrf.mxu0
        %v2158 = vadd.f32 0.0, %v2157
        %2159 = vmatmul.f32.gmra.mxu0 %v2048
        %v2160 = vpop.f32.mrf.mxu0
        %v2161 = vadd.f32 0.0, %v2160
        %2162 = vmatmul.f32.gmra.mxu0 %v2051
        %v2163 = vpop.f32.mrf.mxu0
        %v2164 = vadd.f32 0.0, %v2163
        %2165 = vmatmul.f32.gmra.mxu0 %v2054
        %v2166 = vpop.f32.mrf.mxu0
        %v2167 = vadd.f32 0.0, %v2166
        %2168 = vmatmul.f32.gmra.mxu0 %v2057
        %v2169 = vpop.f32.mrf.mxu0
        %v2170 = vadd.f32 0.0, %v2169
        %2171 = vmatmul.f32.gmra.mxu0 %v2060
        %v2172 = vpop.f32.mrf.mxu0
        %v2173 = vadd.f32 0.0, %v2172
        %2174 = vmatmul.f32.gmra.mxu0 %v2063
        %v2175 = vpop.f32.mrf.mxu0
        %v2176 = vadd.f32 0.0, %v2175
        %2177 = vmatmul.f32.gmra.mxu0 %v2066
        %v2178 = vpop.f32.mrf.mxu0
        %v2179 = vadd.f32 0.0, %v2178
        %2180 = vmatmul.f32.gmra.mxu0 %v2069
        %v2181 = vpop.f32.mrf.mxu0
        %v2182 = vadd.f32 0.0, %v2181
        %2183 = vmatmul.f32.gmra.mxu0 %v2072
        %v2184 = vpop.f32.mrf.mxu0
        %v2185 = vadd.f32 0.0, %v2184
        %2186 = vmatmul.f32.gmra.mxu0 %v2075
        %v2187 = vpop.f32.mrf.mxu0
        %v2188 = vadd.f32 0.0, %v2187
        %2189 = vmatmul.f32.gmra.mxu0 %v2078
        %v2190 = vpop.f32.mrf.mxu0
        %v2191 = vadd.f32 0.0, %v2190
        %2192 = vmatmul.f32.gmra.mxu0 %v2081
        %v2193 = vpop.f32.mrf.mxu0
        %v2194 = vadd.f32 0.0, %v2193
        %2195 = vmatmul.f32.gmra.mxu0 %v2084
        %v2196 = vpop.f32.mrf.mxu0
        %v2197 = vadd.f32 0.0, %v2196
        %2198 = vmatmul.f32.gmra.mxu0 %v2087
        %v2199 = vpop.f32.mrf.mxu0
        %v2200 = vadd.f32 0.0, %v2199
        %2201 = vmatmul.f32.gmra.mxu0 %v2090
        %v2202 = vpop.f32.mrf.mxu0
        %v2203 = vadd.f32 0.0, %v2202
        %2204 = vmatmul.f32.gmra.mxu0 %v2093
        %v2205 = vpop.f32.mrf.mxu0
        %v2206 = vadd.f32 0.0, %v2205
        %2207 = vdwg.mxu0
        %v2208 = vadd.f32 %v1934, %v2113
        %v2209 = vadd.f32 %v1935, %v2116
        %v2210 = vadd.f32 %v1936, %v2119
        %v2211 = vadd.f32 %v1937, %v2122
        %v2212 = vadd.f32 %v1938, %v2125
        %v2213 = vadd.f32 %v1939, %v2128
        %v2214 = vadd.f32 %v1940, %v2131
        %v2215 = vadd.f32 %v1941, %v2134
        %v2216 = vadd.f32 %v1942, %v2137
        %v2217 = vadd.f32 %v1943, %v2140
        %v2218 = vadd.f32 %v1944, %v2143
        %v2219 = vadd.f32 %v1945, %v2146
        %v2220 = vadd.f32 %v1946, %v2149
        %v2221 = vadd.f32 %v1947, %v2152
        %v2222 = vadd.f32 %v1948, %v2155
        %v2223 = vadd.f32 %v1949, %v2158
        %v2224 = vadd.f32 %v1950, %v2161
        %v2225 = vadd.f32 %v1951, %v2164
        %v2226 = vadd.f32 %v1952, %v2167
        %v2227 = vadd.f32 %v1953, %v2170
        %v2228 = vadd.f32 %v1954, %v2173
        %v2229 = vadd.f32 %v1955, %v2176
        %v2230 = vadd.f32 %v1956, %v2179
        %v2231 = vadd.f32 %v1957, %v2182
        %v2232 = vadd.f32 %v1958, %v2185
        %v2233 = vadd.f32 %v1959, %v2188
        %v2234 = vadd.f32 %v1960, %v2191
        %v2235 = vadd.f32 %v1961, %v2194
        %v2236 = vadd.f32 %v1962, %v2197
        %v2237 = vadd.f32 %v1963, %v2200
        %v2238 = vadd.f32 %v1964, %v2203
        %v2239 = vadd.f32 %v1965, %v2206
        %s2240 = scalar_lea.vmem [#allocation2], 48
        %v2241 = vld [vmem:[%s2240] sm:$0xff]
        %v2242 = vld [vmem:[%s2240 + $0x8] sm:$0xff]
        %v2243 = vld [vmem:[%s2240 + $0x18] sm:$0xff]
        %v2244 = vld [vmem:[%s2240 + $0x20] sm:$0xff]
        %v2245 = vld [vmem:[%s2240 + $0x30] sm:$0xff]
        %v2246 = vld [vmem:[%s2240 + $0x38] sm:$0xff]
        %v2247 = vld [vmem:[%s2240 + $0x48] sm:$0xff]
        %v2248 = vld [vmem:[%s2240 + $0x50] sm:$0xff]
        %v2249 = vld [vmem:[%s2240 + $0x60] sm:$0xff]
        %v2250 = vld [vmem:[%s2240 + $0x68] sm:$0xff]
        %v2251 = vld [vmem:[%s2240 + $0x78] sm:$0xff]
        %v2252 = vld [vmem:[%s2240 + $0x80] sm:$0xff]
        %v2253 = vld [vmem:[%s2240 + $0x90] sm:$0xff]
        %v2254 = vld [vmem:[%s2240 + $0x98] sm:$0xff]
        %v2255 = vld [vmem:[%s2240 + $0xa8] sm:$0xff]
        %v2256 = vld [vmem:[%s2240 + $0xb0] sm:$0xff]
        %v2257 = vld [vmem:[%s2240 + $0xc0] sm:$0xff]
        %v2258 = vld [vmem:[%s2240 + $0xc8] sm:$0xff]
        %v2259 = vld [vmem:[%s2240 + $0xd8] sm:$0xff]
        %v2260 = vld [vmem:[%s2240 + $0xe0] sm:$0xff]
        %v2261 = vld [vmem:[%s2240 + $0xf0] sm:$0xff]
        %v2262 = vld [vmem:[%s2240 + $0xf8] sm:$0xff]
        %v2263 = vld [vmem:[%s2240 + $0x108] sm:$0xff]
        %v2264 = vld [vmem:[%s2240 + $0x110] sm:$0xff]
        %v2265 = vld [vmem:[%s2240 + $0x120] sm:$0xff]
        %v2266 = vld [vmem:[%s2240 + $0x128] sm:$0xff]
        %v2267 = vld [vmem:[%s2240 + $0x138] sm:$0xff]
        %v2268 = vld [vmem:[%s2240 + $0x140] sm:$0xff]
        %v2269 = vld [vmem:[%s2240 + $0x150] sm:$0xff]
        %v2270 = vld [vmem:[%s2240 + $0x158] sm:$0xff]
        %v2271 = vld [vmem:[%s2240 + $0x168] sm:$0xff]
        %v2272 = vld [vmem:[%s2240 + $0x170] sm:$0xff]
        %v2273 = vld [vmem:[%s3 + $0x30] sm:$0xff]
        %v2275 = vsel %vm582, %v2241, 0
        %v2278 = vsel %vm582, %v2242, 0
        %v2281 = vsel %vm582, %v2243, 0
        %v2284 = vsel %vm582, %v2244, 0
        %v2287 = vsel %vm582, %v2245, 0
        %v2290 = vsel %vm582, %v2246, 0
        %v2293 = vsel %vm582, %v2247, 0
        %v2296 = vsel %vm582, %v2248, 0
        %v2299 = vsel %vm582, %v2249, 0
        %v2302 = vsel %vm582, %v2250, 0
        %v2305 = vsel %vm582, %v2251, 0
        %v2308 = vsel %vm582, %v2252, 0
        %v2311 = vsel %vm582, %v2253, 0
        %v2314 = vsel %vm582, %v2254, 0
        %v2317 = vsel %vm582, %v2255, 0
        %v2320 = vsel %vm582, %v2256, 0
        %v2323 = vsel %vm582, %v2257, 0
        %v2326 = vsel %vm582, %v2258, 0
        %v2329 = vsel %vm582, %v2259, 0
        %v2332 = vsel %vm582, %v2260, 0
        %v2335 = vsel %vm582, %v2261, 0
        %v2338 = vsel %vm582, %v2262, 0
        %v2341 = vsel %vm582, %v2263, 0
        %v2344 = vsel %vm582, %v2264, 0
        %v2347 = vsel %vm582, %v2265, 0
        %v2350 = vsel %vm582, %v2266, 0
        %v2353 = vsel %vm582, %v2267, 0
        %v2356 = vsel %vm582, %v2268, 0
        %v2359 = vsel %vm582, %v2269, 0
        %v2362 = vsel %vm582, %v2270, 0
        %v2365 = vsel %vm582, %v2271, 0
        %v2368 = vsel %vm582, %v2272, 0
        %2370 = vmatpush.msra.mxu0 0.0
        %2371 = vmatpush.msra.mxu0 0.0
        %2372 = vmatpush.msra.mxu0 0.0
        %2373 = vmatpush.msra.mxu0 0.0
        %2374 = vmatpush.msra.mxu0 0.0
        %2375 = vmatpush.msra.mxu0 0.0
        %2376 = vmatpush.msra.mxu0 0.0
        %2377 = vmatpush.msra.mxu0 0.0
        %2378 = vmatpush.msra.mxu0 0.0
        %2379 = vmatpush.msra.mxu0 0.0
        %2380 = vmatpush.msra.mxu0 0.0
        %2381 = vmatpush.msra.mxu0 0.0
        %2382 = vmatpush.msra.mxu0 0.0
        %2383 = vmatpush.msra.mxu0 0.0
        %2384 = vmatpush.msra.mxu0 0.0
        %2385 = vmatpush.msra.mxu0 %v2273
        %2386 = vmatmul.f32.gmra.mxu0 %v2275
        %v2387 = vpop.f32.mrf.mxu0
        %v2388 = vadd.f32 0.0, %v2387
        %2389 = vmatmul.f32.gmra.mxu0 %v2278
        %v2390 = vpop.f32.mrf.mxu0
        %v2391 = vadd.f32 0.0, %v2390
        %2392 = vmatmul.f32.gmra.mxu0 %v2281
        %v2393 = vpop.f32.mrf.mxu0
        %v2394 = vadd.f32 0.0, %v2393
        %2395 = vmatmul.f32.gmra.mxu0 %v2284
        %v2396 = vpop.f32.mrf.mxu0
        %v2397 = vadd.f32 0.0, %v2396
        %2398 = vmatmul.f32.gmra.mxu0 %v2287
        %v2399 = vpop.f32.mrf.mxu0
        %v2400 = vadd.f32 0.0, %v2399
        %2401 = vmatmul.f32.gmra.mxu0 %v2290
        %v2402 = vpop.f32.mrf.mxu0
        %v2403 = vadd.f32 0.0, %v2402
        %2404 = vmatmul.f32.gmra.mxu0 %v2293
        %v2405 = vpop.f32.mrf.mxu0
        %v2406 = vadd.f32 0.0, %v2405
        %2407 = vmatmul.f32.gmra.mxu0 %v2296
        %v2408 = vpop.f32.mrf.mxu0
        %v2409 = vadd.f32 0.0, %v2408
        %2410 = vmatmul.f32.gmra.mxu0 %v2299
        %v2411 = vpop.f32.mrf.mxu0
        %v2412 = vadd.f32 0.0, %v2411
        %2413 = vmatmul.f32.gmra.mxu0 %v2302
        %v2414 = vpop.f32.mrf.mxu0
        %v2415 = vadd.f32 0.0, %v2414
        %2416 = vmatmul.f32.gmra.mxu0 %v2305
        %v2417 = vpop.f32.mrf.mxu0
        %v2418 = vadd.f32 0.0, %v2417
        %2419 = vmatmul.f32.gmra.mxu0 %v2308
        %v2420 = vpop.f32.mrf.mxu0
        %v2421 = vadd.f32 0.0, %v2420
        %2422 = vmatmul.f32.gmra.mxu0 %v2311
        %v2423 = vpop.f32.mrf.mxu0
        %v2424 = vadd.f32 0.0, %v2423
        %2425 = vmatmul.f32.gmra.mxu0 %v2314
        %v2426 = vpop.f32.mrf.mxu0
        %v2427 = vadd.f32 0.0, %v2426
        %2428 = vmatmul.f32.gmra.mxu0 %v2317
        %v2429 = vpop.f32.mrf.mxu0
        %v2430 = vadd.f32 0.0, %v2429
        %2431 = vmatmul.f32.gmra.mxu0 %v2320
        %v2432 = vpop.f32.mrf.mxu0
        %v2433 = vadd.f32 0.0, %v2432
        %2434 = vmatmul.f32.gmra.mxu0 %v2323
        %v2435 = vpop.f32.mrf.mxu0
        %v2436 = vadd.f32 0.0, %v2435
        %2437 = vmatmul.f32.gmra.mxu0 %v2326
        %v2438 = vpop.f32.mrf.mxu0
        %v2439 = vadd.f32 0.0, %v2438
        %2440 = vmatmul.f32.gmra.mxu0 %v2329
        %v2441 = vpop.f32.mrf.mxu0
        %v2442 = vadd.f32 0.0, %v2441
        %2443 = vmatmul.f32.gmra.mxu0 %v2332
        %v2444 = vpop.f32.mrf.mxu0
        %v2445 = vadd.f32 0.0, %v2444
        %2446 = vmatmul.f32.gmra.mxu0 %v2335
        %v2447 = vpop.f32.mrf.mxu0
        %v2448 = vadd.f32 0.0, %v2447
        %2449 = vmatmul.f32.gmra.mxu0 %v2338
        %v2450 = vpop.f32.mrf.mxu0
        %v2451 = vadd.f32 0.0, %v2450
        %2452 = vmatmul.f32.gmra.mxu0 %v2341
        %v2453 = vpop.f32.mrf.mxu0
        %v2454 = vadd.f32 0.0, %v2453
        %2455 = vmatmul.f32.gmra.mxu0 %v2344
        %v2456 = vpop.f32.mrf.mxu0
        %v2457 = vadd.f32 0.0, %v2456
        %2458 = vmatmul.f32.gmra.mxu0 %v2347
        %v2459 = vpop.f32.mrf.mxu0
        %v2460 = vadd.f32 0.0, %v2459
        %2461 = vmatmul.f32.gmra.mxu0 %v2350
        %v2462 = vpop.f32.mrf.mxu0
        %v2463 = vadd.f32 0.0, %v2462
        %2464 = vmatmul.f32.gmra.mxu0 %v2353
        %v2465 = vpop.f32.mrf.mxu0
        %v2466 = vadd.f32 0.0, %v2465
        %2467 = vmatmul.f32.gmra.mxu0 %v2356
        %v2468 = vpop.f32.mrf.mxu0
        %v2469 = vadd.f32 0.0, %v2468
        %2470 = vmatmul.f32.gmra.mxu0 %v2359
        %v2471 = vpop.f32.mrf.mxu0
        %v2472 = vadd.f32 0.0, %v2471
        %2473 = vmatmul.f32.gmra.mxu0 %v2362
        %v2474 = vpop.f32.mrf.mxu0
        %v2475 = vadd.f32 0.0, %v2474
        %2476 = vmatmul.f32.gmra.mxu0 %v2365
        %v2477 = vpop.f32.mrf.mxu0
        %v2478 = vadd.f32 0.0, %v2477
        %2479 = vmatmul.f32.gmra.mxu0 %v2368
        %v2480 = vpop.f32.mrf.mxu0
        %v2481 = vadd.f32 0.0, %v2480
        %2482 = vdwg.mxu0
        %v2483 = vadd.f32 %v2208, %v2388
        %v2484 = vadd.f32 %v2209, %v2391
        %v2485 = vadd.f32 %v2210, %v2394
        %v2486 = vadd.f32 %v2211, %v2397
        %v2487 = vadd.f32 %v2212, %v2400
        %v2488 = vadd.f32 %v2213, %v2403
        %v2489 = vadd.f32 %v2214, %v2406
        %v2490 = vadd.f32 %v2215, %v2409
        %v2491 = vadd.f32 %v2216, %v2412
        %v2492 = vadd.f32 %v2217, %v2415
        %v2493 = vadd.f32 %v2218, %v2418
        %v2494 = vadd.f32 %v2219, %v2421
        %v2495 = vadd.f32 %v2220, %v2424
        %v2496 = vadd.f32 %v2221, %v2427
        %v2497 = vadd.f32 %v2222, %v2430
        %v2498 = vadd.f32 %v2223, %v2433
        %v2499 = vadd.f32 %v2224, %v2436
        %v2500 = vadd.f32 %v2225, %v2439
        %v2501 = vadd.f32 %v2226, %v2442
        %v2502 = vadd.f32 %v2227, %v2445
        %v2503 = vadd.f32 %v2228, %v2448
        %v2504 = vadd.f32 %v2229, %v2451
        %v2505 = vadd.f32 %v2230, %v2454
        %v2506 = vadd.f32 %v2231, %v2457
        %v2507 = vadd.f32 %v2232, %v2460
        %v2508 = vadd.f32 %v2233, %v2463
        %v2509 = vadd.f32 %v2234, %v2466
        %v2510 = vadd.f32 %v2235, %v2469
        %v2511 = vadd.f32 %v2236, %v2472
        %v2512 = vadd.f32 %v2237, %v2475
        %v2513 = vadd.f32 %v2238, %v2478
        %v2514 = vadd.f32 %v2239, %v2481
        %v2515 = vld [vmem:[%s2240 + $0x1] sm:$0xff]
        %v2516 = vld [vmem:[%s2240 + $0x9] sm:$0xff]
        %v2517 = vld [vmem:[%s2240 + $0x19] sm:$0xff]
        %v2518 = vld [vmem:[%s2240 + $0x21] sm:$0xff]
        %v2519 = vld [vmem:[%s2240 + $0x31] sm:$0xff]
        %v2520 = vld [vmem:[%s2240 + $0x39] sm:$0xff]
        %v2521 = vld [vmem:[%s2240 + $0x49] sm:$0xff]
        %v2522 = vld [vmem:[%s2240 + $0x51] sm:$0xff]
        %v2523 = vld [vmem:[%s2240 + $0x61] sm:$0xff]
        %v2524 = vld [vmem:[%s2240 + $0x69] sm:$0xff]
        %v2525 = vld [vmem:[%s2240 + $0x79] sm:$0xff]
        %v2526 = vld [vmem:[%s2240 + $0x81] sm:$0xff]
        %v2527 = vld [vmem:[%s2240 + $0x91] sm:$0xff]
        %v2528 = vld [vmem:[%s2240 + $0x99] sm:$0xff]
        %v2529 = vld [vmem:[%s2240 + $0xa9] sm:$0xff]
        %v2530 = vld [vmem:[%s2240 + $0xb1] sm:$0xff]
        %v2531 = vld [vmem:[%s2240 + $0xc1] sm:$0xff]
        %v2532 = vld [vmem:[%s2240 + $0xc9] sm:$0xff]
        %v2533 = vld [vmem:[%s2240 + $0xd9] sm:$0xff]
        %v2534 = vld [vmem:[%s2240 + $0xe1] sm:$0xff]
        %v2535 = vld [vmem:[%s2240 + $0xf1] sm:$0xff]
        %v2536 = vld [vmem:[%s2240 + $0xf9] sm:$0xff]
        %v2537 = vld [vmem:[%s2240 + $0x109] sm:$0xff]
        %v2538 = vld [vmem:[%s2240 + $0x111] sm:$0xff]
        %v2539 = vld [vmem:[%s2240 + $0x121] sm:$0xff]
        %v2540 = vld [vmem:[%s2240 + $0x129] sm:$0xff]
        %v2541 = vld [vmem:[%s2240 + $0x139] sm:$0xff]
        %v2542 = vld [vmem:[%s2240 + $0x141] sm:$0xff]
        %v2543 = vld [vmem:[%s2240 + $0x151] sm:$0xff]
        %v2544 = vld [vmem:[%s2240 + $0x159] sm:$0xff]
        %v2545 = vld [vmem:[%s2240 + $0x169] sm:$0xff]
        %v2546 = vld [vmem:[%s2240 + $0x171] sm:$0xff]
        %v2547 = vld [vmem:[%s3 + $0x38] sm:$0xff]
        %v2549 = vsel %vm582, %v2515, 0
        %v2552 = vsel %vm582, %v2516, 0
        %v2555 = vsel %vm582, %v2517, 0
        %v2558 = vsel %vm582, %v2518, 0
        %v2561 = vsel %vm582, %v2519, 0
        %v2564 = vsel %vm582, %v2520, 0
        %v2567 = vsel %vm582, %v2521, 0
        %v2570 = vsel %vm582, %v2522, 0
        %v2573 = vsel %vm582, %v2523, 0
        %v2576 = vsel %vm582, %v2524, 0
        %v2579 = vsel %vm582, %v2525, 0
        %v2582 = vsel %vm582, %v2526, 0
        %v2585 = vsel %vm582, %v2527, 0
        %v2588 = vsel %vm582, %v2528, 0
        %v2591 = vsel %vm582, %v2529, 0
        %v2594 = vsel %vm582, %v2530, 0
        %v2597 = vsel %vm582, %v2531, 0
        %v2600 = vsel %vm582, %v2532, 0
        %v2603 = vsel %vm582, %v2533, 0
        %v2606 = vsel %vm582, %v2534, 0
        %v2609 = vsel %vm582, %v2535, 0
        %v2612 = vsel %vm582, %v2536, 0
        %v2615 = vsel %vm582, %v2537, 0
        %v2618 = vsel %vm582, %v2538, 0
        %v2621 = vsel %vm582, %v2539, 0
        %v2624 = vsel %vm582, %v2540, 0
        %v2627 = vsel %vm582, %v2541, 0
        %v2630 = vsel %vm582, %v2542, 0
        %v2633 = vsel %vm582, %v2543, 0
        %v2636 = vsel %vm582, %v2544, 0
        %v2639 = vsel %vm582, %v2545, 0
        %v2642 = vsel %vm582, %v2546, 0
        %2644 = vmatpush.msra.mxu0 0.0
        %2645 = vmatpush.msra.mxu0 0.0
        %2646 = vmatpush.msra.mxu0 0.0
        %2647 = vmatpush.msra.mxu0 0.0
        %2648 = vmatpush.msra.mxu0 0.0
        %2649 = vmatpush.msra.mxu0 0.0
        %2650 = vmatpush.msra.mxu0 0.0
        %2651 = vmatpush.msra.mxu0 0.0
        %2652 = vmatpush.msra.mxu0 0.0
        %2653 = vmatpush.msra.mxu0 0.0
        %2654 = vmatpush.msra.mxu0 0.0
        %2655 = vmatpush.msra.mxu0 0.0
        %2656 = vmatpush.msra.mxu0 0.0
        %2657 = vmatpush.msra.mxu0 0.0
        %2658 = vmatpush.msra.mxu0 0.0
        %2659 = vmatpush.msra.mxu0 %v2547
        %2660 = vmatmul.f32.gmra.mxu0 %v2549
        %v2661 = vpop.f32.mrf.mxu0
        %v2662 = vadd.f32 0.0, %v2661
        %2663 = vmatmul.f32.gmra.mxu0 %v2552
        %v2664 = vpop.f32.mrf.mxu0
        %v2665 = vadd.f32 0.0, %v2664
        %2666 = vmatmul.f32.gmra.mxu0 %v2555
        %v2667 = vpop.f32.mrf.mxu0
        %v2668 = vadd.f32 0.0, %v2667
        %2669 = vmatmul.f32.gmra.mxu0 %v2558
        %v2670 = vpop.f32.mrf.mxu0
        %v2671 = vadd.f32 0.0, %v2670
        %2672 = vmatmul.f32.gmra.mxu0 %v2561
        %v2673 = vpop.f32.mrf.mxu0
        %v2674 = vadd.f32 0.0, %v2673
        %2675 = vmatmul.f32.gmra.mxu0 %v2564
        %v2676 = vpop.f32.mrf.mxu0
        %v2677 = vadd.f32 0.0, %v2676
        %2678 = vmatmul.f32.gmra.mxu0 %v2567
        %v2679 = vpop.f32.mrf.mxu0
        %v2680 = vadd.f32 0.0, %v2679
        %2681 = vmatmul.f32.gmra.mxu0 %v2570
        %v2682 = vpop.f32.mrf.mxu0
        %v2683 = vadd.f32 0.0, %v2682
        %2684 = vmatmul.f32.gmra.mxu0 %v2573
        %v2685 = vpop.f32.mrf.mxu0
        %v2686 = vadd.f32 0.0, %v2685
        %2687 = vmatmul.f32.gmra.mxu0 %v2576
        %v2688 = vpop.f32.mrf.mxu0
        %v2689 = vadd.f32 0.0, %v2688
        %2690 = vmatmul.f32.gmra.mxu0 %v2579
        %v2691 = vpop.f32.mrf.mxu0
        %v2692 = vadd.f32 0.0, %v2691
        %2693 = vmatmul.f32.gmra.mxu0 %v2582
        %v2694 = vpop.f32.mrf.mxu0
        %v2695 = vadd.f32 0.0, %v2694
        %2696 = vmatmul.f32.gmra.mxu0 %v2585
        %v2697 = vpop.f32.mrf.mxu0
        %v2698 = vadd.f32 0.0, %v2697
        %2699 = vmatmul.f32.gmra.mxu0 %v2588
        %v2700 = vpop.f32.mrf.mxu0
        %v2701 = vadd.f32 0.0, %v2700
        %2702 = vmatmul.f32.gmra.mxu0 %v2591
        %v2703 = vpop.f32.mrf.mxu0
        %v2704 = vadd.f32 0.0, %v2703
        %2705 = vmatmul.f32.gmra.mxu0 %v2594
        %v2706 = vpop.f32.mrf.mxu0
        %v2707 = vadd.f32 0.0, %v2706
        %2708 = vmatmul.f32.gmra.mxu0 %v2597
        %v2709 = vpop.f32.mrf.mxu0
        %v2710 = vadd.f32 0.0, %v2709
        %2711 = vmatmul.f32.gmra.mxu0 %v2600
        %v2712 = vpop.f32.mrf.mxu0
        %v2713 = vadd.f32 0.0, %v2712
        %2714 = vmatmul.f32.gmra.mxu0 %v2603
        %v2715 = vpop.f32.mrf.mxu0
        %v2716 = vadd.f32 0.0, %v2715
        %2717 = vmatmul.f32.gmra.mxu0 %v2606
        %v2718 = vpop.f32.mrf.mxu0
        %v2719 = vadd.f32 0.0, %v2718
        %2720 = vmatmul.f32.gmra.mxu0 %v2609
        %v2721 = vpop.f32.mrf.mxu0
        %v2722 = vadd.f32 0.0, %v2721
        %2723 = vmatmul.f32.gmra.mxu0 %v2612
        %v2724 = vpop.f32.mrf.mxu0
        %v2725 = vadd.f32 0.0, %v2724
        %2726 = vmatmul.f32.gmra.mxu0 %v2615
        %v2727 = vpop.f32.mrf.mxu0
        %v2728 = vadd.f32 0.0, %v2727
        %2729 = vmatmul.f32.gmra.mxu0 %v2618
        %v2730 = vpop.f32.mrf.mxu0
        %v2731 = vadd.f32 0.0, %v2730
        %2732 = vmatmul.f32.gmra.mxu0 %v2621
        %v2733 = vpop.f32.mrf.mxu0
        %v2734 = vadd.f32 0.0, %v2733
        %2735 = vmatmul.f32.gmra.mxu0 %v2624
        %v2736 = vpop.f32.mrf.mxu0
        %v2737 = vadd.f32 0.0, %v2736
        %2738 = vmatmul.f32.gmra.mxu0 %v2627
        %v2739 = vpop.f32.mrf.mxu0
        %v2740 = vadd.f32 0.0, %v2739
        %2741 = vmatmul.f32.gmra.mxu0 %v2630
        %v2742 = vpop.f32.mrf.mxu0
        %v2743 = vadd.f32 0.0, %v2742
        %2744 = vmatmul.f32.gmra.mxu0 %v2633
        %v2745 = vpop.f32.mrf.mxu0
        %v2746 = vadd.f32 0.0, %v2745
        %2747 = vmatmul.f32.gmra.mxu0 %v2636
        %v2748 = vpop.f32.mrf.mxu0
        %v2749 = vadd.f32 0.0, %v2748
        %2750 = vmatmul.f32.gmra.mxu0 %v2639
        %v2751 = vpop.f32.mrf.mxu0
        %v2752 = vadd.f32 0.0, %v2751
        %2753 = vmatmul.f32.gmra.mxu0 %v2642
        %v2754 = vpop.f32.mrf.mxu0
        %v2755 = vadd.f32 0.0, %v2754
        %2756 = vdwg.mxu0
        %v2757 = vadd.f32 %v2483, %v2662
        %v2758 = vadd.f32 %v2484, %v2665
        %v2759 = vadd.f32 %v2485, %v2668
        %v2760 = vadd.f32 %v2486, %v2671
        %v2761 = vadd.f32 %v2487, %v2674
        %v2762 = vadd.f32 %v2488, %v2677
        %v2763 = vadd.f32 %v2489, %v2680
        %v2764 = vadd.f32 %v2490, %v2683
        %v2765 = vadd.f32 %v2491, %v2686
        %v2766 = vadd.f32 %v2492, %v2689
        %v2767 = vadd.f32 %v2493, %v2692
        %v2768 = vadd.f32 %v2494, %v2695
        %v2769 = vadd.f32 %v2495, %v2698
        %v2770 = vadd.f32 %v2496, %v2701
        %v2771 = vadd.f32 %v2497, %v2704
        %v2772 = vadd.f32 %v2498, %v2707
        %v2773 = vadd.f32 %v2499, %v2710
        %v2774 = vadd.f32 %v2500, %v2713
        %v2775 = vadd.f32 %v2501, %v2716
        %v2776 = vadd.f32 %v2502, %v2719
        %v2777 = vadd.f32 %v2503, %v2722
        %v2778 = vadd.f32 %v2504, %v2725
        %v2779 = vadd.f32 %v2505, %v2728
        %v2780 = vadd.f32 %v2506, %v2731
        %v2781 = vadd.f32 %v2507, %v2734
        %v2782 = vadd.f32 %v2508, %v2737
        %v2783 = vadd.f32 %v2509, %v2740
        %v2784 = vadd.f32 %v2510, %v2743
        %v2785 = vadd.f32 %v2511, %v2746
        %v2786 = vadd.f32 %v2512, %v2749
        %v2787 = vadd.f32 %v2513, %v2752
        %v2788 = vadd.f32 %v2514, %v2755
        %v2789 = vld [vmem:[%s2240 + $0x2] sm:$0xff]
        %v2790 = vld [vmem:[%s2240 + $0xa] sm:$0xff]
        %v2791 = vld [vmem:[%s2240 + $0x1a] sm:$0xff]
        %v2792 = vld [vmem:[%s2240 + $0x22] sm:$0xff]
        %v2793 = vld [vmem:[%s2240 + $0x32] sm:$0xff]
        %v2794 = vld [vmem:[%s2240 + $0x3a] sm:$0xff]
        %v2795 = vld [vmem:[%s2240 + $0x4a] sm:$0xff]
        %v2796 = vld [vmem:[%s2240 + $0x52] sm:$0xff]
        %v2797 = vld [vmem:[%s2240 + $0x62] sm:$0xff]
        %v2798 = vld [vmem:[%s2240 + $0x6a] sm:$0xff]
        %v2799 = vld [vmem:[%s2240 + $0x7a] sm:$0xff]
        %v2800 = vld [vmem:[%s2240 + $0x82] sm:$0xff]
        %v2801 = vld [vmem:[%s2240 + $0x92] sm:$0xff]
        %v2802 = vld [vmem:[%s2240 + $0x9a] sm:$0xff]
        %v2803 = vld [vmem:[%s2240 + $0xaa] sm:$0xff]
        %v2804 = vld [vmem:[%s2240 + $0xb2] sm:$0xff]
        %v2805 = vld [vmem:[%s2240 + $0xc2] sm:$0xff]
        %v2806 = vld [vmem:[%s2240 + $0xca] sm:$0xff]
        %v2807 = vld [vmem:[%s2240 + $0xda] sm:$0xff]
        %v2808 = vld [vmem:[%s2240 + $0xe2] sm:$0xff]
        %v2809 = vld [vmem:[%s2240 + $0xf2] sm:$0xff]
        %v2810 = vld [vmem:[%s2240 + $0xfa] sm:$0xff]
        %v2811 = vld [vmem:[%s2240 + $0x10a] sm:$0xff]
        %v2812 = vld [vmem:[%s2240 + $0x112] sm:$0xff]
        %v2813 = vld [vmem:[%s2240 + $0x122] sm:$0xff]
        %v2814 = vld [vmem:[%s2240 + $0x12a] sm:$0xff]
        %v2815 = vld [vmem:[%s2240 + $0x13a] sm:$0xff]
        %v2816 = vld [vmem:[%s2240 + $0x142] sm:$0xff]
        %v2817 = vld [vmem:[%s2240 + $0x152] sm:$0xff]
        %v2818 = vld [vmem:[%s2240 + $0x15a] sm:$0xff]
        %v2819 = vld [vmem:[%s2240 + $0x16a] sm:$0xff]
        %v2820 = vld [vmem:[%s2240 + $0x172] sm:$0xff]
        %v2821 = vld [vmem:[%s3 + $0x40] sm:$0xff]
        %v2823 = vsel %vm582, %v2789, 0
        %v2826 = vsel %vm582, %v2790, 0
        %v2829 = vsel %vm582, %v2791, 0
        %v2832 = vsel %vm582, %v2792, 0
        %v2835 = vsel %vm582, %v2793, 0
        %v2838 = vsel %vm582, %v2794, 0
        %v2841 = vsel %vm582, %v2795, 0
        %v2844 = vsel %vm582, %v2796, 0
        %v2847 = vsel %vm582, %v2797, 0
        %v2850 = vsel %vm582, %v2798, 0
        %v2853 = vsel %vm582, %v2799, 0
        %v2856 = vsel %vm582, %v2800, 0
        %v2859 = vsel %vm582, %v2801, 0
        %v2862 = vsel %vm582, %v2802, 0
        %v2865 = vsel %vm582, %v2803, 0
        %v2868 = vsel %vm582, %v2804, 0
        %v2871 = vsel %vm582, %v2805, 0
        %v2874 = vsel %vm582, %v2806, 0
        %v2877 = vsel %vm582, %v2807, 0
        %v2880 = vsel %vm582, %v2808, 0
        %v2883 = vsel %vm582, %v2809, 0
        %v2886 = vsel %vm582, %v2810, 0
        %v2889 = vsel %vm582, %v2811, 0
        %v2892 = vsel %vm582, %v2812, 0
        %v2895 = vsel %vm582, %v2813, 0
        %v2898 = vsel %vm582, %v2814, 0
        %v2901 = vsel %vm582, %v2815, 0
        %v2904 = vsel %vm582, %v2816, 0
        %v2907 = vsel %vm582, %v2817, 0
        %v2910 = vsel %vm582, %v2818, 0
        %v2913 = vsel %vm582, %v2819, 0
        %v2916 = vsel %vm582, %v2820, 0
        %2918 = vmatpush.msra.mxu0 0.0
        %2919 = vmatpush.msra.mxu0 0.0
        %2920 = vmatpush.msra.mxu0 0.0
        %2921 = vmatpush.msra.mxu0 0.0
        %2922 = vmatpush.msra.mxu0 0.0
        %2923 = vmatpush.msra.mxu0 0.0
        %2924 = vmatpush.msra.mxu0 0.0
        %2925 = vmatpush.msra.mxu0 0.0
        %2926 = vmatpush.msra.mxu0 0.0
        %2927 = vmatpush.msra.mxu0 0.0
        %2928 = vmatpush.msra.mxu0 0.0
        %2929 = vmatpush.msra.mxu0 0.0
        %2930 = vmatpush.msra.mxu0 0.0
        %2931 = vmatpush.msra.mxu0 0.0
        %2932 = vmatpush.msra.mxu0 0.0
        %2933 = vmatpush.msra.mxu0 %v2821
        %2934 = vmatmul.f32.gmra.mxu0 %v2823
        %v2935 = vpop.f32.mrf.mxu0
        %v2936 = vadd.f32 0.0, %v2935
        %2937 = vmatmul.f32.gmra.mxu0 %v2826
        %v2938 = vpop.f32.mrf.mxu0
        %v2939 = vadd.f32 0.0, %v2938
        %2940 = vmatmul.f32.gmra.mxu0 %v2829
        %v2941 = vpop.f32.mrf.mxu0
        %v2942 = vadd.f32 0.0, %v2941
        %2943 = vmatmul.f32.gmra.mxu0 %v2832
        %v2944 = vpop.f32.mrf.mxu0
        %v2945 = vadd.f32 0.0, %v2944
        %2946 = vmatmul.f32.gmra.mxu0 %v2835
        %v2947 = vpop.f32.mrf.mxu0
        %v2948 = vadd.f32 0.0, %v2947
        %2949 = vmatmul.f32.gmra.mxu0 %v2838
        %v2950 = vpop.f32.mrf.mxu0
        %v2951 = vadd.f32 0.0, %v2950
        %2952 = vmatmul.f32.gmra.mxu0 %v2841
        %v2953 = vpop.f32.mrf.mxu0
        %v2954 = vadd.f32 0.0, %v2953
        %2955 = vmatmul.f32.gmra.mxu0 %v2844
        %v2956 = vpop.f32.mrf.mxu0
        %v2957 = vadd.f32 0.0, %v2956
        %2958 = vmatmul.f32.gmra.mxu0 %v2847
        %v2959 = vpop.f32.mrf.mxu0
        %v2960 = vadd.f32 0.0, %v2959
        %2961 = vmatmul.f32.gmra.mxu0 %v2850
        %v2962 = vpop.f32.mrf.mxu0
        %v2963 = vadd.f32 0.0, %v2962
        %2964 = vmatmul.f32.gmra.mxu0 %v2853
        %v2965 = vpop.f32.mrf.mxu0
        %v2966 = vadd.f32 0.0, %v2965
        %2967 = vmatmul.f32.gmra.mxu0 %v2856
        %v2968 = vpop.f32.mrf.mxu0
        %v2969 = vadd.f32 0.0, %v2968
        %2970 = vmatmul.f32.gmra.mxu0 %v2859
        %v2971 = vpop.f32.mrf.mxu0
        %v2972 = vadd.f32 0.0, %v2971
        %2973 = vmatmul.f32.gmra.mxu0 %v2862
        %v2974 = vpop.f32.mrf.mxu0
        %v2975 = vadd.f32 0.0, %v2974
        %2976 = vmatmul.f32.gmra.mxu0 %v2865
        %v2977 = vpop.f32.mrf.mxu0
        %v2978 = vadd.f32 0.0, %v2977
        %2979 = vmatmul.f32.gmra.mxu0 %v2868
        %v2980 = vpop.f32.mrf.mxu0
        %v2981 = vadd.f32 0.0, %v2980
        %2982 = vmatmul.f32.gmra.mxu0 %v2871
        %v2983 = vpop.f32.mrf.mxu0
        %v2984 = vadd.f32 0.0, %v2983
        %2985 = vmatmul.f32.gmra.mxu0 %v2874
        %v2986 = vpop.f32.mrf.mxu0
        %v2987 = vadd.f32 0.0, %v2986
        %2988 = vmatmul.f32.gmra.mxu0 %v2877
        %v2989 = vpop.f32.mrf.mxu0
        %v2990 = vadd.f32 0.0, %v2989
        %2991 = vmatmul.f32.gmra.mxu0 %v2880
        %v2992 = vpop.f32.mrf.mxu0
        %v2993 = vadd.f32 0.0, %v2992
        %2994 = vmatmul.f32.gmra.mxu0 %v2883
        %v2995 = vpop.f32.mrf.mxu0
        %v2996 = vadd.f32 0.0, %v2995
        %2997 = vmatmul.f32.gmra.mxu0 %v2886
        %v2998 = vpop.f32.mrf.mxu0
        %v2999 = vadd.f32 0.0, %v2998
        %3000 = vmatmul.f32.gmra.mxu0 %v2889
        %v3001 = vpop.f32.mrf.mxu0
        %v3002 = vadd.f32 0.0, %v3001
        %3003 = vmatmul.f32.gmra.mxu0 %v2892
        %v3004 = vpop.f32.mrf.mxu0
        %v3005 = vadd.f32 0.0, %v3004
        %3006 = vmatmul.f32.gmra.mxu0 %v2895
        %v3007 = vpop.f32.mrf.mxu0
        %v3008 = vadd.f32 0.0, %v3007
        %3009 = vmatmul.f32.gmra.mxu0 %v2898
        %v3010 = vpop.f32.mrf.mxu0
        %v3011 = vadd.f32 0.0, %v3010
        %3012 = vmatmul.f32.gmra.mxu0 %v2901
        %v3013 = vpop.f32.mrf.mxu0
        %v3014 = vadd.f32 0.0, %v3013
        %3015 = vmatmul.f32.gmra.mxu0 %v2904
        %v3016 = vpop.f32.mrf.mxu0
        %v3017 = vadd.f32 0.0, %v3016
        %3018 = vmatmul.f32.gmra.mxu0 %v2907
        %v3019 = vpop.f32.mrf.mxu0
        %v3020 = vadd.f32 0.0, %v3019
        %3021 = vmatmul.f32.gmra.mxu0 %v2910
        %v3022 = vpop.f32.mrf.mxu0
        %v3023 = vadd.f32 0.0, %v3022
        %3024 = vmatmul.f32.gmra.mxu0 %v2913
        %v3025 = vpop.f32.mrf.mxu0
        %v3026 = vadd.f32 0.0, %v3025
        %3027 = vmatmul.f32.gmra.mxu0 %v2916
        %v3028 = vpop.f32.mrf.mxu0
        %v3029 = vadd.f32 0.0, %v3028
        %3030 = vdwg.mxu0
        %v3031 = vadd.f32 %v2757, %v2936
        %v3032 = vadd.f32 %v2758, %v2939
        %v3033 = vadd.f32 %v2759, %v2942
        %v3034 = vadd.f32 %v2760, %v2945
        %v3035 = vadd.f32 %v2761, %v2948
        %v3036 = vadd.f32 %v2762, %v2951
        %v3037 = vadd.f32 %v2763, %v2954
        %v3038 = vadd.f32 %v2764, %v2957
        %v3039 = vadd.f32 %v2765, %v2960
        %v3040 = vadd.f32 %v2766, %v2963
        %v3041 = vadd.f32 %v2767, %v2966
        %v3042 = vadd.f32 %v2768, %v2969
        %v3043 = vadd.f32 %v2769, %v2972
        %v3044 = vadd.f32 %v2770, %v2975
        %v3045 = vadd.f32 %v2771, %v2978
        %v3046 = vadd.f32 %v2772, %v2981
        %v3047 = vadd.f32 %v2773, %v2984
        %v3048 = vadd.f32 %v2774, %v2987
        %v3049 = vadd.f32 %v2775, %v2990
        %v3050 = vadd.f32 %v2776, %v2993
        %v3051 = vadd.f32 %v2777, %v2996
        %v3052 = vadd.f32 %v2778, %v2999
        %v3053 = vadd.f32 %v2779, %v3002
        %v3054 = vadd.f32 %v2780, %v3005
        %v3055 = vadd.f32 %v2781, %v3008
        %v3056 = vadd.f32 %v2782, %v3011
        %v3057 = vadd.f32 %v2783, %v3014
        %v3058 = vadd.f32 %v2784, %v3017
        %v3059 = vadd.f32 %v2785, %v3020
        %v3060 = vadd.f32 %v2786, %v3023
        %v3061 = vadd.f32 %v2787, %v3026
        %v3062 = vadd.f32 %v2788, %v3029
        %v3063 = vld [vmem:[%s4] sm:$0x1]
        %v3065 = vperm.slane %v3063, 0
        %v3067 = vadd.f32 %v3031, %v3065
        %v3068 = vadd.f32 %v3032, %v3065
        %v3069 = vadd.f32 %v3033, %v3065
        %v3070 = vadd.f32 %v3034, %v3065
        %v3071 = vadd.f32 %v3035, %v3065
        %v3072 = vadd.f32 %v3036, %v3065
        %v3073 = vadd.f32 %v3037, %v3065
        %v3074 = vadd.f32 %v3038, %v3065
        %v3075 = vadd.f32 %v3039, %v3065
        %v3076 = vadd.f32 %v3040, %v3065
        %v3077 = vadd.f32 %v3041, %v3065
        %v3078 = vadd.f32 %v3042, %v3065
        %v3079 = vadd.f32 %v3043, %v3065
        %v3080 = vadd.f32 %v3044, %v3065
        %v3081 = vadd.f32 %v3045, %v3065
        %v3082 = vadd.f32 %v3046, %v3065
        %v3083 = vadd.f32 %v3047, %v3065
        %v3084 = vadd.f32 %v3048, %v3065
        %v3085 = vadd.f32 %v3049, %v3065
        %v3086 = vadd.f32 %v3050, %v3065
        %v3087 = vadd.f32 %v3051, %v3065
        %v3088 = vadd.f32 %v3052, %v3065
        %v3089 = vadd.f32 %v3053, %v3065
        %v3090 = vadd.f32 %v3054, %v3065
        %v3091 = vadd.f32 %v3055, %v3065
        %v3092 = vadd.f32 %v3056, %v3065
        %v3093 = vadd.f32 %v3057, %v3065
        %v3094 = vadd.f32 %v3058, %v3065
        %v3095 = vadd.f32 %v3059, %v3065
        %v3096 = vadd.f32 %v3060, %v3065
        %v3097 = vadd.f32 %v3061, %v3065
        %v3098 = vadd.f32 %v3062, %v3065
        %v3099 = vmax.f32 %v3067, 0.0
        %v3100 = vmax.f32 %v3068, 0.0
        %v3101 = vmax.f32 %v3069, 0.0
        %v3102 = vmax.f32 %v3070, 0.0
        %v3103 = vmax.f32 %v3071, 0.0
        %v3104 = vmax.f32 %v3072, 0.0
        %v3105 = vmax.f32 %v3073, 0.0
        %v3106 = vmax.f32 %v3074, 0.0
        %v3107 = vmax.f32 %v3075, 0.0
        %v3108 = vmax.f32 %v3076, 0.0
        %v3109 = vmax.f32 %v3077, 0.0
        %v3110 = vmax.f32 %v3078, 0.0
        %v3111 = vmax.f32 %v3079, 0.0
        %v3112 = vmax.f32 %v3080, 0.0
        %v3113 = vmax.f32 %v3081, 0.0
        %v3114 = vmax.f32 %v3082, 0.0
        %v3115 = vmax.f32 %v3083, 0.0
        %v3116 = vmax.f32 %v3084, 0.0
        %v3117 = vmax.f32 %v3085, 0.0
        %v3118 = vmax.f32 %v3086, 0.0
        %v3119 = vmax.f32 %v3087, 0.0
        %v3120 = vmax.f32 %v3088, 0.0
        %v3121 = vmax.f32 %v3089, 0.0
        %v3122 = vmax.f32 %v3090, 0.0
        %v3123 = vmax.f32 %v3091, 0.0
        %v3124 = vmax.f32 %v3092, 0.0
        %v3125 = vmax.f32 %v3093, 0.0
        %v3126 = vmax.f32 %v3094, 0.0
        %v3127 = vmax.f32 %v3095, 0.0
        %v3128 = vmax.f32 %v3096, 0.0
        %v3129 = vmax.f32 %v3097, 0.0
        %v3130 = vmax.f32 %v3098, 0.0
        %v3131 = vld [vmem:[%s5] sm:$0xff]
        %v3132 = vld [vmem:[%s6] sm:$0x1]
        %v3134 = vperm.slane %v3132, 0
        %v3137 = vsel %vm582, %v3099, 0
        %v3140 = vsel %vm582, %v3100, 0
        %v3143 = vsel %vm582, %v3101, 0
        %v3146 = vsel %vm582, %v3102, 0
        %v3149 = vsel %vm582, %v3103, 0
        %v3152 = vsel %vm582, %v3104, 0
        %v3155 = vsel %vm582, %v3105, 0
        %v3158 = vsel %vm582, %v3106, 0
        %v3161 = vsel %vm582, %v3107, 0
        %v3164 = vsel %vm582, %v3108, 0
        %v3167 = vsel %vm582, %v3109, 0
        %v3170 = vsel %vm582, %v3110, 0
        %v3173 = vsel %vm582, %v3111, 0
        %v3176 = vsel %vm582, %v3112, 0
        %v3179 = vsel %vm582, %v3113, 0
        %v3182 = vsel %vm582, %v3114, 0
        %v3185 = vsel %vm582, %v3115, 0
        %v3188 = vsel %vm582, %v3116, 0
        %v3191 = vsel %vm582, %v3117, 0
        %v3194 = vsel %vm582, %v3118, 0
        %v3197 = vsel %vm582, %v3119, 0
        %v3200 = vsel %vm582, %v3120, 0
        %v3203 = vsel %vm582, %v3121, 0
        %v3206 = vsel %vm582, %v3122, 0
        %v3209 = vsel %vm582, %v3123, 0
        %v3212 = vsel %vm582, %v3124, 0
        %v3215 = vsel %vm582, %v3125, 0
        %v3218 = vsel %vm582, %v3126, 0
        %v3221 = vsel %vm582, %v3127, 0
        %v3224 = vsel %vm582, %v3128, 0
        %v3227 = vsel %vm582, %v3129, 0
        %v3230 = vsel %vm582, %v3130, 0
        %3232 = vmatpush.msra.mxu0 0.0
        %3233 = vmatpush.msra.mxu0 0.0
        %3234 = vmatpush.msra.mxu0 0.0
        %3235 = vmatpush.msra.mxu0 0.0
        %3236 = vmatpush.msra.mxu0 0.0
        %3237 = vmatpush.msra.mxu0 0.0
        %3238 = vmatpush.msra.mxu0 0.0
        %3239 = vmatpush.msra.mxu0 0.0
        %3240 = vmatpush.msra.mxu0 0.0
        %3241 = vmatpush.msra.mxu0 0.0
        %3242 = vmatpush.msra.mxu0 0.0
        %3243 = vmatpush.msra.mxu0 0.0
        %3244 = vmatpush.msra.mxu0 0.0
        %3245 = vmatpush.msra.mxu0 0.0
        %3246 = vmatpush.msra.mxu0 0.0
        %3247 = vmatpush.msra.mxu0 %v3131
        %3248 = vmatmul.f32.gmra.mxu0 %v3137
        %v3249 = vpop.f32.mrf.mxu0
        %v3250 = vadd.f32 %v3134, %v3249
        %3251 = vmatmul.f32.gmra.mxu0 %v3140
        %v3252 = vpop.f32.mrf.mxu0
        %v3253 = vadd.f32 %v3134, %v3252
        %3254 = vmatmul.f32.gmra.mxu0 %v3143
        %v3255 = vpop.f32.mrf.mxu0
        %v3256 = vadd.f32 %v3134, %v3255
        %3257 = vmatmul.f32.gmra.mxu0 %v3146
        %v3258 = vpop.f32.mrf.mxu0
        %v3259 = vadd.f32 %v3134, %v3258
        %3260 = vmatmul.f32.gmra.mxu0 %v3149
        %v3261 = vpop.f32.mrf.mxu0
        %v3262 = vadd.f32 %v3134, %v3261
        %3263 = vmatmul.f32.gmra.mxu0 %v3152
        %v3264 = vpop.f32.mrf.mxu0
        %v3265 = vadd.f32 %v3134, %v3264
        %3266 = vmatmul.f32.gmra.mxu0 %v3155
        %v3267 = vpop.f32.mrf.mxu0
        %v3268 = vadd.f32 %v3134, %v3267
        %3269 = vmatmul.f32.gmra.mxu0 %v3158
        %v3270 = vpop.f32.mrf.mxu0
        %v3271 = vadd.f32 %v3134, %v3270
        %3272 = vmatmul.f32.gmra.mxu0 %v3161
        %v3273 = vpop.f32.mrf.mxu0
        %v3274 = vadd.f32 %v3134, %v3273
        %3275 = vmatmul.f32.gmra.mxu0 %v3164
        %v3276 = vpop.f32.mrf.mxu0
        %v3277 = vadd.f32 %v3134, %v3276
        %3278 = vmatmul.f32.gmra.mxu0 %v3167
        %v3279 = vpop.f32.mrf.mxu0
        %v3280 = vadd.f32 %v3134, %v3279
        %3281 = vmatmul.f32.gmra.mxu0 %v3170
        %v3282 = vpop.f32.mrf.mxu0
        %v3283 = vadd.f32 %v3134, %v3282
        %3284 = vmatmul.f32.gmra.mxu0 %v3173
        %v3285 = vpop.f32.mrf.mxu0
        %v3286 = vadd.f32 %v3134, %v3285
        %3287 = vmatmul.f32.gmra.mxu0 %v3176
        %v3288 = vpop.f32.mrf.mxu0
        %v3289 = vadd.f32 %v3134, %v3288
        %3290 = vmatmul.f32.gmra.mxu0 %v3179
        %v3291 = vpop.f32.mrf.mxu0
        %v3292 = vadd.f32 %v3134, %v3291
        %3293 = vmatmul.f32.gmra.mxu0 %v3182
        %v3294 = vpop.f32.mrf.mxu0
        %v3295 = vadd.f32 %v3134, %v3294
        %3296 = vmatmul.f32.gmra.mxu0 %v3185
        %v3297 = vpop.f32.mrf.mxu0
        %v3298 = vadd.f32 %v3134, %v3297
        %3299 = vmatmul.f32.gmra.mxu0 %v3188
        %v3300 = vpop.f32.mrf.mxu0
        %v3301 = vadd.f32 %v3134, %v3300
        %3302 = vmatmul.f32.gmra.mxu0 %v3191
        %v3303 = vpop.f32.mrf.mxu0
        %v3304 = vadd.f32 %v3134, %v3303
        %3305 = vmatmul.f32.gmra.mxu0 %v3194
        %v3306 = vpop.f32.mrf.mxu0
        %v3307 = vadd.f32 %v3134, %v3306
        %3308 = vmatmul.f32.gmra.mxu0 %v3197
        %v3309 = vpop.f32.mrf.mxu0
        %v3310 = vadd.f32 %v3134, %v3309
        %3311 = vmatmul.f32.gmra.mxu0 %v3200
        %v3312 = vpop.f32.mrf.mxu0
        %v3313 = vadd.f32 %v3134, %v3312
        %3314 = vmatmul.f32.gmra.mxu0 %v3203
        %v3315 = vpop.f32.mrf.mxu0
        %v3316 = vadd.f32 %v3134, %v3315
        %3317 = vmatmul.f32.gmra.mxu0 %v3206
        %v3318 = vpop.f32.mrf.mxu0
        %v3319 = vadd.f32 %v3134, %v3318
        %3320 = vmatmul.f32.gmra.mxu0 %v3209
        %v3321 = vpop.f32.mrf.mxu0
        %v3322 = vadd.f32 %v3134, %v3321
        %3323 = vmatmul.f32.gmra.mxu0 %v3212
        %v3324 = vpop.f32.mrf.mxu0
        %v3325 = vadd.f32 %v3134, %v3324
        %3326 = vmatmul.f32.gmra.mxu0 %v3215
        %v3327 = vpop.f32.mrf.mxu0
        %v3328 = vadd.f32 %v3134, %v3327
        %3329 = vmatmul.f32.gmra.mxu0 %v3218
        %v3330 = vpop.f32.mrf.mxu0
        %v3331 = vadd.f32 %v3134, %v3330
        %3332 = vmatmul.f32.gmra.mxu0 %v3221
        %v3333 = vpop.f32.mrf.mxu0
        %v3334 = vadd.f32 %v3134, %v3333
        %3335 = vmatmul.f32.gmra.mxu0 %v3224
        %v3336 = vpop.f32.mrf.mxu0
        %v3337 = vadd.f32 %v3134, %v3336
        %3338 = vmatmul.f32.gmra.mxu0 %v3227
        %v3339 = vpop.f32.mrf.mxu0
        %v3340 = vadd.f32 %v3134, %v3339
        %3341 = vmatmul.f32.gmra.mxu0 %v3230
        %v3342 = vpop.f32.mrf.mxu0
        %v3343 = vadd.f32 %v3134, %v3342
        %3344 = vdwg.mxu0
        %v3345 = vld [vmem:[%s267] sm:$0xff]
        %v3346 = vld [vmem:[%s267 + $0x8] sm:$0xff]
        %v3347 = vld [vmem:[%s267 + $0x10] sm:$0xff]
        %v3348 = vld [vmem:[%s267 + $0x18] sm:$0xff]
        %v3349 = vld [vmem:[%s267 + $0x20] sm:$0xff]
        %v3350 = vld [vmem:[%s267 + $0x28] sm:$0xff]
        %v3351 = vld [vmem:[%s267 + $0x30] sm:$0xff]
        %v3352 = vld [vmem:[%s267 + $0x38] sm:$0xff]
        %v3353 = vld [vmem:[%s267 + $0x40] sm:$0xff]
        %v3354 = vld [vmem:[%s267 + $0x48] sm:$0xff]
        %v3355 = vld [vmem:[%s267 + $0x50] sm:$0xff]
        %v3356 = vld [vmem:[%s267 + $0x58] sm:$0xff]
        %v3357 = vld [vmem:[%s267 + $0x60] sm:$0xff]
        %v3358 = vld [vmem:[%s267 + $0x68] sm:$0xff]
        %v3359 = vld [vmem:[%s267 + $0x70] sm:$0xff]
        %v3360 = vld [vmem:[%s267 + $0x78] sm:$0xff]
        %v3361 = vld [vmem:[%s267 + $0x80] sm:$0xff]
        %v3362 = vld [vmem:[%s267 + $0x88] sm:$0xff]
        %v3363 = vld [vmem:[%s267 + $0x90] sm:$0xff]
        %v3364 = vld [vmem:[%s267 + $0x98] sm:$0xff]
        %v3365 = vld [vmem:[%s267 + $0xa0] sm:$0xff]
        %v3366 = vld [vmem:[%s267 + $0xa8] sm:$0xff]
        %v3367 = vld [vmem:[%s267 + $0xb0] sm:$0xff]
        %v3368 = vld [vmem:[%s267 + $0xb8] sm:$0xff]
        %v3369 = vld [vmem:[%s267 + $0xc0] sm:$0xff]
        %v3370 = vld [vmem:[%s267 + $0xc8] sm:$0xff]
        %v3371 = vld [vmem:[%s267 + $0xd0] sm:$0xff]
        %v3372 = vld [vmem:[%s267 + $0xd8] sm:$0xff]
        %v3373 = vld [vmem:[%s267 + $0xe0] sm:$0xff]
        %v3374 = vld [vmem:[%s267 + $0xe8] sm:$0xff]
        %v3375 = vld [vmem:[%s267 + $0xf0] sm:$0xff]
        %v3376 = vld [vmem:[%s267 + $0xf8] sm:$0xff]
        %v3377 = vadd.f32 %v3250, %v3345
        %v3378 = vadd.f32 %v3253, %v3346
        %v3379 = vadd.f32 %v3256, %v3347
        %v3380 = vadd.f32 %v3259, %v3348
        %v3381 = vadd.f32 %v3262, %v3349
        %v3382 = vadd.f32 %v3265, %v3350
        %v3383 = vadd.f32 %v3268, %v3351
        %v3384 = vadd.f32 %v3271, %v3352
        %v3385 = vadd.f32 %v3274, %v3353
        %v3386 = vadd.f32 %v3277, %v3354
        %v3387 = vadd.f32 %v3280, %v3355
        %v3388 = vadd.f32 %v3283, %v3356
        %v3389 = vadd.f32 %v3286, %v3357
        %v3390 = vadd.f32 %v3289, %v3358
        %v3391 = vadd.f32 %v3292, %v3359
        %v3392 = vadd.f32 %v3295, %v3360
        %v3393 = vadd.f32 %v3298, %v3361
        %v3394 = vadd.f32 %v3301, %v3362
        %v3395 = vadd.f32 %v3304, %v3363
        %v3396 = vadd.f32 %v3307, %v3364
        %v3397 = vadd.f32 %v3310, %v3365
        %v3398 = vadd.f32 %v3313, %v3366
        %v3399 = vadd.f32 %v3316, %v3367
        %v3400 = vadd.f32 %v3319, %v3368
        %v3401 = vadd.f32 %v3322, %v3369
        %v3402 = vadd.f32 %v3325, %v3370
        %v3403 = vadd.f32 %v3328, %v3371
        %v3404 = vadd.f32 %v3331, %v3372
        %v3405 = vadd.f32 %v3334, %v3373
        %v3406 = vadd.f32 %v3337, %v3374
        %v3407 = vadd.f32 %v3340, %v3375
        %v3408 = vadd.f32 %v3343, %v3376
        %v3409 = vmax.f32 %v3377, 0.0
        %v3410 = vmax.f32 %v3378, 0.0
        %v3411 = vmax.f32 %v3379, 0.0
        %v3412 = vmax.f32 %v3380, 0.0
        %v3413 = vmax.f32 %v3381, 0.0
        %v3414 = vmax.f32 %v3382, 0.0
        %v3415 = vmax.f32 %v3383, 0.0
        %v3416 = vmax.f32 %v3384, 0.0
        %v3417 = vmax.f32 %v3385, 0.0
        %v3418 = vmax.f32 %v3386, 0.0
        %v3419 = vmax.f32 %v3387, 0.0
        %v3420 = vmax.f32 %v3388, 0.0
        %v3421 = vmax.f32 %v3389, 0.0
        %v3422 = vmax.f32 %v3390, 0.0
        %v3423 = vmax.f32 %v3391, 0.0
        %v3424 = vmax.f32 %v3392, 0.0
        %v3425 = vmax.f32 %v3393, 0.0
        %v3426 = vmax.f32 %v3394, 0.0
        %v3427 = vmax.f32 %v3395, 0.0
        %v3428 = vmax.f32 %v3396, 0.0
        %v3429 = vmax.f32 %v3397, 0.0
        %v3430 = vmax.f32 %v3398, 0.0
        %v3431 = vmax.f32 %v3399, 0.0
        %v3432 = vmax.f32 %v3400, 0.0
        %v3433 = vmax.f32 %v3401, 0.0
        %v3434 = vmax.f32 %v3402, 0.0
        %v3435 = vmax.f32 %v3403, 0.0
        %v3436 = vmax.f32 %v3404, 0.0
        %v3437 = vmax.f32 %v3405, 0.0
        %v3438 = vmax.f32 %v3406, 0.0
        %v3439 = vmax.f32 %v3407, 0.0
        %v3440 = vmax.f32 %v3408, 0.0
        %3441 = vst.msk [vmem:[%s298] sm:$0xff] %vm339, %v3409
        %3442 = vst.msk [vmem:[%s298 + $0x8] sm:$0xff] %vm339, %v3410
        %3443 = vst.msk [vmem:[%s298 + $0x10] sm:$0xff] %vm339, %v3411
        %3444 = vst.msk [vmem:[%s298 + $0x18] sm:$0xff] %vm339, %v3412
        %3445 = vst.msk [vmem:[%s298 + $0x20] sm:$0xff] %vm339, %v3413
        %3446 = vst.msk [vmem:[%s298 + $0x28] sm:$0xff] %vm339, %v3414
        %3447 = vst.msk [vmem:[%s298 + $0x30] sm:$0xff] %vm339, %v3415
        %3448 = vst.msk [vmem:[%s298 + $0x38] sm:$0xff] %vm339, %v3416
        %3449 = vst.msk [vmem:[%s298 + $0x40] sm:$0xff] %vm339, %v3417
        %3450 = vst.msk [vmem:[%s298 + $0x48] sm:$0xff] %vm339, %v3418
        %3451 = vst.msk [vmem:[%s298 + $0x50] sm:$0xff] %vm339, %v3419
        %3452 = vst.msk [vmem:[%s298 + $0x58] sm:$0xff] %vm339, %v3420
        %3453 = vst.msk [vmem:[%s298 + $0x60] sm:$0xff] %vm339, %v3421
        %3454 = vst.msk [vmem:[%s298 + $0x68] sm:$0xff] %vm339, %v3422
        %3455 = vst.msk [vmem:[%s298 + $0x70] sm:$0xff] %vm339, %v3423
        %3456 = vst.msk [vmem:[%s298 + $0x78] sm:$0xff] %vm339, %v3424
        %3457 = vst.msk [vmem:[%s298 + $0x80] sm:$0xff] %vm339, %v3425
        %3458 = vst.msk [vmem:[%s298 + $0x88] sm:$0xff] %vm339, %v3426
        %3459 = vst.msk [vmem:[%s298 + $0x90] sm:$0xff] %vm339, %v3427
        %3460 = vst.msk [vmem:[%s298 + $0x98] sm:$0xff] %vm339, %v3428
        %3461 = vst.msk [vmem:[%s298 + $0xa0] sm:$0xff] %vm339, %v3429
        %3462 = vst.msk [vmem:[%s298 + $0xa8] sm:$0xff] %vm339, %v3430
        %3463 = vst.msk [vmem:[%s298 + $0xb0] sm:$0xff] %vm339, %v3431
        %3464 = vst.msk [vmem:[%s298 + $0xb8] sm:$0xff] %vm339, %v3432
        %3465 = vst.msk [vmem:[%s298 + $0xc0] sm:$0xff] %vm339, %v3433
        %3466 = vst.msk [vmem:[%s298 + $0xc8] sm:$0xff] %vm339, %v3434
        %3467 = vst.msk [vmem:[%s298 + $0xd0] sm:$0xff] %vm339, %v3435
        %3468 = vst.msk [vmem:[%s298 + $0xd8] sm:$0xff] %vm339, %v3436
        %3469 = vst.msk [vmem:[%s298 + $0xe0] sm:$0xff] %vm339, %v3437
        %3470 = vst.msk [vmem:[%s298 + $0xe8] sm:$0xff] %vm339, %v3438
        %3471 = vst.msk [vmem:[%s298 + $0xf0] sm:$0xff] %vm339, %v3439
        %3472 = vst.msk [vmem:[%s298 + $0xf8] sm:$0xff] %vm339, %v3440
        %s3473 = sand.u32 %s184, 1
        %s3474 = scalar_lea.sflag [#allocation5], %s3473
        %s3475 = sand.u32 %s184, 1
        %s3476 = smul.addr %s3475, 256
        %s3477 = scalar_lea.vmem [#allocation6], %s3476
        // Predicated region
        $region53: #{bottleneck_forward.1} parent=47 // pred_check
          %p3478 = pneg %p194
        $region54: #{bottleneck_forward.1} parent=47 // pred_check_branch
          %3480 = sbr.rel (%p3478) target = $region56
        $region55: #{bottleneck_forward.1} parent=47 // pred_region
          %3482 = vsyncadd %s3474, 0
          %s3483 = smul.addr %s24, 32
          %s3484 = smul.addr %s3483, 8
          %s3485 = scalar_lea.hbm %s7, %s3484
          %s3486 = sshll.u32 %s3477, 4
          %s3487 = int_to_ptr.vmem [resolvable:$true] %s3486
          %s3488 = sshll.u32 %s3485, 4
          %s3489 = int_to_ptr.hbm [resolvable:$true] %s3488
          %3494 = dma.vmem_to_hbm [thread:$0]  %s3487, 4096, %s3489, %s3474, 128, 128, 8
        $region56: #{bottleneck_forward.1} parent=47 // pred_fallthru
          _
      $region48: #{bottleneck_forward.1} parent=5 // pred_fallthru
        _
      %p3495 = scmp.le.s32.totalorder 2, %s19
      // Predicated region
      $region57: #{bottleneck_forward.1} parent=5 // pred_check
        %p3496 = pneg %p3495
      $region58: #{bottleneck_forward.1} parent=5 // pred_check_branch
        %3498 = sbr.rel (%p3496) target = $region60
      $region59: #{bottleneck_forward.1} parent=5 // pred_region
        %s3499 = ssub.s32 %s19, 2
        // Predicated region
        $region61: #{bottleneck_forward.1} parent=59 // pred_check
          %p3500 = pneg %p200
        $region62: #{bottleneck_forward.1} parent=59 // pred_check_branch
          %3502 = sbr.rel (%p3500) target = $region64
        $region63: #{bottleneck_forward.1} parent=59 // pred_region
          %s3503 = sand.u32 %s185, 1
          %s3504 = scalar_lea.sflag [#allocation5], %s3503
          %s3505 = sand.u32 %s185, 1
          %s3506 = smul.addr %s3505, 256
          %s3507 = scalar_lea.vmem [#allocation6], %s3506
          %3509 = dma.done %s3504, 4096
        $region64: #{bottleneck_forward.1} parent=59 // pred_fallthru
          _
      $region60: #{bottleneck_forward.1} parent=5 // pred_fallthru
        _
    $region6: #{bottleneck_forward.1} parent=1 // loop_footer
      %s23 = sadd.s32 1, %s19
    $region7: #{bottleneck_forward.1} parent=1 // loop_footer_branch
      %18 = sbr.rel target = $region3
    $region8: #{bottleneck_forward.1} parent=1 // loop_exit
      _
    %3510 = vsyncpa [#allocation4], 1
    %s3511 = scalar_lea.sflag [#allocation4], 1
    %3512 = vsyncpa %s3511, 1
    %3513 = vsyncpa [#allocation5], 1
    %s3514 = scalar_lea.sflag [#allocation5], 1
    %3515 = vsyncpa %s3514, 1

</llo_original>
